<compile_context>
chip_gen: v5e
topology: v5e:2x2
jax: 0.10.0
libtpu: 0.0.40
codegen_flags: <defaults>
</compile_context>

<pallas_src>
import functools

import jax
import jax.numpy as jnp
from jax.experimental import pallas as pl
from jax.experimental.pallas import tpu as pltpu


def _attention_kernel(x_ref, wqkv_ref, wproj_ref, bproj_ref, o_ref, *,
                      batch_block, tokens, num_heads, head_dim):
    """One grid step handles `batch_block` batch elements, fully batched."""
    BB, N, H, Dh = batch_block, tokens, num_heads, head_dim
    C = H * Dh
    T = BB * N                                                 # rows in this step

    xb = x_ref[...].astype(jnp.bfloat16)                       # (T, C)

    # --- ONE fused QKV matmul (softmax scale pre-folded into the Q columns). ---
    qkv = jnp.dot(xb, wqkv_ref[...],
                  preferred_element_type=jnp.float32)          # (T, 3C), f32 accum
    qkv = qkv.astype(jnp.bfloat16)                             # cast ONCE

    # --- Split q/k/v + head transpose with a single layout-aware einshape. ---
    # qkv columns are laid out (3, H, Dh) == (3*H, Dh).
    qkv3 = pltpu.einshape("nhd->hnd", qkv.reshape(T, 3 * H, Dh))   # (3H, T, Dh)
    # "group" axis g = h * BB + b; any fixed order is fine for the batched
    # einsums and is exactly inverted on the way out.
    q = qkv3[0 * H:1 * H].reshape(H * BB, N, Dh)
    k = qkv3[1 * H:2 * H].reshape(H * BB, N, Dh)
    v = qkv3[2 * H:3 * H].reshape(H * BB, N, Dh)

    # --- Attention core: one batched scores einsum + one batched attn@V einsum. ---
    s = jnp.einsum("gnd,gmd->gnm", q, k,
                   preferred_element_type=jnp.float32)         # (g, N, N) f32
    s = s - jnp.max(s, axis=-1, keepdims=True)
    p = jnp.exp(s)
    p = p * pl.reciprocal(jnp.sum(p, axis=-1, keepdims=True), approx=True)
    # attn_drop is Dropout(0.0) -> identity.

    ctx = jnp.einsum("gnm,gmd->gnd", p.astype(jnp.bfloat16), v,
                     preferred_element_type=jnp.float32)       # (g, N, Dh)

    # --- (g, N, Dh) -> (T, C) == torch (attn @ v).transpose(1, 2).reshape(B, N, C) ---
    ctx = pltpu.einshape("hnd->nhd",
                         ctx.astype(jnp.bfloat16).reshape(H, BB * N, Dh))  # (T, H, Dh)

    out = jnp.dot(ctx.reshape(T, C), wproj_ref[...],
                  preferred_element_type=jnp.float32) + bproj_ref[...]
    # proj_drop is Dropout(0.0) -> identity.
    o_ref[...] = out.astype(o_ref.dtype)


def attention_pallas(x, w_qkv, w_proj, b_proj, *, num_heads, batch_block=None):
    """x: (B, N, C); w_qkv: (3C, C) [qkv_bias=False]; w_proj: (C, C); b_proj: (C,)."""
    B, N, C = x.shape
    head_dim = C // num_heads
    scale = head_dim ** (-0.5)

    if batch_block is None:
        # Target ~256 rows per grid step (v6e MXU-utilization guidance), capped
        # at B and forced to divide B.  For tiny B this folds the whole batch
        # into one step; for large B it yields a multi-step "parallel" grid.
        bb = max(1, min(B, 256 // max(N, 1)))
        while B % bb:
            bb -= 1
        batch_block = bb
    assert B % batch_block == 0, "batch_block must divide B"
    num_steps = B // batch_block
    rows = batch_block * N

    # --- Free wrapper-side prep (XLA const-folds for static weights). ---
    wqkv = jnp.transpose(w_qkv)                        # (C, 3C), cols = [q | k | v]
    wqkv = wqkv.at[:, :C].multiply(scale)              # fold softmax scale into W_q
    wqkv = wqkv.astype(jnp.bfloat16)
    wp = jnp.transpose(w_proj).astype(jnp.bfloat16)    # (C, C)
    bp = b_proj.reshape(1, C).astype(jnp.float32)      # (1, C)
    x2 = x.reshape(B * N, C)                           # fold batch into rows

    kernel = functools.partial(
        _attention_kernel, batch_block=batch_block, tokens=N,
        num_heads=num_heads, head_dim=head_dim)

    flops = (2 * B * N * C * 3 * C                     # fused QKV projection
             + 2 * 2 * B * num_heads * N * N * head_dim  # scores + attn@V
             + 2 * B * N * C * C)                      # output projection
    transcendentals = B * num_heads * N * N + B * num_heads * N
    bytes_accessed = (B * N * C * 4                    # x (f32)
                      + (3 * C * C + C * C) * 2 + C * 4  # weights (bf16) + bias
                      + B * N * C * 4)                 # output (f32)

    out2 = pl.pallas_call(
        kernel,
        out_shape=jax.ShapeDtypeStruct((B * N, C), x.dtype),
        grid_spec=pltpu.PrefetchScalarGridSpec(
            num_scalar_prefetch=0,
            grid=(num_steps,),                         # parallel axis over batch blocks
            in_specs=[
                pl.BlockSpec((rows, C), lambda i: (i, 0)),      # x rows for this step
                pl.BlockSpec((C, 3 * C), lambda i: (0, 0)),     # fused Wqkv^T (bf16)
                pl.BlockSpec((C, C), lambda i: (0, 0)),         # Wproj^T (bf16)
                pl.BlockSpec((1, C), lambda i: (0, 0)),         # b_proj (f32)
            ],
            out_specs=pl.BlockSpec((rows, C), lambda i: (i, 0)),
        ),
        compiler_params=pltpu.CompilerParams(
            dimension_semantics=("parallel",)),        # lets v7x shard steps over 2 TCs
        cost_estimate=pl.CostEstimate(
            flops=flops, transcendentals=transcendentals,
            bytes_accessed=bytes_accessed),
    )(x2, wqkv, wp, bp)

    return out2.reshape(B, N, C)


def attention_reference(x, w_qkv, w_proj, b_proj, *, num_heads):
    """Pure-JAX f32 replica of the PyTorch forward, for verification."""
    B, N, C = x.shape
    head_dim = C // num_heads
    scale = head_dim ** (-0.5)
    qkv = x @ w_qkv.T                                  # (B, N, 3C)
    qkv = qkv.reshape(B, N, 3, num_heads, head_dim).transpose(2, 0, 3, 1, 4)
    q, k, v = qkv[0], qkv[1], qkv[2]                   # (B, H, N, Dh)
    attn = jnp.einsum("bhqd,bhkd->bhqk", q, k) * scale
    attn = jax.nn.softmax(attn, axis=-1)
    out = jnp.einsum("bhqk,bhkd->bhqd", attn, v)       # (B, H, N, Dh)
    out = out.transpose(0, 2, 1, 3).reshape(B, N, C)
    return out @ w_proj.T + b_proj


if __name__ == "__main__":
    # Small shapes consistent with the module: dim divisible by num_heads.
    B, N, C = 2, 16, 64
    num_heads = 8

    key = jax.random.PRNGKey(0)
    kx, kqkv, kproj, kb = jax.random.split(key, 4)

    x = jax.random.normal(kx, (B, N, C), dtype=jnp.float32)
    # nn.Linear(dim, 3*dim, bias=False): weight (3C, C).
    w_qkv = jax.random.normal(kqkv, (3 * C, C), dtype=jnp.float32) * 0.02
    # nn.Linear(dim, dim): weight (C, C), bias (C,).
    w_proj = jax.random.normal(kproj, (C, C), dtype=jnp.float32) * 0.02
    b_proj = jax.random.normal(kb, (C,), dtype=jnp.float32) * 0.02

    ref = attention_reference(x, w_qkv, w_proj, b_proj, num_heads=num_heads)

    # Default: auto batch_block folds the whole batch into a single grid step
    # (max MXU rows per pass -- the right default for v5e/v6e at these shapes).
    out = attention_pallas(x, w_qkv, w_proj, b_proj, num_heads=num_heads)
    out = jax.block_until_ready(out)
    assert out.shape == (B, N, C)
    # bf16 MXU inputs (f32 accumulation) + approx reciprocal -> loosened tolerance.
    assert jnp.allclose(out, ref, atol=5e-3, rtol=5e-2), "mismatch (folded batch)"

    # Multi-step "parallel" grid over batch elements (one per step): exercises the
    # path that lets v7x's two TensorCores split the work.
    out_p = attention_pallas(x, w_qkv, w_proj, b_proj, num_heads=num_heads,
                             batch_block=1)
    out_p = jax.block_until_ready(out_p)
    assert jnp.allclose(out_p, ref, atol=5e-3, rtol=5e-2), "mismatch (parallel grid)"

    print("KERNEL_OK")
</pallas_src>

<mosaic_0001>
module attributes {stable_mosaic.version = 11 : i64} {
  func.func @_attention_kernel(%arg0: i32, %arg1: memref<32x64xf32, #tpu.memory_space<vmem>>, %arg2: memref<64x192xbf16, #tpu.memory_space<vmem>>, %arg3: memref<64x64xbf16, #tpu.memory_space<vmem>>, %arg4: memref<1x64xf32, #tpu.memory_space<vmem>>, %arg5: memref<32x64xf32, #tpu.memory_space<vmem>>) attributes {dimension_semantics = [#tpu.dimension_semantics<parallel>], iteration_bounds = array<i64: 1>, scalar_prefetch = 0 : i64, scratch_operands = 0 : i64, tpu.core_type = #tpu.core_type<tc>, window_params = [{transform_indices = @transform_0, window_bounds = array<i64: 32, 64>}, {pipeline_mode = #tpu.pipeline_mode<synchronous>, transform_indices = @transform_1, window_bounds = array<i64: 64, 192>}, {pipeline_mode = #tpu.pipeline_mode<synchronous>, transform_indices = @transform_2, window_bounds = array<i64: 64, 64>}, {pipeline_mode = #tpu.pipeline_mode<synchronous>, transform_indices = @transform_3, window_bounds = array<i64: 1, 64>}, {transform_indices = @transform_4, window_bounds = array<i64: 32, 64>}]} {
    %c0 = arith.constant 0 : index
    %c0_0 = arith.constant 0 : index
    %0 = vector.load %arg1[%c0, %c0_0] : memref<32x64xf32, #tpu.memory_space<vmem>>, vector<32x64xf32>
    %1 = arith.truncf %0 : vector<32x64xf32> to vector<32x64xbf16>
    %c0_1 = arith.constant 0 : index
    %c0_2 = arith.constant 0 : index
    %2 = vector.load %arg2[%c0_1, %c0_2] : memref<64x192xbf16, #tpu.memory_space<vmem>>, vector<64x192xbf16>
    %cst = arith.constant dense<0.000000e+00> : vector<32x192xf32>
    %3 = tpu.matmul %1, %2, %cst {dimension_numbers = #tpu.dot_dimension_numbers<[1], [0], [0], [1], [0, 0, 1, 1], [], []>} : vector<32x64xbf16>, vector<64x192xbf16>, vector<32x192xf32> -> vector<32x192xf32>
    %4 = arith.truncf %3 : vector<32x192xf32> to vector<32x192xbf16>
    %5 = vector.shape_cast %4 : vector<32x192xbf16> to vector<32x24x8xbf16>
    %6 = tpu.transpose %5, [1, 0, 2] : vector<32x24x8xbf16> -> vector<24x32x8xbf16>
    %7 = vector.extract_strided_slice %6 {offsets = [0, 0, 0], sizes = [8, 32, 8], strides = [1, 1, 1]} : vector<24x32x8xbf16> to vector<8x32x8xbf16>
    %8 = vector.shape_cast %7 : vector<8x32x8xbf16> to vector<16x16x8xbf16>
    %9 = vector.extract_strided_slice %6 {offsets = [8, 0, 0], sizes = [8, 32, 8], strides = [1, 1, 1]} : vector<24x32x8xbf16> to vector<8x32x8xbf16>
    %10 = vector.shape_cast %9 : vector<8x32x8xbf16> to vector<16x16x8xbf16>
    %11 = vector.extract_strided_slice %6 {offsets = [16, 0, 0], sizes = [8, 32, 8], strides = [1, 1, 1]} : vector<24x32x8xbf16> to vector<8x32x8xbf16>
    %12 = vector.shape_cast %11 : vector<8x32x8xbf16> to vector<16x16x8xbf16>
    "tpu.trace_start"() <{level = 10 : i32, message = "gnd,gmd->gnm"}> : () -> ()
    %cst_3 = arith.constant dense<0.000000e+00> : vector<16x16x16xf32>
    %13 = tpu.matmul %8, %10, %cst_3 {dimension_numbers = #tpu.dot_dimension_numbers<[2], [2], [1], [1], [0, 0, 0, 1, 1, 1], [0], [0]>} : vector<16x16x8xbf16>, vector<16x16x8xbf16>, vector<16x16x16xf32> -> vector<16x16x16xf32>
    "tpu.trace_stop"() : () -> ()
    %cst_4 = arith.constant dense<0xFF800000> : vector<16x16xf32>
    %14 = vector.multi_reduction <maximumf>, %13, %cst_4 [2] : vector<16x16x16xf32> to vector<16x16xf32>
    %15 = vector.shape_cast %14 : vector<16x16xf32> to vector<16x16x1xf32>
    %16 = vector.broadcast %15 : vector<16x16x1xf32> to vector<16x16x16xf32>
    %17 = arith.subf %13, %16 : vector<16x16x16xf32>
    %18 = math.exp %17 : vector<16x16x16xf32>
    %cst_5 = arith.constant dense<0.000000e+00> : vector<16x16xf32>
    %19 = vector.multi_reduction <add>, %18, %cst_5 [2] : vector<16x16x16xf32> to vector<16x16xf32>
    %20 = vector.shape_cast %19 : vector<16x16xf32> to vector<16x16x1xf32>
    %21 = tpu.reciprocal %20 {approx = true} : vector<16x16x1xf32> -> vector<16x16x1xf32>
    %22 = vector.broadcast %21 : vector<16x16x1xf32> to vector<16x16x16xf32>
    %23 = arith.mulf %18, %22 : vector<16x16x16xf32>
    %24 = arith.truncf %23 : vector<16x16x16xf32> to vector<16x16x16xbf16>
    "tpu.trace_start"() <{level = 10 : i32, message = "gnm,gmd->gnd"}> : () -> ()
    %cst_6 = arith.constant dense<0.000000e+00> : vector<16x16x8xf32>
    %25 = tpu.matmul %24, %12, %cst_6 {dimension_numbers = #tpu.dot_dimension_numbers<[2], [1], [1], [2], [0, 0, 0, 1, 1, 2], [0], [0]>} : vector<16x16x16xbf16>, vector<16x16x8xbf16>, vector<16x16x8xf32> -> vector<16x16x8xf32>
    "tpu.trace_stop"() : () -> ()
    %26 = arith.truncf %25 : vector<16x16x8xf32> to vector<16x16x8xbf16>
    %27 = vector.shape_cast %26 : vector<16x16x8xbf16> to vector<8x32x8xbf16>
    %28 = tpu.transpose %27, [1, 0, 2] : vector<8x32x8xbf16> -> vector<32x8x8xbf16>
    %29 = vector.shape_cast %28 : vector<32x8x8xbf16> to vector<32x64xbf16>
    %c0_7 = arith.constant 0 : index
    %c0_8 = arith.constant 0 : index
    %30 = vector.load %arg3[%c0_7, %c0_8] : memref<64x64xbf16, #tpu.memory_space<vmem>>, vector<64x64xbf16>
    %cst_9 = arith.constant dense<0.000000e+00> : vector<32x64xf32>
    %31 = tpu.matmul %29, %30, %cst_9 {dimension_numbers = #tpu.dot_dimension_numbers<[1], [0], [0], [1], [0, 0, 1, 1], [], []>} : vector<32x64xbf16>, vector<64x64xbf16>, vector<32x64xf32> -> vector<32x64xf32>
    %c0_10 = arith.constant 0 : index
    %c0_11 = arith.constant 0 : index
    %32 = vector.load %arg4[%c0_10, %c0_11] : memref<1x64xf32, #tpu.memory_space<vmem>>, vector<1x64xf32>
    %33 = vector.broadcast %32 : vector<1x64xf32> to vector<32x64xf32>
    %34 = arith.addf %31, %33 : vector<32x64xf32>
    %c0_12 = arith.constant 0 : index
    %c0_13 = arith.constant 0 : index
    %35 = vector.load %arg5[%c0_12, %c0_13] : memref<32x64xf32, #tpu.memory_space<vmem>>, vector<32x64xf32>
    tpu.vector_store %arg5[%c0_12, %c0_13], %34 {strides = array<i32>} : memref<32x64xf32, #tpu.memory_space<vmem>>, vector<32x64xf32>,
    return
  }
  func.func @transform_0(%arg0: i32) -> (i32, i32) {
    %c0_i32 = arith.constant 0 : i32
    %c0_i32_0 = arith.constant 0 : i32
    return %arg0, %c0_i32 : i32, i32
  }
  func.func @transform_1(%arg0: i32) -> (i32, i32) {
    %c0_i32 = arith.constant 0 : i32
    %c0_i32_0 = arith.constant 0 : i32
    %c0_i32_1 = arith.constant 0 : i32
    return %c0_i32, %c0_i32_0 : i32, i32
  }
  func.func @transform_2(%arg0: i32) -> (i32, i32) {
    %c0_i32 = arith.constant 0 : i32
    %c0_i32_0 = arith.constant 0 : i32
    %c0_i32_1 = arith.constant 0 : i32
    return %c0_i32, %c0_i32_0 : i32, i32
  }
  func.func @transform_3(%arg0: i32) -> (i32, i32) {
    %c0_i32 = arith.constant 0 : i32
    %c0_i32_0 = arith.constant 0 : i32
    %c0_i32_1 = arith.constant 0 : i32
    return %c0_i32, %c0_i32_0 : i32, i32
  }
  func.func @transform_4(%arg0: i32) -> (i32, i32) {
    %c0_i32 = arith.constant 0 : i32
    %c0_i32_0 = arith.constant 0 : i32
    return %arg0, %c0_i32 : i32, i32
  }
}

</mosaic_0001>

<llo_original>
// kernel: tpu_custom_call.1
$region0: #{tpu_custom_call.1}
  #allocation0 [shape = 'u32[]', space=smem, size = 0x4, offset = 0x4, fixed_abs, tag = 'smem constant byte address 0x4 - core index']
  #allocation1 [shape = 'u32[72,128]{1,0:T(1,128)}', space=vmem, size = 0x9000, scoped, tag = 'internal scratch']
  %s0 = inlined_call_operand.hbm [shape: f32[32,64], index: 0, kind: input, shape index: {}]
  %s1 = inlined_call_operand.hbm [shape: bf16[64,192], index: 1, kind: input, shape index: {}]
  %s2 = inlined_call_operand.hbm [shape: bf16[64,64], index: 2, kind: input, shape index: {}]
  %s3 = inlined_call_operand.vmem [shape: f32[1,64], index: 3, kind: input, shape index: {}]
  %s4 = inlined_call_operand.hbm [shape: f32[32,64], index: 4, kind: output, shape index: {}]
  %s5 = sld [smem:[#allocation0]]
  $region38: #{tpu_custom_call.1} parent=0
    _
  %s7 = ssub.s32 1, %s5
  %s8 = scalar_select 0, %s7, %s5
  $region1: #{tpu_custom_call.1} parent=0
    #allocation2 [shape = 'u8[16384]{0}', space=vmem, size = 0x4000, scoped, tag = 'input window, operand 0, single buffered']
    #allocation3 [shape = 's32[1]{0}', space=sflag, size = 0x4, scoped, tag = 'scoped memory for tpu_custom_call.1']
    #allocation4 [shape = 's32[1]{0}', space=sflag, size = 0x4, scoped, tag = 'scoped memory for tpu_custom_call.1']
    #allocation5 [shape = 'u8[32768]{0}', space=vmem, size = 0x8000, scoped, tag = 'input window, operand 1, single buffered']
    #allocation6 [shape = 's32[1]{0}', space=sflag, size = 0x4, scoped, tag = 'scoped memory for tpu_custom_call.1']
    #allocation7 [shape = 'u8[16384]{0}', space=vmem, size = 0x4000, scoped, tag = 'input window, operand 2, single buffered']
    #allocation8 [shape = 'u8[16384]{0}', space=vmem, size = 0x4000, scoped, tag = 'output window, operand 0, single buffered']
    %9 = vsyncpa [#allocation3], 0
    %10 = vsyncpa [#allocation6], 0
    %11 = vsyncpa [#allocation4], 0
    // Predicated region
    $region2: #{tpu_custom_call.1} parent=1 // pred_check
      _
    $region3: #{tpu_custom_call.1} parent=1 // pred_check_branch
      %13 = sbr.rel (0) target = $region5
    $region4: #{tpu_custom_call.1} parent=1 // pred_region
      %15 = vsyncadd [#allocation3], 0
      %s16 = sshll.u32 %s0, 4
      %s17 = int_to_ptr.hbm [resolvable:$true] %s16
      %s18 = sshll.u32 [#allocation2], 4
      %s19 = int_to_ptr.vmem [resolvable:$true] %s18
      %24 = dma.hbm_to_vmem [thread:$0]  %s17, 512, %s19, [#allocation3], 128, 128, 8
    $region5: #{tpu_custom_call.1} parent=1 // pred_fallthru
      _
    // Predicated region
    $region6: #{tpu_custom_call.1} parent=1 // pred_check
      _
    $region7: #{tpu_custom_call.1} parent=1 // pred_check_branch
      %26 = sbr.rel (0) target = $region9
    $region8: #{tpu_custom_call.1} parent=1 // pred_region
      %28 = vsyncadd [#allocation6], 0
      %s29 = sshll.u32 %s1, 4
      %s30 = int_to_ptr.hbm [resolvable:$true] %s29
      %s31 = sshll.u32 [#allocation5], 4
      %s32 = int_to_ptr.vmem [resolvable:$true] %s31
      %37 = dma.hbm_to_vmem [thread:$0]  %s30, 1024, %s32, [#allocation6], 128, 128, 8
    $region9: #{tpu_custom_call.1} parent=1 // pred_fallthru
      _
    // Predicated region
    $region10: #{tpu_custom_call.1} parent=1 // pred_check
      _
    $region11: #{tpu_custom_call.1} parent=1 // pred_check_branch
      %39 = sbr.rel (0) target = $region13
    $region12: #{tpu_custom_call.1} parent=1 // pred_region
      %41 = vsyncadd [#allocation6], 0
      %s42 = sshll.u32 %s2, 4
      %s43 = int_to_ptr.hbm [resolvable:$true] %s42
      %s44 = sshll.u32 [#allocation7], 4
      %s45 = int_to_ptr.vmem [resolvable:$true] %s44
      %50 = dma.hbm_to_vmem [thread:$0]  %s43, 512, %s45, [#allocation6], 64, 64, 4
    $region13: #{tpu_custom_call.1} parent=1 // pred_fallthru
      _
    // Predicated region
    $region14: #{tpu_custom_call.1} parent=1 // pred_check
      _
    $region15: #{tpu_custom_call.1} parent=1 // pred_check_branch
      %52 = sbr.rel (0) target = $region17
    $region16: #{tpu_custom_call.1} parent=1 // pred_region
      _
    $region17: #{tpu_custom_call.1} parent=1 // pred_fallthru
      _
    // Predicated region
    $region18: #{tpu_custom_call.1} parent=1 // pred_check
      _
    $region19: #{tpu_custom_call.1} parent=1 // pred_check_branch
      %54 = sbr.rel (0) target = $region21
    $region20: #{tpu_custom_call.1} parent=1 // pred_region
      %56 = dma.done [#allocation3], 512
    $region21: #{tpu_custom_call.1} parent=1 // pred_fallthru
      _
    // Predicated region
    $region22: #{tpu_custom_call.1} parent=1 // pred_check
      _
    $region23: #{tpu_custom_call.1} parent=1 // pred_check_branch
      %58 = sbr.rel (0) target = $region25
    $region24: #{tpu_custom_call.1} parent=1 // pred_region
      %60 = dma.done [#allocation6], 1024
    $region25: #{tpu_custom_call.1} parent=1 // pred_fallthru
      _
    // Predicated region
    $region26: #{tpu_custom_call.1} parent=1 // pred_check
      _
    $region27: #{tpu_custom_call.1} parent=1 // pred_check_branch
      %62 = sbr.rel (0) target = $region29
    $region28: #{tpu_custom_call.1} parent=1 // pred_region
      %64 = dma.done [#allocation6], 512
    $region29: #{tpu_custom_call.1} parent=1 // pred_fallthru
      _
    %v66 = vld [vmem:[#allocation2] sm:$0xff]
    %v67 = vld [vmem:[#allocation2 + $0x8] sm:$0xff]
    %v68 = vld [vmem:[#allocation2 + $0x10] sm:$0xff]
    %v69 = vld [vmem:[#allocation2 + $0x18] sm:$0xff]
    %v70 = vpack.c.bf16 %v67, %v66
    %v71 = vpack.c.bf16 %v69, %v68
    %v72 = vld [vmem:[#allocation5] sm:$0xff]
    %v73 = vld [vmem:[#allocation5 + $0x8] sm:$0xff]
    %v74 = vld [vmem:[#allocation5 + $0x10] sm:$0xff]
    %v75 = vld [vmem:[#allocation5 + $0x18] sm:$0xff]
    %v76 = vld [vmem:[#allocation5 + $0x20] sm:$0xff]
    %v77 = vld [vmem:[#allocation5 + $0x28] sm:$0xff]
    %v78 = vld [vmem:[#allocation5 + $0x30] sm:$0xff]
    %v79 = vld [vmem:[#allocation5 + $0x38] sm:$0xff]
    %v88 = vunpack.c.l.b16 %v72
    %v89 = vunpack.c.h.b16 %v72
    %v90 = vunpack.c.l.b16 %v73
    %v91 = vunpack.c.h.b16 %v73
    %v92 = vunpack.c.l.b16 %v74
    %v93 = vunpack.c.h.b16 %v74
    %v94 = vunpack.c.l.b16 %v75
    %v95 = vunpack.c.h.b16 %v75
    %v96 = vunpack.c.l.b16 %v76
    %v97 = vunpack.c.h.b16 %v76
    %v98 = vunpack.c.l.b16 %v77
    %v99 = vunpack.c.h.b16 %v77
    %v100 = vunpack.c.l.b16 %v78
    %v101 = vunpack.c.h.b16 %v78
    %v102 = vunpack.c.l.b16 %v79
    %v103 = vunpack.c.h.b16 %v79
    %v104 = vpack.c.b16 %v90, %v88
    %v105 = vpack.c.b16 %v91, %v89
    %v106 = vpack.c.b16 %v94, %v92
    %v107 = vpack.c.b16 %v95, %v93
    %v108 = vpack.c.b16 %v98, %v96
    %v109 = vpack.c.b16 %v99, %v97
    %v110 = vpack.c.b16 %v102, %v100
    %v111 = vpack.c.b16 %v103, %v101
    %vm120 = vcmask 523264
    %v122 = vsel %vm120, %v70, 0
    %v125 = vsel %vm120, %v71, 0
    %127 = vmatpush.bf16.msra.mxu0 0
    %128 = vmatpush.bf16.msra.mxu0 0
    %129 = vmatpush.bf16.msra.mxu0 0
    %130 = vmatpush.bf16.msra.mxu0 0
    %131 = vmatpush.bf16.msra.mxu0 %v110
    %132 = vmatpush.bf16.msra.mxu0 %v108
    %133 = vmatpush.bf16.msra.mxu0 %v106
    %134 = vmatpush.bf16.msra.mxu0 %v104
    %135 = vmatmul.bf16.gmra.mxu0 %v122
    %v136 = vpop.f32.mrf.mxu0
    %v137 = vadd.f32 0.0, %v136
    %v138 = vpop.f32.mrf.mxu0
    %v139 = vadd.f32 0.0, %v138
    %140 = vmatmul.bf16.gmra.mxu0 %v125
    %v141 = vpop.f32.mrf.mxu0
    %v142 = vadd.f32 0.0, %v141
    %v143 = vpop.f32.mrf.mxu0
    %v144 = vadd.f32 0.0, %v143
    %145 = vdwg.mxu0
    %146 = vmatpush.bf16.msra.mxu0 0
    %147 = vmatpush.bf16.msra.mxu0 0
    %148 = vmatpush.bf16.msra.mxu0 0
    %149 = vmatpush.bf16.msra.mxu0 0
    %150 = vmatpush.bf16.msra.mxu0 %v111
    %151 = vmatpush.bf16.msra.mxu0 %v109
    %152 = vmatpush.bf16.msra.mxu0 %v107
    %153 = vmatpush.bf16.msra.mxu0 %v105
    %154 = vmatmul.bf16.gmra.mxu0 %v122
    %v155 = vpop.f32.mrf.mxu0
    %v156 = vadd.f32 0.0, %v155
    %v157 = vpop.f32.mrf.mxu0
    %v158 = vadd.f32 0.0, %v157
    %159 = vmatmul.bf16.gmra.mxu0 %v125
    %v160 = vpop.f32.mrf.mxu0
    %v161 = vadd.f32 0.0, %v160
    %v162 = vpop.f32.mrf.mxu0
    %v163 = vadd.f32 0.0, %v162
    %164 = vdwg.mxu0
    %v165 = vpack.c.bf16 %v156, %v137
    %v166 = vpack.c.bf16 %v158, %v139
    %v167 = vpack.c.bf16 %v161, %v142
    %v168 = vpack.c.bf16 %v163, %v144
    %v173 = vrot.slane %v165, 4
    %v174 = vrot.slane %v166, 4
    %v175 = vrot.slane %v167, 4
    %v176 = vrot.slane %v168, 4
    %181 = vrot.lane.b32.xlu0 %v165, 120
    %v182 = vpop.permute.xlu0 %181
    %183 = vrot.lane.b32.xlu0 %v166, 120
    %v184 = vpop.permute.xlu0 %183
    %185 = vrot.lane.b32.xlu0 %v167, 120
    %v186 = vpop.permute.xlu0 %185
    %187 = vrot.lane.b32.xlu0 %v168, 120
    %v188 = vpop.permute.xlu0 %187
    %v189 = vrot.slane %v182, 4
    %v190 = vrot.slane %v184, 4
    %v191 = vrot.slane %v186, 4
    %v192 = vrot.slane %v188, 4
    %197 = vrot.lane.b32.xlu0 %v165, 112
    %v198 = vpop.permute.xlu0 %197
    %199 = vrot.lane.b32.xlu0 %v166, 112
    %v200 = vpop.permute.xlu0 %199
    %201 = vrot.lane.b32.xlu0 %v167, 112
    %v202 = vpop.permute.xlu0 %201
    %203 = vrot.lane.b32.xlu0 %v168, 112
    %v204 = vpop.permute.xlu0 %203
    %v205 = vrot.slane %v198, 4
    %v206 = vrot.slane %v200, 4
    %v207 = vrot.slane %v202, 4
    %v208 = vrot.slane %v204, 4
    %213 = vrot.lane.b32.xlu0 %v165, 104
    %v214 = vpop.permute.xlu0 %213
    %215 = vrot.lane.b32.xlu0 %v166, 104
    %v216 = vpop.permute.xlu0 %215
    %217 = vrot.lane.b32.xlu0 %v167, 104
    %v218 = vpop.permute.xlu0 %217
    %219 = vrot.lane.b32.xlu0 %v168, 104
    %v220 = vpop.permute.xlu0 %219
    %v221 = vrot.slane %v214, 4
    %v222 = vrot.slane %v216, 4
    %v223 = vrot.slane %v218, 4
    %v224 = vrot.slane %v220, 4
    %229 = vrot.lane.b32.xlu0 %v165, 96
    %v230 = vpop.permute.xlu0 %229
    %231 = vrot.lane.b32.xlu0 %v166, 96
    %v232 = vpop.permute.xlu0 %231
    %233 = vrot.lane.b32.xlu0 %v167, 96
    %v234 = vpop.permute.xlu0 %233
    %235 = vrot.lane.b32.xlu0 %v168, 96
    %v236 = vpop.permute.xlu0 %235
    %v237 = vrot.slane %v230, 4
    %v238 = vrot.slane %v232, 4
    %v239 = vrot.slane %v234, 4
    %v240 = vrot.slane %v236, 4
    %245 = vrot.lane.b32.xlu0 %v165, 88
    %v246 = vpop.permute.xlu0 %245
    %247 = vrot.lane.b32.xlu0 %v166, 88
    %v248 = vpop.permute.xlu0 %247
    %249 = vrot.lane.b32.xlu0 %v167, 88
    %v250 = vpop.permute.xlu0 %249
    %251 = vrot.lane.b32.xlu0 %v168, 88
    %v252 = vpop.permute.xlu0 %251
    %v253 = vrot.slane %v246, 4
    %v254 = vrot.slane %v248, 4
    %v255 = vrot.slane %v250, 4
    %v256 = vrot.slane %v252, 4
    %261 = vrot.lane.b32.xlu0 %v165, 80
    %v262 = vpop.permute.xlu0 %261
    %263 = vrot.lane.b32.xlu0 %v166, 80
    %v264 = vpop.permute.xlu0 %263
    %265 = vrot.lane.b32.xlu0 %v167, 80
    %v266 = vpop.permute.xlu0 %265
    %267 = vrot.lane.b32.xlu0 %v168, 80
    %v268 = vpop.permute.xlu0 %267
    %v269 = vrot.slane %v262, 4
    %v270 = vrot.slane %v264, 4
    %v271 = vrot.slane %v266, 4
    %v272 = vrot.slane %v268, 4
    %277 = vrot.lane.b32.xlu0 %v165, 72
    %v278 = vpop.permute.xlu0 %277
    %279 = vrot.lane.b32.xlu0 %v166, 72
    %v280 = vpop.permute.xlu0 %279
    %281 = vrot.lane.b32.xlu0 %v167, 72
    %v282 = vpop.permute.xlu0 %281
    %283 = vrot.lane.b32.xlu0 %v168, 72
    %v284 = vpop.permute.xlu0 %283
    %v285 = vrot.slane %v278, 4
    %v286 = vrot.slane %v280, 4
    %v287 = vrot.slane %v282, 4
    %v288 = vrot.slane %v284, 4
    %321 = vrot.lane.b32.xlu0 %v165, 64
    %v322 = vpop.permute.xlu0 %321
    %323 = vrot.lane.b32.xlu0 %v166, 64
    %v324 = vpop.permute.xlu0 %323
    %325 = vrot.lane.b32.xlu0 %v167, 64
    %v326 = vpop.permute.xlu0 %325
    %327 = vrot.lane.b32.xlu0 %v168, 64
    %v328 = vpop.permute.xlu0 %327
    %333 = vrot.lane.b32.xlu0 %v165, 56
    %v334 = vpop.permute.xlu0 %333
    %335 = vrot.lane.b32.xlu0 %v166, 56
    %v336 = vpop.permute.xlu0 %335
    %337 = vrot.lane.b32.xlu0 %v167, 56
    %v338 = vpop.permute.xlu0 %337
    %339 = vrot.lane.b32.xlu0 %v168, 56
    %v340 = vpop.permute.xlu0 %339
    %345 = vrot.lane.b32.xlu0 %v165, 48
    %v346 = vpop.permute.xlu0 %345
    %347 = vrot.lane.b32.xlu0 %v166, 48
    %v348 = vpop.permute.xlu0 %347
    %349 = vrot.lane.b32.xlu0 %v167, 48
    %v350 = vpop.permute.xlu0 %349
    %351 = vrot.lane.b32.xlu0 %v168, 48
    %v352 = vpop.permute.xlu0 %351
    %357 = vrot.lane.b32.xlu0 %v165, 40
    %v358 = vpop.permute.xlu0 %357
    %359 = vrot.lane.b32.xlu0 %v166, 40
    %v360 = vpop.permute.xlu0 %359
    %361 = vrot.lane.b32.xlu0 %v167, 40
    %v362 = vpop.permute.xlu0 %361
    %363 = vrot.lane.b32.xlu0 %v168, 40
    %v364 = vpop.permute.xlu0 %363
    %369 = vrot.lane.b32.xlu0 %v165, 32
    %v370 = vpop.permute.xlu0 %369
    %371 = vrot.lane.b32.xlu0 %v166, 32
    %v372 = vpop.permute.xlu0 %371
    %373 = vrot.lane.b32.xlu0 %v167, 32
    %v374 = vpop.permute.xlu0 %373
    %375 = vrot.lane.b32.xlu0 %v168, 32
    %v376 = vpop.permute.xlu0 %375
    %381 = vrot.lane.b32.xlu0 %v165, 24
    %v382 = vpop.permute.xlu0 %381
    %383 = vrot.lane.b32.xlu0 %v166, 24
    %v384 = vpop.permute.xlu0 %383
    %385 = vrot.lane.b32.xlu0 %v167, 24
    %v386 = vpop.permute.xlu0 %385
    %387 = vrot.lane.b32.xlu0 %v168, 24
    %v388 = vpop.permute.xlu0 %387
    %393 = vrot.lane.b32.xlu0 %v165, 16
    %v394 = vpop.permute.xlu0 %393
    %395 = vrot.lane.b32.xlu0 %v166, 16
    %v396 = vpop.permute.xlu0 %395
    %397 = vrot.lane.b32.xlu0 %v167, 16
    %v398 = vpop.permute.xlu0 %397
    %399 = vrot.lane.b32.xlu0 %v168, 16
    %v400 = vpop.permute.xlu0 %399
    %405 = vrot.lane.b32.xlu0 %v165, 8
    %v406 = vpop.permute.xlu0 %405
    %407 = vrot.lane.b32.xlu0 %v166, 8
    %v408 = vpop.permute.xlu0 %407
    %409 = vrot.lane.b32.xlu0 %v167, 8
    %v410 = vpop.permute.xlu0 %409
    %411 = vrot.lane.b32.xlu0 %v168, 8
    %v412 = vpop.permute.xlu0 %411
    %v417 = vrot.slane %v230, 4
    %vm418 = vcmask 1047556
    %v419 = vsel %vm418, %v417, %v165
    %v421 = vunpack.c.l.s4 1983009808
    %v422 = vunpack.c.0.s8 %v421
    %v423 = vperm.slane %v419, %v422
    %v424 = vrot.slane %v262, 4
    %v425 = vsel %vm418, %v424, %v198
    %v427 = vunpack.c.l.s4 1983009808
    %v428 = vunpack.c.0.s8 %v427
    %v429 = vperm.slane %v425, %v428
    %v430 = vrot.slane %v429, 4
    %v431 = vsel %vm418, %v430, %v423
    %v432 = vrot.slane %v423, 4
    %v433 = vsel %vm418, %v429, %v432
    %v435 = vunpack.c.l.s4 1934713408
    %v436 = vunpack.c.0.s8 %v435
    %v437 = vperm.slane %v431, %v436
    %v439 = vunpack.c.l.s4 1934713408
    %v440 = vunpack.c.0.s8 %v439
    %v441 = vperm.slane %v433, %v440
    %v442 = vrot.slane %v437, 4
    %v443 = vsel %vm418, 0, %v442
    %v444 = vrot.slane %v441, 4
    %v445 = vsel %vm418, 0, %v444
    %v446 = vrot.slane %v246, 4
    %v447 = vsel %vm418, %v446, %v182
    %v449 = vunpack.c.l.s4 1983009808
    %v450 = vunpack.c.0.s8 %v449
    %v451 = vperm.slane %v447, %v450
    %v452 = vrot.slane %v278, 4
    %v453 = vsel %vm418, %v452, %v214
    %v455 = vunpack.c.l.s4 1983009808
    %v456 = vunpack.c.0.s8 %v455
    %v457 = vperm.slane %v453, %v456
    %v458 = vrot.slane %v457, 4
    %v459 = vsel %vm418, %v458, %v451
    %v460 = vrot.slane %v451, 4
    %v461 = vsel %vm418, %v457, %v460
    %v463 = vunpack.c.l.s4 1934713408
    %v464 = vunpack.c.0.s8 %v463
    %v465 = vperm.slane %v459, %v464
    %v467 = vunpack.c.l.s4 1934713408
    %v468 = vunpack.c.0.s8 %v467
    %v469 = vperm.slane %v461, %v468
    %v470 = vrot.slane %v465, 4
    %v471 = vsel %vm418, 0, %v470
    %v472 = vrot.slane %v469, 4
    %v473 = vsel %vm418, 0, %v472
    %v474 = vrot.slane %v370, 4
    %v475 = vsel %vm418, %v474, %v322
    %v477 = vunpack.c.l.s4 1983009808
    %v478 = vunpack.c.0.s8 %v477
    %v479 = vperm.slane %v475, %v478
    %v480 = vrot.slane %v394, 4
    %v481 = vsel %vm418, %v480, %v346
    %v483 = vunpack.c.l.s4 1983009808
    %v484 = vunpack.c.0.s8 %v483
    %v485 = vperm.slane %v481, %v484
    %v486 = vrot.slane %v485, 4
    %v487 = vsel %vm418, %v486, %v479
    %v488 = vrot.slane %v479, 4
    %v489 = vsel %vm418, %v485, %v488
    %v491 = vunpack.c.l.s4 1934713408
    %v492 = vunpack.c.0.s8 %v491
    %v493 = vperm.slane %v487, %v492
    %v495 = vunpack.c.l.s4 1934713408
    %v496 = vunpack.c.0.s8 %v495
    %v497 = vperm.slane %v489, %v496
    %v498 = vrot.slane %v493, 4
    %v499 = vsel %vm418, 0, %v498
    %v500 = vrot.slane %v497, 4
    %v501 = vsel %vm418, 0, %v500
    %v502 = vrot.slane %v382, 4
    %v503 = vsel %vm418, %v502, %v334
    %v505 = vunpack.c.l.s4 1983009808
    %v506 = vunpack.c.0.s8 %v505
    %v507 = vperm.slane %v503, %v506
    %v508 = vrot.slane %v406, 4
    %v509 = vsel %vm418, %v508, %v358
    %v511 = vunpack.c.l.s4 1983009808
    %v512 = vunpack.c.0.s8 %v511
    %v513 = vperm.slane %v509, %v512
    %v514 = vrot.slane %v513, 4
    %v515 = vsel %vm418, %v514, %v507
    %v516 = vrot.slane %v507, 4
    %v517 = vsel %vm418, %v513, %v516
    %v519 = vunpack.c.l.s4 1934713408
    %v520 = vunpack.c.0.s8 %v519
    %v521 = vperm.slane %v515, %v520
    %v523 = vunpack.c.l.s4 1934713408
    %v524 = vunpack.c.0.s8 %v523
    %v525 = vperm.slane %v517, %v524
    %v526 = vrot.slane %v521, 4
    %v527 = vsel %vm418, 0, %v526
    %v528 = vrot.slane %v525, 4
    %v529 = vsel %vm418, 0, %v528
    %v530 = vrot.slane %v237, 4
    %v531 = vsel %vm418, %v530, %v173
    %v533 = vunpack.c.l.s4 1983009808
    %v534 = vunpack.c.0.s8 %v533
    %v535 = vperm.slane %v531, %v534
    %v536 = vrot.slane %v269, 4
    %v537 = vsel %vm418, %v536, %v205
    %v539 = vunpack.c.l.s4 1983009808
    %v540 = vunpack.c.0.s8 %v539
    %v541 = vperm.slane %v537, %v540
    %v542 = vrot.slane %v541, 4
    %v543 = vsel %vm418, %v542, %v535
    %v544 = vrot.slane %v535, 4
    %v545 = vsel %vm418, %v541, %v544
    %v547 = vunpack.c.l.s4 1934713408
    %v548 = vunpack.c.0.s8 %v547
    %v549 = vperm.slane %v543, %v548
    %v551 = vunpack.c.l.s4 1934713408
    %v552 = vunpack.c.0.s8 %v551
    %v553 = vperm.slane %v545, %v552
    %v554 = vrot.slane %v549, 4
    %v555 = vsel %vm418, 0, %v554
    %v556 = vrot.slane %v553, 4
    %v557 = vsel %vm418, 0, %v556
    %v558 = vrot.slane %v253, 4
    %v559 = vsel %vm418, %v558, %v189
    %v561 = vunpack.c.l.s4 1983009808
    %v562 = vunpack.c.0.s8 %v561
    %v563 = vperm.slane %v559, %v562
    %v564 = vrot.slane %v285, 4
    %v565 = vsel %vm418, %v564, %v221
    %v567 = vunpack.c.l.s4 1983009808
    %v568 = vunpack.c.0.s8 %v567
    %v569 = vperm.slane %v565, %v568
    %v570 = vrot.slane %v569, 4
    %v571 = vsel %vm418, %v570, %v563
    %v572 = vrot.slane %v563, 4
    %v573 = vsel %vm418, %v569, %v572
    %v575 = vunpack.c.l.s4 1934713408
    %v576 = vunpack.c.0.s8 %v575
    %v577 = vperm.slane %v571, %v576
    %v579 = vunpack.c.l.s4 1934713408
    %v580 = vunpack.c.0.s8 %v579
    %v581 = vperm.slane %v573, %v580
    %v582 = vrot.slane %v577, 4
    %v583 = vsel %vm418, 0, %v582
    %v584 = vrot.slane %v581, 4
    %v585 = vsel %vm418, 0, %v584
    %v586 = vrot.slane %v232, 4
    %v587 = vsel %vm418, %v586, %v166
    %v589 = vunpack.c.l.s4 1983009808
    %v590 = vunpack.c.0.s8 %v589
    %v591 = vperm.slane %v587, %v590
    %v592 = vrot.slane %v264, 4
    %v593 = vsel %vm418, %v592, %v200
    %v595 = vunpack.c.l.s4 1983009808
    %v596 = vunpack.c.0.s8 %v595
    %v597 = vperm.slane %v593, %v596
    %v598 = vrot.slane %v597, 4
    %v599 = vsel %vm418, %v598, %v591
    %v600 = vrot.slane %v591, 4
    %v601 = vsel %vm418, %v597, %v600
    %v603 = vunpack.c.l.s4 1934713408
    %v604 = vunpack.c.0.s8 %v603
    %v605 = vperm.slane %v599, %v604
    %v607 = vunpack.c.l.s4 1934713408
    %v608 = vunpack.c.0.s8 %v607
    %v609 = vperm.slane %v601, %v608
    %v610 = vrot.slane %v605, 4
    %v611 = vsel %vm418, 0, %v610
    %v612 = vrot.slane %v609, 4
    %v613 = vsel %vm418, 0, %v612
    %v614 = vrot.slane %v248, 4
    %v615 = vsel %vm418, %v614, %v184
    %v617 = vunpack.c.l.s4 1983009808
    %v618 = vunpack.c.0.s8 %v617
    %v619 = vperm.slane %v615, %v618
    %v620 = vrot.slane %v280, 4
    %v621 = vsel %vm418, %v620, %v216
    %v623 = vunpack.c.l.s4 1983009808
    %v624 = vunpack.c.0.s8 %v623
    %v625 = vperm.slane %v621, %v624
    %v626 = vrot.slane %v625, 4
    %v627 = vsel %vm418, %v626, %v619
    %v628 = vrot.slane %v619, 4
    %v629 = vsel %vm418, %v625, %v628
    %v631 = vunpack.c.l.s4 1934713408
    %v632 = vunpack.c.0.s8 %v631
    %v633 = vperm.slane %v627, %v632
    %v635 = vunpack.c.l.s4 1934713408
    %v636 = vunpack.c.0.s8 %v635
    %v637 = vperm.slane %v629, %v636
    %v638 = vrot.slane %v633, 4
    %v639 = vsel %vm418, 0, %v638
    %v640 = vrot.slane %v637, 4
    %v641 = vsel %vm418, 0, %v640
    %v642 = vrot.slane %v372, 4
    %v643 = vsel %vm418, %v642, %v324
    %v645 = vunpack.c.l.s4 1983009808
    %v646 = vunpack.c.0.s8 %v645
    %v647 = vperm.slane %v643, %v646
    %v648 = vrot.slane %v396, 4
    %v649 = vsel %vm418, %v648, %v348
    %v651 = vunpack.c.l.s4 1983009808
    %v652 = vunpack.c.0.s8 %v651
    %v653 = vperm.slane %v649, %v652
    %v654 = vrot.slane %v653, 4
    %v655 = vsel %vm418, %v654, %v647
    %v656 = vrot.slane %v647, 4
    %v657 = vsel %vm418, %v653, %v656
    %v659 = vunpack.c.l.s4 1934713408
    %v660 = vunpack.c.0.s8 %v659
    %v661 = vperm.slane %v655, %v660
    %v663 = vunpack.c.l.s4 1934713408
    %v664 = vunpack.c.0.s8 %v663
    %v665 = vperm.slane %v657, %v664
    %v666 = vrot.slane %v661, 4
    %v667 = vsel %vm418, 0, %v666
    %v668 = vrot.slane %v665, 4
    %v669 = vsel %vm418, 0, %v668
    %v670 = vrot.slane %v384, 4
    %v671 = vsel %vm418, %v670, %v336
    %v673 = vunpack.c.l.s4 1983009808
    %v674 = vunpack.c.0.s8 %v673
    %v675 = vperm.slane %v671, %v674
    %v676 = vrot.slane %v408, 4
    %v677 = vsel %vm418, %v676, %v360
    %v679 = vunpack.c.l.s4 1983009808
    %v680 = vunpack.c.0.s8 %v679
    %v681 = vperm.slane %v677, %v680
    %v682 = vrot.slane %v681, 4
    %v683 = vsel %vm418, %v682, %v675
    %v684 = vrot.slane %v675, 4
    %v685 = vsel %vm418, %v681, %v684
    %v687 = vunpack.c.l.s4 1934713408
    %v688 = vunpack.c.0.s8 %v687
    %v689 = vperm.slane %v683, %v688
    %v691 = vunpack.c.l.s4 1934713408
    %v692 = vunpack.c.0.s8 %v691
    %v693 = vperm.slane %v685, %v692
    %v694 = vrot.slane %v689, 4
    %v695 = vsel %vm418, 0, %v694
    %v696 = vrot.slane %v693, 4
    %v697 = vsel %vm418, 0, %v696
    %v698 = vrot.slane %v238, 4
    %v699 = vsel %vm418, %v698, %v174
    %v701 = vunpack.c.l.s4 1983009808
    %v702 = vunpack.c.0.s8 %v701
    %v703 = vperm.slane %v699, %v702
    %v704 = vrot.slane %v270, 4
    %v705 = vsel %vm418, %v704, %v206
    %v707 = vunpack.c.l.s4 1983009808
    %v708 = vunpack.c.0.s8 %v707
    %v709 = vperm.slane %v705, %v708
    %v710 = vrot.slane %v709, 4
    %v711 = vsel %vm418, %v710, %v703
    %v712 = vrot.slane %v703, 4
    %v713 = vsel %vm418, %v709, %v712
    %v715 = vunpack.c.l.s4 1934713408
    %v716 = vunpack.c.0.s8 %v715
    %v717 = vperm.slane %v711, %v716
    %v719 = vunpack.c.l.s4 1934713408
    %v720 = vunpack.c.0.s8 %v719
    %v721 = vperm.slane %v713, %v720
    %v722 = vrot.slane %v717, 4
    %v723 = vsel %vm418, 0, %v722
    %v724 = vrot.slane %v721, 4
    %v725 = vsel %vm418, 0, %v724
    %v726 = vrot.slane %v254, 4
    %v727 = vsel %vm418, %v726, %v190
    %v729 = vunpack.c.l.s4 1983009808
    %v730 = vunpack.c.0.s8 %v729
    %v731 = vperm.slane %v727, %v730
    %v732 = vrot.slane %v286, 4
    %v733 = vsel %vm418, %v732, %v222
    %v735 = vunpack.c.l.s4 1983009808
    %v736 = vunpack.c.0.s8 %v735
    %v737 = vperm.slane %v733, %v736
    %v738 = vrot.slane %v737, 4
    %v739 = vsel %vm418, %v738, %v731
    %v740 = vrot.slane %v731, 4
    %v741 = vsel %vm418, %v737, %v740
    %v743 = vunpack.c.l.s4 1934713408
    %v744 = vunpack.c.0.s8 %v743
    %v745 = vperm.slane %v739, %v744
    %v747 = vunpack.c.l.s4 1934713408
    %v748 = vunpack.c.0.s8 %v747
    %v749 = vperm.slane %v741, %v748
    %v750 = vrot.slane %v745, 4
    %v751 = vsel %vm418, 0, %v750
    %v752 = vrot.slane %v749, 4
    %v753 = vsel %vm418, 0, %v752
    %v754 = vrot.slane %v234, 4
    %v755 = vsel %vm418, %v754, %v167
    %v757 = vunpack.c.l.s4 1983009808
    %v758 = vunpack.c.0.s8 %v757
    %v759 = vperm.slane %v755, %v758
    %v760 = vrot.slane %v266, 4
    %v761 = vsel %vm418, %v760, %v202
    %v763 = vunpack.c.l.s4 1983009808
    %v764 = vunpack.c.0.s8 %v763
    %v765 = vperm.slane %v761, %v764
    %v766 = vrot.slane %v765, 4
    %v767 = vsel %vm418, %v766, %v759
    %v768 = vrot.slane %v759, 4
    %v769 = vsel %vm418, %v765, %v768
    %v771 = vunpack.c.l.s4 1934713408
    %v772 = vunpack.c.0.s8 %v771
    %v773 = vperm.slane %v767, %v772
    %v775 = vunpack.c.l.s4 1934713408
    %v776 = vunpack.c.0.s8 %v775
    %v777 = vperm.slane %v769, %v776
    %v778 = vrot.slane %v773, 4
    %v779 = vsel %vm418, 0, %v778
    %v780 = vrot.slane %v777, 4
    %v781 = vsel %vm418, 0, %v780
    %v782 = vrot.slane %v250, 4
    %v783 = vsel %vm418, %v782, %v186
    %v785 = vunpack.c.l.s4 1983009808
    %v786 = vunpack.c.0.s8 %v785
    %v787 = vperm.slane %v783, %v786
    %v788 = vrot.slane %v282, 4
    %v789 = vsel %vm418, %v788, %v218
    %v791 = vunpack.c.l.s4 1983009808
    %v792 = vunpack.c.0.s8 %v791
    %v793 = vperm.slane %v789, %v792
    %v794 = vrot.slane %v793, 4
    %v795 = vsel %vm418, %v794, %v787
    %v796 = vrot.slane %v787, 4
    %v797 = vsel %vm418, %v793, %v796
    %v799 = vunpack.c.l.s4 1934713408
    %v800 = vunpack.c.0.s8 %v799
    %v801 = vperm.slane %v795, %v800
    %v803 = vunpack.c.l.s4 1934713408
    %v804 = vunpack.c.0.s8 %v803
    %v805 = vperm.slane %v797, %v804
    %v806 = vrot.slane %v801, 4
    %v807 = vsel %vm418, 0, %v806
    %v808 = vrot.slane %v805, 4
    %v809 = vsel %vm418, 0, %v808
    %v810 = vrot.slane %v374, 4
    %v811 = vsel %vm418, %v810, %v326
    %v813 = vunpack.c.l.s4 1983009808
    %v814 = vunpack.c.0.s8 %v813
    %v815 = vperm.slane %v811, %v814
    %v816 = vrot.slane %v398, 4
    %v817 = vsel %vm418, %v816, %v350
    %v819 = vunpack.c.l.s4 1983009808
    %v820 = vunpack.c.0.s8 %v819
    %v821 = vperm.slane %v817, %v820
    %v822 = vrot.slane %v821, 4
    %v823 = vsel %vm418, %v822, %v815
    %v824 = vrot.slane %v815, 4
    %v825 = vsel %vm418, %v821, %v824
    %v827 = vunpack.c.l.s4 1934713408
    %v828 = vunpack.c.0.s8 %v827
    %v829 = vperm.slane %v823, %v828
    %v831 = vunpack.c.l.s4 1934713408
    %v832 = vunpack.c.0.s8 %v831
    %v833 = vperm.slane %v825, %v832
    %v834 = vrot.slane %v829, 4
    %v835 = vsel %vm418, 0, %v834
    %v836 = vrot.slane %v833, 4
    %v837 = vsel %vm418, 0, %v836
    %v838 = vrot.slane %v386, 4
    %v839 = vsel %vm418, %v838, %v338
    %v841 = vunpack.c.l.s4 1983009808
    %v842 = vunpack.c.0.s8 %v841
    %v843 = vperm.slane %v839, %v842
    %v844 = vrot.slane %v410, 4
    %v845 = vsel %vm418, %v844, %v362
    %v847 = vunpack.c.l.s4 1983009808
    %v848 = vunpack.c.0.s8 %v847
    %v849 = vperm.slane %v845, %v848
    %v850 = vrot.slane %v849, 4
    %v851 = vsel %vm418, %v850, %v843
    %v852 = vrot.slane %v843, 4
    %v853 = vsel %vm418, %v849, %v852
    %v855 = vunpack.c.l.s4 1934713408
    %v856 = vunpack.c.0.s8 %v855
    %v857 = vperm.slane %v851, %v856
    %v859 = vunpack.c.l.s4 1934713408
    %v860 = vunpack.c.0.s8 %v859
    %v861 = vperm.slane %v853, %v860
    %v862 = vrot.slane %v857, 4
    %v863 = vsel %vm418, 0, %v862
    %v864 = vrot.slane %v861, 4
    %v865 = vsel %vm418, 0, %v864
    %v866 = vrot.slane %v239, 4
    %v867 = vsel %vm418, %v866, %v175
    %v869 = vunpack.c.l.s4 1983009808
    %v870 = vunpack.c.0.s8 %v869
    %v871 = vperm.slane %v867, %v870
    %v872 = vrot.slane %v271, 4
    %v873 = vsel %vm418, %v872, %v207
    %v875 = vunpack.c.l.s4 1983009808
    %v876 = vunpack.c.0.s8 %v875
    %v877 = vperm.slane %v873, %v876
    %v878 = vrot.slane %v877, 4
    %v879 = vsel %vm418, %v878, %v871
    %v880 = vrot.slane %v871, 4
    %v881 = vsel %vm418, %v877, %v880
    %v883 = vunpack.c.l.s4 1934713408
    %v884 = vunpack.c.0.s8 %v883
    %v885 = vperm.slane %v879, %v884
    %v887 = vunpack.c.l.s4 1934713408
    %v888 = vunpack.c.0.s8 %v887
    %v889 = vperm.slane %v881, %v888
    %v890 = vrot.slane %v885, 4
    %v891 = vsel %vm418, 0, %v890
    %v892 = vrot.slane %v889, 4
    %v893 = vsel %vm418, 0, %v892
    %v894 = vrot.slane %v255, 4
    %v895 = vsel %vm418, %v894, %v191
    %v897 = vunpack.c.l.s4 1983009808
    %v898 = vunpack.c.0.s8 %v897
    %v899 = vperm.slane %v895, %v898
    %v900 = vrot.slane %v287, 4
    %v901 = vsel %vm418, %v900, %v223
    %v903 = vunpack.c.l.s4 1983009808
    %v904 = vunpack.c.0.s8 %v903
    %v905 = vperm.slane %v901, %v904
    %v906 = vrot.slane %v905, 4
    %v907 = vsel %vm418, %v906, %v899
    %v908 = vrot.slane %v899, 4
    %v909 = vsel %vm418, %v905, %v908
    %v911 = vunpack.c.l.s4 1934713408
    %v912 = vunpack.c.0.s8 %v911
    %v913 = vperm.slane %v907, %v912
    %v915 = vunpack.c.l.s4 1934713408
    %v916 = vunpack.c.0.s8 %v915
    %v917 = vperm.slane %v909, %v916
    %v918 = vrot.slane %v913, 4
    %v919 = vsel %vm418, 0, %v918
    %v920 = vrot.slane %v917, 4
    %v921 = vsel %vm418, 0, %v920
    %v922 = vrot.slane %v236, 4
    %v923 = vsel %vm418, %v922, %v168
    %v925 = vunpack.c.l.s4 1983009808
    %v926 = vunpack.c.0.s8 %v925
    %v927 = vperm.slane %v923, %v926
    %v928 = vrot.slane %v268, 4
    %v929 = vsel %vm418, %v928, %v204
    %v931 = vunpack.c.l.s4 1983009808
    %v932 = vunpack.c.0.s8 %v931
    %v933 = vperm.slane %v929, %v932
    %v934 = vrot.slane %v933, 4
    %v935 = vsel %vm418, %v934, %v927
    %v936 = vrot.slane %v927, 4
    %v937 = vsel %vm418, %v933, %v936
    %v939 = vunpack.c.l.s4 1934713408
    %v940 = vunpack.c.0.s8 %v939
    %v941 = vperm.slane %v935, %v940
    %v943 = vunpack.c.l.s4 1934713408
    %v944 = vunpack.c.0.s8 %v943
    %v945 = vperm.slane %v937, %v944
    %v946 = vrot.slane %v941, 4
    %v947 = vsel %vm418, 0, %v946
    %v948 = vrot.slane %v945, 4
    %v949 = vsel %vm418, 0, %v948
    %v950 = vrot.slane %v252, 4
    %v951 = vsel %vm418, %v950, %v188
    %v953 = vunpack.c.l.s4 1983009808
    %v954 = vunpack.c.0.s8 %v953
    %v955 = vperm.slane %v951, %v954
    %v956 = vrot.slane %v284, 4
    %v957 = vsel %vm418, %v956, %v220
    %v959 = vunpack.c.l.s4 1983009808
    %v960 = vunpack.c.0.s8 %v959
    %v961 = vperm.slane %v957, %v960
    %v962 = vrot.slane %v961, 4
    %v963 = vsel %vm418, %v962, %v955
    %v964 = vrot.slane %v955, 4
    %v965 = vsel %vm418, %v961, %v964
    %v967 = vunpack.c.l.s4 1934713408
    %v968 = vunpack.c.0.s8 %v967
    %v969 = vperm.slane %v963, %v968
    %v971 = vunpack.c.l.s4 1934713408
    %v972 = vunpack.c.0.s8 %v971
    %v973 = vperm.slane %v965, %v972
    %v974 = vrot.slane %v969, 4
    %v975 = vsel %vm418, 0, %v974
    %v976 = vrot.slane %v973, 4
    %v977 = vsel %vm418, 0, %v976
    %v978 = vrot.slane %v376, 4
    %v979 = vsel %vm418, %v978, %v328
    %v981 = vunpack.c.l.s4 1983009808
    %v982 = vunpack.c.0.s8 %v981
    %v983 = vperm.slane %v979, %v982
    %v984 = vrot.slane %v400, 4
    %v985 = vsel %vm418, %v984, %v352
    %v987 = vunpack.c.l.s4 1983009808
    %v988 = vunpack.c.0.s8 %v987
    %v989 = vperm.slane %v985, %v988
    %v990 = vrot.slane %v989, 4
    %v991 = vsel %vm418, %v990, %v983
    %v992 = vrot.slane %v983, 4
    %v993 = vsel %vm418, %v989, %v992
    %v995 = vunpack.c.l.s4 1934713408
    %v996 = vunpack.c.0.s8 %v995
    %v997 = vperm.slane %v991, %v996
    %v999 = vunpack.c.l.s4 1934713408
    %v1000 = vunpack.c.0.s8 %v999
    %v1001 = vperm.slane %v993, %v1000
    %v1002 = vrot.slane %v997, 4
    %v1003 = vsel %vm418, 0, %v1002
    %v1004 = vrot.slane %v1001, 4
    %v1005 = vsel %vm418, 0, %v1004
    %v1006 = vrot.slane %v388, 4
    %v1007 = vsel %vm418, %v1006, %v340
    %v1009 = vunpack.c.l.s4 1983009808
    %v1010 = vunpack.c.0.s8 %v1009
    %v1011 = vperm.slane %v1007, %v1010
    %v1012 = vrot.slane %v412, 4
    %v1013 = vsel %vm418, %v1012, %v364
    %v1015 = vunpack.c.l.s4 1983009808
    %v1016 = vunpack.c.0.s8 %v1015
    %v1017 = vperm.slane %v1013, %v1016
    %v1018 = vrot.slane %v1017, 4
    %v1019 = vsel %vm418, %v1018, %v1011
    %v1020 = vrot.slane %v1011, 4
    %v1021 = vsel %vm418, %v1017, %v1020
    %v1023 = vunpack.c.l.s4 1934713408
    %v1024 = vunpack.c.0.s8 %v1023
    %v1025 = vperm.slane %v1019, %v1024
    %v1027 = vunpack.c.l.s4 1934713408
    %v1028 = vunpack.c.0.s8 %v1027
    %v1029 = vperm.slane %v1021, %v1028
    %v1030 = vrot.slane %v1025, 4
    %v1031 = vsel %vm418, 0, %v1030
    %v1032 = vrot.slane %v1029, 4
    %v1033 = vsel %vm418, 0, %v1032
    %v1034 = vrot.slane %v240, 4
    %v1035 = vsel %vm418, %v1034, %v176
    %v1037 = vunpack.c.l.s4 1983009808
    %v1038 = vunpack.c.0.s8 %v1037
    %v1039 = vperm.slane %v1035, %v1038
    %v1040 = vrot.slane %v272, 4
    %v1041 = vsel %vm418, %v1040, %v208
    %v1043 = vunpack.c.l.s4 1983009808
    %v1044 = vunpack.c.0.s8 %v1043
    %v1045 = vperm.slane %v1041, %v1044
    %v1046 = vrot.slane %v1045, 4
    %v1047 = vsel %vm418, %v1046, %v1039
    %v1048 = vrot.slane %v1039, 4
    %v1049 = vsel %vm418, %v1045, %v1048
    %v1051 = vunpack.c.l.s4 1934713408
    %v1052 = vunpack.c.0.s8 %v1051
    %v1053 = vperm.slane %v1047, %v1052
    %v1055 = vunpack.c.l.s4 1934713408
    %v1056 = vunpack.c.0.s8 %v1055
    %v1057 = vperm.slane %v1049, %v1056
    %v1058 = vrot.slane %v1053, 4
    %v1059 = vsel %vm418, 0, %v1058
    %v1060 = vrot.slane %v1057, 4
    %v1061 = vsel %vm418, 0, %v1060
    %v1062 = vrot.slane %v256, 4
    %v1063 = vsel %vm418, %v1062, %v192
    %v1065 = vunpack.c.l.s4 1983009808
    %v1066 = vunpack.c.0.s8 %v1065
    %v1067 = vperm.slane %v1063, %v1066
    %v1068 = vrot.slane %v288, 4
    %v1069 = vsel %vm418, %v1068, %v224
    %v1071 = vunpack.c.l.s4 1983009808
    %v1072 = vunpack.c.0.s8 %v1071
    %v1073 = vperm.slane %v1069, %v1072
    %v1074 = vrot.slane %v1073, 4
    %v1075 = vsel %vm418, %v1074, %v1067
    %v1076 = vrot.slane %v1067, 4
    %v1077 = vsel %vm418, %v1073, %v1076
    %v1079 = vunpack.c.l.s4 1934713408
    %v1080 = vunpack.c.0.s8 %v1079
    %v1081 = vperm.slane %v1075, %v1080
    %v1083 = vunpack.c.l.s4 1934713408
    %v1084 = vunpack.c.0.s8 %v1083
    %v1085 = vperm.slane %v1077, %v1084
    %v1086 = vrot.slane %v1081, 4
    %v1087 = vsel %vm418, 0, %v1086
    %v1088 = vrot.slane %v1085, 4
    %v1089 = vsel %vm418, 0, %v1088
    %v1092 = vpack.i.b16 %v465, %v437
    %v1094 = vshrl.u32 %v437, 16
    %v1095 = vshrl.u32 %v465, 16
    %v1096 = vpack.i.b16 %v1095, %v1094
    %v1100 = vpack.i.b16 %v471, %v443
    %v1102 = vshrl.u32 %v443, 16
    %v1103 = vshrl.u32 %v471, 16
    %v1104 = vpack.i.b16 %v1103, %v1102
    %v1108 = vpack.i.b16 %v469, %v441
    %v1110 = vshrl.u32 %v441, 16
    %v1111 = vshrl.u32 %v469, 16
    %v1112 = vpack.i.b16 %v1111, %v1110
    %v1116 = vpack.i.b16 %v473, %v445
    %v1118 = vshrl.u32 %v445, 16
    %v1119 = vshrl.u32 %v473, 16
    %v1120 = vpack.i.b16 %v1119, %v1118
    %v1124 = vpack.i.b16 %v633, %v605
    %v1126 = vshrl.u32 %v605, 16
    %v1127 = vshrl.u32 %v633, 16
    %v1128 = vpack.i.b16 %v1127, %v1126
    %v1132 = vpack.i.b16 %v639, %v611
    %v1134 = vshrl.u32 %v611, 16
    %v1135 = vshrl.u32 %v639, 16
    %v1136 = vpack.i.b16 %v1135, %v1134
    %v1140 = vpack.i.b16 %v637, %v609
    %v1142 = vshrl.u32 %v609, 16
    %v1143 = vshrl.u32 %v637, 16
    %v1144 = vpack.i.b16 %v1143, %v1142
    %v1148 = vpack.i.b16 %v641, %v613
    %v1150 = vshrl.u32 %v613, 16
    %v1151 = vshrl.u32 %v641, 16
    %v1152 = vpack.i.b16 %v1151, %v1150
    %v1156 = vpack.i.b16 %v801, %v773
    %v1158 = vshrl.u32 %v773, 16
    %v1159 = vshrl.u32 %v801, 16
    %v1160 = vpack.i.b16 %v1159, %v1158
    %v1164 = vpack.i.b16 %v807, %v779
    %v1166 = vshrl.u32 %v779, 16
    %v1167 = vshrl.u32 %v807, 16
    %v1168 = vpack.i.b16 %v1167, %v1166
    %v1172 = vpack.i.b16 %v805, %v777
    %v1174 = vshrl.u32 %v777, 16
    %v1175 = vshrl.u32 %v805, 16
    %v1176 = vpack.i.b16 %v1175, %v1174
    %v1180 = vpack.i.b16 %v809, %v781
    %v1182 = vshrl.u32 %v781, 16
    %v1183 = vshrl.u32 %v809, 16
    %v1184 = vpack.i.b16 %v1183, %v1182
    %v1188 = vpack.i.b16 %v969, %v941
    %v1190 = vshrl.u32 %v941, 16
    %v1191 = vshrl.u32 %v969, 16
    %v1192 = vpack.i.b16 %v1191, %v1190
    %v1196 = vpack.i.b16 %v975, %v947
    %v1198 = vshrl.u32 %v947, 16
    %v1199 = vshrl.u32 %v975, 16
    %v1200 = vpack.i.b16 %v1199, %v1198
    %v1204 = vpack.i.b16 %v973, %v945
    %v1206 = vshrl.u32 %v945, 16
    %v1207 = vshrl.u32 %v973, 16
    %v1208 = vpack.i.b16 %v1207, %v1206
    %v1212 = vpack.i.b16 %v977, %v949
    %v1214 = vshrl.u32 %v949, 16
    %v1215 = vshrl.u32 %v977, 16
    %v1216 = vpack.i.b16 %v1215, %v1214
    %v1220 = vpack.i.b16 %v521, %v493
    %v1222 = vshrl.u32 %v493, 16
    %v1223 = vshrl.u32 %v521, 16
    %v1224 = vpack.i.b16 %v1223, %v1222
    %v1228 = vpack.i.b16 %v527, %v499
    %v1230 = vshrl.u32 %v499, 16
    %v1231 = vshrl.u32 %v527, 16
    %v1232 = vpack.i.b16 %v1231, %v1230
    %v1236 = vpack.i.b16 %v525, %v497
    %v1238 = vshrl.u32 %v497, 16
    %v1239 = vshrl.u32 %v525, 16
    %v1240 = vpack.i.b16 %v1239, %v1238
    %v1244 = vpack.i.b16 %v529, %v501
    %v1246 = vshrl.u32 %v501, 16
    %v1247 = vshrl.u32 %v529, 16
    %v1248 = vpack.i.b16 %v1247, %v1246
    %v1252 = vpack.i.b16 %v689, %v661
    %v1254 = vshrl.u32 %v661, 16
    %v1255 = vshrl.u32 %v689, 16
    %v1256 = vpack.i.b16 %v1255, %v1254
    %v1260 = vpack.i.b16 %v695, %v667
    %v1262 = vshrl.u32 %v667, 16
    %v1263 = vshrl.u32 %v695, 16
    %v1264 = vpack.i.b16 %v1263, %v1262
    %v1268 = vpack.i.b16 %v693, %v665
    %v1270 = vshrl.u32 %v665, 16
    %v1271 = vshrl.u32 %v693, 16
    %v1272 = vpack.i.b16 %v1271, %v1270
    %v1276 = vpack.i.b16 %v697, %v669
    %v1278 = vshrl.u32 %v669, 16
    %v1279 = vshrl.u32 %v697, 16
    %v1280 = vpack.i.b16 %v1279, %v1278
    %v1284 = vpack.i.b16 %v857, %v829
    %v1286 = vshrl.u32 %v829, 16
    %v1287 = vshrl.u32 %v857, 16
    %v1288 = vpack.i.b16 %v1287, %v1286
    %v1292 = vpack.i.b16 %v863, %v835
    %v1294 = vshrl.u32 %v835, 16
    %v1295 = vshrl.u32 %v863, 16
    %v1296 = vpack.i.b16 %v1295, %v1294
    %v1300 = vpack.i.b16 %v861, %v833
    %v1302 = vshrl.u32 %v833, 16
    %v1303 = vshrl.u32 %v861, 16
    %v1304 = vpack.i.b16 %v1303, %v1302
    %v1308 = vpack.i.b16 %v865, %v837
    %v1310 = vshrl.u32 %v837, 16
    %v1311 = vshrl.u32 %v865, 16
    %v1312 = vpack.i.b16 %v1311, %v1310
    %v1316 = vpack.i.b16 %v1025, %v997
    %v1318 = vshrl.u32 %v997, 16
    %v1319 = vshrl.u32 %v1025, 16
    %v1320 = vpack.i.b16 %v1319, %v1318
    %v1324 = vpack.i.b16 %v1031, %v1003
    %v1326 = vshrl.u32 %v1003, 16
    %v1327 = vshrl.u32 %v1031, 16
    %v1328 = vpack.i.b16 %v1327, %v1326
    %v1332 = vpack.i.b16 %v1029, %v1001
    %v1334 = vshrl.u32 %v1001, 16
    %v1335 = vshrl.u32 %v1029, 16
    %v1336 = vpack.i.b16 %v1335, %v1334
    %v1340 = vpack.i.b16 %v1033, %v1005
    %v1342 = vshrl.u32 %v1005, 16
    %v1343 = vshrl.u32 %v1033, 16
    %v1344 = vpack.i.b16 %v1343, %v1342
    %v1348 = vpack.i.b16 %v577, %v549
    %v1350 = vshrl.u32 %v549, 16
    %v1351 = vshrl.u32 %v577, 16
    %v1352 = vpack.i.b16 %v1351, %v1350
    %v1356 = vpack.i.b16 %v583, %v555
    %v1358 = vshrl.u32 %v555, 16
    %v1359 = vshrl.u32 %v583, 16
    %v1360 = vpack.i.b16 %v1359, %v1358
    %v1364 = vpack.i.b16 %v581, %v553
    %v1366 = vshrl.u32 %v553, 16
    %v1367 = vshrl.u32 %v581, 16
    %v1368 = vpack.i.b16 %v1367, %v1366
    %v1372 = vpack.i.b16 %v585, %v557
    %v1374 = vshrl.u32 %v557, 16
    %v1375 = vshrl.u32 %v585, 16
    %v1376 = vpack.i.b16 %v1375, %v1374
    %v1380 = vpack.i.b16 %v745, %v717
    %v1382 = vshrl.u32 %v717, 16
    %v1383 = vshrl.u32 %v745, 16
    %v1384 = vpack.i.b16 %v1383, %v1382
    %v1388 = vpack.i.b16 %v751, %v723
    %v1390 = vshrl.u32 %v723, 16
    %v1391 = vshrl.u32 %v751, 16
    %v1392 = vpack.i.b16 %v1391, %v1390
    %v1396 = vpack.i.b16 %v749, %v721
    %v1398 = vshrl.u32 %v721, 16
    %v1399 = vshrl.u32 %v749, 16
    %v1400 = vpack.i.b16 %v1399, %v1398
    %v1404 = vpack.i.b16 %v753, %v725
    %v1406 = vshrl.u32 %v725, 16
    %v1407 = vshrl.u32 %v753, 16
    %v1408 = vpack.i.b16 %v1407, %v1406
    %v1412 = vpack.i.b16 %v913, %v885
    %v1414 = vshrl.u32 %v885, 16
    %v1415 = vshrl.u32 %v913, 16
    %v1416 = vpack.i.b16 %v1415, %v1414
    %v1420 = vpack.i.b16 %v919, %v891
    %v1422 = vshrl.u32 %v891, 16
    %v1423 = vshrl.u32 %v919, 16
    %v1424 = vpack.i.b16 %v1423, %v1422
    %v1428 = vpack.i.b16 %v917, %v889
    %v1430 = vshrl.u32 %v889, 16
    %v1431 = vshrl.u32 %v917, 16
    %v1432 = vpack.i.b16 %v1431, %v1430
    %v1436 = vpack.i.b16 %v921, %v893
    %v1438 = vshrl.u32 %v893, 16
    %v1439 = vshrl.u32 %v921, 16
    %v1440 = vpack.i.b16 %v1439, %v1438
    %v1444 = vpack.i.b16 %v1081, %v1053
    %v1446 = vshrl.u32 %v1053, 16
    %v1447 = vshrl.u32 %v1081, 16
    %v1448 = vpack.i.b16 %v1447, %v1446
    %v1452 = vpack.i.b16 %v1087, %v1059
    %v1454 = vshrl.u32 %v1059, 16
    %v1455 = vshrl.u32 %v1087, 16
    %v1456 = vpack.i.b16 %v1455, %v1454
    %v1460 = vpack.i.b16 %v1085, %v1057
    %v1462 = vshrl.u32 %v1057, 16
    %v1463 = vshrl.u32 %v1085, 16
    %v1464 = vpack.i.b16 %v1463, %v1462
    %v1468 = vpack.i.b16 %v1089, %v1061
    %v1470 = vshrl.u32 %v1061, 16
    %v1471 = vshrl.u32 %v1089, 16
    %v1472 = vpack.i.b16 %v1471, %v1470
    %v1474 = vrot.slane %v1108, 4
    %v1475 = vsel %vm418, %v1474, %v1092
    %v1477 = vunpack.c.l.s4 1983009808
    %v1478 = vunpack.c.0.s8 %v1477
    %v1479 = vperm.slane %v1475, %v1478
    %v1480 = vrot.slane %v1116, 4
    %v1481 = vsel %vm418, %v1480, %v1100
    %v1483 = vunpack.c.l.s4 1983009808
    %v1484 = vunpack.c.0.s8 %v1483
    %v1485 = vperm.slane %v1481, %v1484
    %v1486 = vrot.slane %v1485, 4
    %v1487 = vsel %vm418, %v1486, %v1479
    %v1488 = vrot.slane %v1479, 4
    %v1489 = vsel %vm418, %v1485, %v1488
    %v1491 = vunpack.c.l.s4 1934713408
    %v1492 = vunpack.c.0.s8 %v1491
    %v1493 = vperm.slane %v1487, %v1492
    %v1495 = vunpack.c.l.s4 1934713408
    %v1496 = vunpack.c.0.s8 %v1495
    %v1497 = vperm.slane %v1489, %v1496
    %v1498 = vrot.slane %v1493, 4
    %v1499 = vsel %vm418, 0, %v1498
    %v1500 = vrot.slane %v1497, 4
    %v1501 = vsel %vm418, 0, %v1500
    %v1502 = vrot.slane %v1112, 4
    %v1503 = vsel %vm418, %v1502, %v1096
    %v1505 = vunpack.c.l.s4 1983009808
    %v1506 = vunpack.c.0.s8 %v1505
    %v1507 = vperm.slane %v1503, %v1506
    %v1508 = vrot.slane %v1120, 4
    %v1509 = vsel %vm418, %v1508, %v1104
    %v1511 = vunpack.c.l.s4 1983009808
    %v1512 = vunpack.c.0.s8 %v1511
    %v1513 = vperm.slane %v1509, %v1512
    %v1514 = vrot.slane %v1513, 4
    %v1515 = vsel %vm418, %v1514, %v1507
    %v1516 = vrot.slane %v1507, 4
    %v1517 = vsel %vm418, %v1513, %v1516
    %v1519 = vunpack.c.l.s4 1934713408
    %v1520 = vunpack.c.0.s8 %v1519
    %v1521 = vperm.slane %v1515, %v1520
    %v1523 = vunpack.c.l.s4 1934713408
    %v1524 = vunpack.c.0.s8 %v1523
    %v1525 = vperm.slane %v1517, %v1524
    %v1526 = vrot.slane %v1521, 4
    %v1527 = vsel %vm418, 0, %v1526
    %v1528 = vrot.slane %v1525, 4
    %v1529 = vsel %vm418, 0, %v1528
    %v1530 = vrot.slane %v1140, 4
    %v1531 = vsel %vm418, %v1530, %v1124
    %v1533 = vunpack.c.l.s4 1983009808
    %v1534 = vunpack.c.0.s8 %v1533
    %v1535 = vperm.slane %v1531, %v1534
    %v1536 = vrot.slane %v1148, 4
    %v1537 = vsel %vm418, %v1536, %v1132
    %v1539 = vunpack.c.l.s4 1983009808
    %v1540 = vunpack.c.0.s8 %v1539
    %v1541 = vperm.slane %v1537, %v1540
    %v1542 = vrot.slane %v1541, 4
    %v1543 = vsel %vm418, %v1542, %v1535
    %v1544 = vrot.slane %v1535, 4
    %v1545 = vsel %vm418, %v1541, %v1544
    %v1547 = vunpack.c.l.s4 1934713408
    %v1548 = vunpack.c.0.s8 %v1547
    %v1549 = vperm.slane %v1543, %v1548
    %v1551 = vunpack.c.l.s4 1934713408
    %v1552 = vunpack.c.0.s8 %v1551
    %v1553 = vperm.slane %v1545, %v1552
    %v1554 = vrot.slane %v1549, 4
    %v1555 = vsel %vm418, 0, %v1554
    %v1556 = vrot.slane %v1553, 4
    %v1557 = vsel %vm418, 0, %v1556
    %v1558 = vrot.slane %v1144, 4
    %v1559 = vsel %vm418, %v1558, %v1128
    %v1561 = vunpack.c.l.s4 1983009808
    %v1562 = vunpack.c.0.s8 %v1561
    %v1563 = vperm.slane %v1559, %v1562
    %v1564 = vrot.slane %v1152, 4
    %v1565 = vsel %vm418, %v1564, %v1136
    %v1567 = vunpack.c.l.s4 1983009808
    %v1568 = vunpack.c.0.s8 %v1567
    %v1569 = vperm.slane %v1565, %v1568
    %v1570 = vrot.slane %v1569, 4
    %v1571 = vsel %vm418, %v1570, %v1563
    %v1572 = vrot.slane %v1563, 4
    %v1573 = vsel %vm418, %v1569, %v1572
    %v1575 = vunpack.c.l.s4 1934713408
    %v1576 = vunpack.c.0.s8 %v1575
    %v1577 = vperm.slane %v1571, %v1576
    %v1579 = vunpack.c.l.s4 1934713408
    %v1580 = vunpack.c.0.s8 %v1579
    %v1581 = vperm.slane %v1573, %v1580
    %v1582 = vrot.slane %v1577, 4
    %v1583 = vsel %vm418, 0, %v1582
    %v1584 = vrot.slane %v1581, 4
    %v1585 = vsel %vm418, 0, %v1584
    %v1586 = vrot.slane %v1172, 4
    %v1587 = vsel %vm418, %v1586, %v1156
    %v1589 = vunpack.c.l.s4 1983009808
    %v1590 = vunpack.c.0.s8 %v1589
    %v1591 = vperm.slane %v1587, %v1590
    %v1592 = vrot.slane %v1180, 4
    %v1593 = vsel %vm418, %v1592, %v1164
    %v1595 = vunpack.c.l.s4 1983009808
    %v1596 = vunpack.c.0.s8 %v1595
    %v1597 = vperm.slane %v1593, %v1596
    %v1598 = vrot.slane %v1597, 4
    %v1599 = vsel %vm418, %v1598, %v1591
    %v1600 = vrot.slane %v1591, 4
    %v1601 = vsel %vm418, %v1597, %v1600
    %v1603 = vunpack.c.l.s4 1934713408
    %v1604 = vunpack.c.0.s8 %v1603
    %v1605 = vperm.slane %v1599, %v1604
    %v1607 = vunpack.c.l.s4 1934713408
    %v1608 = vunpack.c.0.s8 %v1607
    %v1609 = vperm.slane %v1601, %v1608
    %v1610 = vrot.slane %v1605, 4
    %v1611 = vsel %vm418, 0, %v1610
    %v1612 = vrot.slane %v1609, 4
    %v1613 = vsel %vm418, 0, %v1612
    %v1614 = vrot.slane %v1176, 4
    %v1615 = vsel %vm418, %v1614, %v1160
    %v1617 = vunpack.c.l.s4 1983009808
    %v1618 = vunpack.c.0.s8 %v1617
    %v1619 = vperm.slane %v1615, %v1618
    %v1620 = vrot.slane %v1184, 4
    %v1621 = vsel %vm418, %v1620, %v1168
    %v1623 = vunpack.c.l.s4 1983009808
    %v1624 = vunpack.c.0.s8 %v1623
    %v1625 = vperm.slane %v1621, %v1624
    %v1626 = vrot.slane %v1625, 4
    %v1627 = vsel %vm418, %v1626, %v1619
    %v1628 = vrot.slane %v1619, 4
    %v1629 = vsel %vm418, %v1625, %v1628
    %v1631 = vunpack.c.l.s4 1934713408
    %v1632 = vunpack.c.0.s8 %v1631
    %v1633 = vperm.slane %v1627, %v1632
    %v1635 = vunpack.c.l.s4 1934713408
    %v1636 = vunpack.c.0.s8 %v1635
    %v1637 = vperm.slane %v1629, %v1636
    %v1638 = vrot.slane %v1633, 4
    %v1639 = vsel %vm418, 0, %v1638
    %v1640 = vrot.slane %v1637, 4
    %v1641 = vsel %vm418, 0, %v1640
    %v1642 = vrot.slane %v1204, 4
    %v1643 = vsel %vm418, %v1642, %v1188
    %v1645 = vunpack.c.l.s4 1983009808
    %v1646 = vunpack.c.0.s8 %v1645
    %v1647 = vperm.slane %v1643, %v1646
    %v1648 = vrot.slane %v1212, 4
    %v1649 = vsel %vm418, %v1648, %v1196
    %v1651 = vunpack.c.l.s4 1983009808
    %v1652 = vunpack.c.0.s8 %v1651
    %v1653 = vperm.slane %v1649, %v1652
    %v1654 = vrot.slane %v1653, 4
    %v1655 = vsel %vm418, %v1654, %v1647
    %v1656 = vrot.slane %v1647, 4
    %v1657 = vsel %vm418, %v1653, %v1656
    %v1659 = vunpack.c.l.s4 1934713408
    %v1660 = vunpack.c.0.s8 %v1659
    %v1661 = vperm.slane %v1655, %v1660
    %v1663 = vunpack.c.l.s4 1934713408
    %v1664 = vunpack.c.0.s8 %v1663
    %v1665 = vperm.slane %v1657, %v1664
    %v1666 = vrot.slane %v1661, 4
    %v1667 = vsel %vm418, 0, %v1666
    %v1668 = vrot.slane %v1665, 4
    %v1669 = vsel %vm418, 0, %v1668
    %v1670 = vrot.slane %v1208, 4
    %v1671 = vsel %vm418, %v1670, %v1192
    %v1673 = vunpack.c.l.s4 1983009808
    %v1674 = vunpack.c.0.s8 %v1673
    %v1675 = vperm.slane %v1671, %v1674
    %v1676 = vrot.slane %v1216, 4
    %v1677 = vsel %vm418, %v1676, %v1200
    %v1679 = vunpack.c.l.s4 1983009808
    %v1680 = vunpack.c.0.s8 %v1679
    %v1681 = vperm.slane %v1677, %v1680
    %v1682 = vrot.slane %v1681, 4
    %v1683 = vsel %vm418, %v1682, %v1675
    %v1684 = vrot.slane %v1675, 4
    %v1685 = vsel %vm418, %v1681, %v1684
    %v1687 = vunpack.c.l.s4 1934713408
    %v1688 = vunpack.c.0.s8 %v1687
    %v1689 = vperm.slane %v1683, %v1688
    %v1691 = vunpack.c.l.s4 1934713408
    %v1692 = vunpack.c.0.s8 %v1691
    %v1693 = vperm.slane %v1685, %v1692
    %v1694 = vrot.slane %v1689, 4
    %v1695 = vsel %vm418, 0, %v1694
    %v1696 = vrot.slane %v1693, 4
    %v1697 = vsel %vm418, 0, %v1696
    %v1698 = vrot.slane %v1236, 4
    %v1699 = vsel %vm418, %v1698, %v1220
    %v1701 = vunpack.c.l.s4 1983009808
    %v1702 = vunpack.c.0.s8 %v1701
    %v1703 = vperm.slane %v1699, %v1702
    %v1704 = vrot.slane %v1244, 4
    %v1705 = vsel %vm418, %v1704, %v1228
    %v1707 = vunpack.c.l.s4 1983009808
    %v1708 = vunpack.c.0.s8 %v1707
    %v1709 = vperm.slane %v1705, %v1708
    %v1710 = vrot.slane %v1709, 4
    %v1711 = vsel %vm418, %v1710, %v1703
    %v1712 = vrot.slane %v1703, 4
    %v1713 = vsel %vm418, %v1709, %v1712
    %v1715 = vunpack.c.l.s4 1934713408
    %v1716 = vunpack.c.0.s8 %v1715
    %v1717 = vperm.slane %v1711, %v1716
    %v1719 = vunpack.c.l.s4 1934713408
    %v1720 = vunpack.c.0.s8 %v1719
    %v1721 = vperm.slane %v1713, %v1720
    %v1722 = vrot.slane %v1717, 4
    %v1723 = vsel %vm418, 0, %v1722
    %v1724 = vrot.slane %v1721, 4
    %v1725 = vsel %vm418, 0, %v1724
    %v1726 = vrot.slane %v1240, 4
    %v1727 = vsel %vm418, %v1726, %v1224
    %v1729 = vunpack.c.l.s4 1983009808
    %v1730 = vunpack.c.0.s8 %v1729
    %v1731 = vperm.slane %v1727, %v1730
    %v1732 = vrot.slane %v1248, 4
    %v1733 = vsel %vm418, %v1732, %v1232
    %v1735 = vunpack.c.l.s4 1983009808
    %v1736 = vunpack.c.0.s8 %v1735
    %v1737 = vperm.slane %v1733, %v1736
    %v1738 = vrot.slane %v1737, 4
    %v1739 = vsel %vm418, %v1738, %v1731
    %v1740 = vrot.slane %v1731, 4
    %v1741 = vsel %vm418, %v1737, %v1740
    %v1743 = vunpack.c.l.s4 1934713408
    %v1744 = vunpack.c.0.s8 %v1743
    %v1745 = vperm.slane %v1739, %v1744
    %v1747 = vunpack.c.l.s4 1934713408
    %v1748 = vunpack.c.0.s8 %v1747
    %v1749 = vperm.slane %v1741, %v1748
    %v1750 = vrot.slane %v1745, 4
    %v1751 = vsel %vm418, 0, %v1750
    %v1752 = vrot.slane %v1749, 4
    %v1753 = vsel %vm418, 0, %v1752
    %v1754 = vrot.slane %v1268, 4
    %v1755 = vsel %vm418, %v1754, %v1252
    %v1757 = vunpack.c.l.s4 1983009808
    %v1758 = vunpack.c.0.s8 %v1757
    %v1759 = vperm.slane %v1755, %v1758
    %v1760 = vrot.slane %v1276, 4
    %v1761 = vsel %vm418, %v1760, %v1260
    %v1763 = vunpack.c.l.s4 1983009808
    %v1764 = vunpack.c.0.s8 %v1763
    %v1765 = vperm.slane %v1761, %v1764
    %v1766 = vrot.slane %v1765, 4
    %v1767 = vsel %vm418, %v1766, %v1759
    %v1768 = vrot.slane %v1759, 4
    %v1769 = vsel %vm418, %v1765, %v1768
    %v1771 = vunpack.c.l.s4 1934713408
    %v1772 = vunpack.c.0.s8 %v1771
    %v1773 = vperm.slane %v1767, %v1772
    %v1775 = vunpack.c.l.s4 1934713408
    %v1776 = vunpack.c.0.s8 %v1775
    %v1777 = vperm.slane %v1769, %v1776
    %v1778 = vrot.slane %v1773, 4
    %v1779 = vsel %vm418, 0, %v1778
    %v1780 = vrot.slane %v1777, 4
    %v1781 = vsel %vm418, 0, %v1780
    %v1782 = vrot.slane %v1272, 4
    %v1783 = vsel %vm418, %v1782, %v1256
    %v1785 = vunpack.c.l.s4 1983009808
    %v1786 = vunpack.c.0.s8 %v1785
    %v1787 = vperm.slane %v1783, %v1786
    %v1788 = vrot.slane %v1280, 4
    %v1789 = vsel %vm418, %v1788, %v1264
    %v1791 = vunpack.c.l.s4 1983009808
    %v1792 = vunpack.c.0.s8 %v1791
    %v1793 = vperm.slane %v1789, %v1792
    %v1794 = vrot.slane %v1793, 4
    %v1795 = vsel %vm418, %v1794, %v1787
    %v1796 = vrot.slane %v1787, 4
    %v1797 = vsel %vm418, %v1793, %v1796
    %v1799 = vunpack.c.l.s4 1934713408
    %v1800 = vunpack.c.0.s8 %v1799
    %v1801 = vperm.slane %v1795, %v1800
    %v1803 = vunpack.c.l.s4 1934713408
    %v1804 = vunpack.c.0.s8 %v1803
    %v1805 = vperm.slane %v1797, %v1804
    %v1806 = vrot.slane %v1801, 4
    %v1807 = vsel %vm418, 0, %v1806
    %v1808 = vrot.slane %v1805, 4
    %v1809 = vsel %vm418, 0, %v1808
    %v1810 = vrot.slane %v1300, 4
    %v1811 = vsel %vm418, %v1810, %v1284
    %v1813 = vunpack.c.l.s4 1983009808
    %v1814 = vunpack.c.0.s8 %v1813
    %v1815 = vperm.slane %v1811, %v1814
    %v1816 = vrot.slane %v1308, 4
    %v1817 = vsel %vm418, %v1816, %v1292
    %v1819 = vunpack.c.l.s4 1983009808
    %v1820 = vunpack.c.0.s8 %v1819
    %v1821 = vperm.slane %v1817, %v1820
    %v1822 = vrot.slane %v1821, 4
    %v1823 = vsel %vm418, %v1822, %v1815
    %v1824 = vrot.slane %v1815, 4
    %v1825 = vsel %vm418, %v1821, %v1824
    %v1827 = vunpack.c.l.s4 1934713408
    %v1828 = vunpack.c.0.s8 %v1827
    %v1829 = vperm.slane %v1823, %v1828
    %v1831 = vunpack.c.l.s4 1934713408
    %v1832 = vunpack.c.0.s8 %v1831
    %v1833 = vperm.slane %v1825, %v1832
    %v1834 = vrot.slane %v1829, 4
    %v1835 = vsel %vm418, 0, %v1834
    %v1836 = vrot.slane %v1833, 4
    %v1837 = vsel %vm418, 0, %v1836
    %v1838 = vrot.slane %v1304, 4
    %v1839 = vsel %vm418, %v1838, %v1288
    %v1841 = vunpack.c.l.s4 1983009808
    %v1842 = vunpack.c.0.s8 %v1841
    %v1843 = vperm.slane %v1839, %v1842
    %v1844 = vrot.slane %v1312, 4
    %v1845 = vsel %vm418, %v1844, %v1296
    %v1847 = vunpack.c.l.s4 1983009808
    %v1848 = vunpack.c.0.s8 %v1847
    %v1849 = vperm.slane %v1845, %v1848
    %v1850 = vrot.slane %v1849, 4
    %v1851 = vsel %vm418, %v1850, %v1843
    %v1852 = vrot.slane %v1843, 4
    %v1853 = vsel %vm418, %v1849, %v1852
    %v1855 = vunpack.c.l.s4 1934713408
    %v1856 = vunpack.c.0.s8 %v1855
    %v1857 = vperm.slane %v1851, %v1856
    %v1859 = vunpack.c.l.s4 1934713408
    %v1860 = vunpack.c.0.s8 %v1859
    %v1861 = vperm.slane %v1853, %v1860
    %v1862 = vrot.slane %v1857, 4
    %v1863 = vsel %vm418, 0, %v1862
    %v1864 = vrot.slane %v1861, 4
    %v1865 = vsel %vm418, 0, %v1864
    %v1866 = vrot.slane %v1332, 4
    %v1867 = vsel %vm418, %v1866, %v1316
    %v1869 = vunpack.c.l.s4 1983009808
    %v1870 = vunpack.c.0.s8 %v1869
    %v1871 = vperm.slane %v1867, %v1870
    %v1872 = vrot.slane %v1340, 4
    %v1873 = vsel %vm418, %v1872, %v1324
    %v1875 = vunpack.c.l.s4 1983009808
    %v1876 = vunpack.c.0.s8 %v1875
    %v1877 = vperm.slane %v1873, %v1876
    %v1878 = vrot.slane %v1877, 4
    %v1879 = vsel %vm418, %v1878, %v1871
    %v1880 = vrot.slane %v1871, 4
    %v1881 = vsel %vm418, %v1877, %v1880
    %v1883 = vunpack.c.l.s4 1934713408
    %v1884 = vunpack.c.0.s8 %v1883
    %v1885 = vperm.slane %v1879, %v1884
    %v1887 = vunpack.c.l.s4 1934713408
    %v1888 = vunpack.c.0.s8 %v1887
    %v1889 = vperm.slane %v1881, %v1888
    %v1890 = vrot.slane %v1885, 4
    %v1891 = vsel %vm418, 0, %v1890
    %v1892 = vrot.slane %v1889, 4
    %v1893 = vsel %vm418, 0, %v1892
    %v1894 = vrot.slane %v1336, 4
    %v1895 = vsel %vm418, %v1894, %v1320
    %v1897 = vunpack.c.l.s4 1983009808
    %v1898 = vunpack.c.0.s8 %v1897
    %v1899 = vperm.slane %v1895, %v1898
    %v1900 = vrot.slane %v1344, 4
    %v1901 = vsel %vm418, %v1900, %v1328
    %v1903 = vunpack.c.l.s4 1983009808
    %v1904 = vunpack.c.0.s8 %v1903
    %v1905 = vperm.slane %v1901, %v1904
    %v1906 = vrot.slane %v1905, 4
    %v1907 = vsel %vm418, %v1906, %v1899
    %v1908 = vrot.slane %v1899, 4
    %v1909 = vsel %vm418, %v1905, %v1908
    %v1911 = vunpack.c.l.s4 1934713408
    %v1912 = vunpack.c.0.s8 %v1911
    %v1913 = vperm.slane %v1907, %v1912
    %v1915 = vunpack.c.l.s4 1934713408
    %v1916 = vunpack.c.0.s8 %v1915
    %v1917 = vperm.slane %v1909, %v1916
    %v1918 = vrot.slane %v1913, 4
    %v1919 = vsel %vm418, 0, %v1918
    %v1920 = vrot.slane %v1917, 4
    %v1921 = vsel %vm418, 0, %v1920
    %v1922 = vrot.slane %v1364, 4
    %v1923 = vsel %vm418, %v1922, %v1348
    %v1925 = vunpack.c.l.s4 1983009808
    %v1926 = vunpack.c.0.s8 %v1925
    %v1927 = vperm.slane %v1923, %v1926
    %v1928 = vrot.slane %v1372, 4
    %v1929 = vsel %vm418, %v1928, %v1356
    %v1931 = vunpack.c.l.s4 1983009808
    %v1932 = vunpack.c.0.s8 %v1931
    %v1933 = vperm.slane %v1929, %v1932
    %v1934 = vrot.slane %v1933, 4
    %v1935 = vsel %vm418, %v1934, %v1927
    %v1936 = vrot.slane %v1927, 4
    %v1937 = vsel %vm418, %v1933, %v1936
    %v1939 = vunpack.c.l.s4 1934713408
    %v1940 = vunpack.c.0.s8 %v1939
    %v1941 = vperm.slane %v1935, %v1940
    %v1943 = vunpack.c.l.s4 1934713408
    %v1944 = vunpack.c.0.s8 %v1943
    %v1945 = vperm.slane %v1937, %v1944
    %v1946 = vrot.slane %v1941, 4
    %v1947 = vsel %vm418, 0, %v1946
    %v1948 = vrot.slane %v1945, 4
    %v1949 = vsel %vm418, 0, %v1948
    %v1950 = vrot.slane %v1368, 4
    %v1951 = vsel %vm418, %v1950, %v1352
    %v1953 = vunpack.c.l.s4 1983009808
    %v1954 = vunpack.c.0.s8 %v1953
    %v1955 = vperm.slane %v1951, %v1954
    %v1956 = vrot.slane %v1376, 4
    %v1957 = vsel %vm418, %v1956, %v1360
    %v1959 = vunpack.c.l.s4 1983009808
    %v1960 = vunpack.c.0.s8 %v1959
    %v1961 = vperm.slane %v1957, %v1960
    %v1962 = vrot.slane %v1961, 4
    %v1963 = vsel %vm418, %v1962, %v1955
    %v1964 = vrot.slane %v1955, 4
    %v1965 = vsel %vm418, %v1961, %v1964
    %v1967 = vunpack.c.l.s4 1934713408
    %v1968 = vunpack.c.0.s8 %v1967
    %v1969 = vperm.slane %v1963, %v1968
    %v1971 = vunpack.c.l.s4 1934713408
    %v1972 = vunpack.c.0.s8 %v1971
    %v1973 = vperm.slane %v1965, %v1972
    %v1974 = vrot.slane %v1969, 4
    %v1975 = vsel %vm418, 0, %v1974
    %v1976 = vrot.slane %v1973, 4
    %v1977 = vsel %vm418, 0, %v1976
    %v1978 = vrot.slane %v1396, 4
    %v1979 = vsel %vm418, %v1978, %v1380
    %v1981 = vunpack.c.l.s4 1983009808
    %v1982 = vunpack.c.0.s8 %v1981
    %v1983 = vperm.slane %v1979, %v1982
    %v1984 = vrot.slane %v1404, 4
    %v1985 = vsel %vm418, %v1984, %v1388
    %v1987 = vunpack.c.l.s4 1983009808
    %v1988 = vunpack.c.0.s8 %v1987
    %v1989 = vperm.slane %v1985, %v1988
    %v1990 = vrot.slane %v1989, 4
    %v1991 = vsel %vm418, %v1990, %v1983
    %v1992 = vrot.slane %v1983, 4
    %v1993 = vsel %vm418, %v1989, %v1992
    %v1995 = vunpack.c.l.s4 1934713408
    %v1996 = vunpack.c.0.s8 %v1995
    %v1997 = vperm.slane %v1991, %v1996
    %v1999 = vunpack.c.l.s4 1934713408
    %v2000 = vunpack.c.0.s8 %v1999
    %v2001 = vperm.slane %v1993, %v2000
    %v2002 = vrot.slane %v1997, 4
    %v2003 = vsel %vm418, 0, %v2002
    %v2004 = vrot.slane %v2001, 4
    %v2005 = vsel %vm418, 0, %v2004
    %v2006 = vrot.slane %v1400, 4
    %v2007 = vsel %vm418, %v2006, %v1384
    %v2009 = vunpack.c.l.s4 1983009808
    %v2010 = vunpack.c.0.s8 %v2009
    %v2011 = vperm.slane %v2007, %v2010
    %v2012 = vrot.slane %v1408, 4
    %v2013 = vsel %vm418, %v2012, %v1392
    %v2015 = vunpack.c.l.s4 1983009808
    %v2016 = vunpack.c.0.s8 %v2015
    %v2017 = vperm.slane %v2013, %v2016
    %v2018 = vrot.slane %v2017, 4
    %v2019 = vsel %vm418, %v2018, %v2011
    %v2020 = vrot.slane %v2011, 4
    %v2021 = vsel %vm418, %v2017, %v2020
    %v2023 = vunpack.c.l.s4 1934713408
    %v2024 = vunpack.c.0.s8 %v2023
    %v2025 = vperm.slane %v2019, %v2024
    %v2027 = vunpack.c.l.s4 1934713408
    %v2028 = vunpack.c.0.s8 %v2027
    %v2029 = vperm.slane %v2021, %v2028
    %v2030 = vrot.slane %v2025, 4
    %v2031 = vsel %vm418, 0, %v2030
    %v2032 = vrot.slane %v2029, 4
    %v2033 = vsel %vm418, 0, %v2032
    %v2034 = vrot.slane %v1428, 4
    %v2035 = vsel %vm418, %v2034, %v1412
    %v2037 = vunpack.c.l.s4 1983009808
    %v2038 = vunpack.c.0.s8 %v2037
    %v2039 = vperm.slane %v2035, %v2038
    %v2040 = vrot.slane %v1436, 4
    %v2041 = vsel %vm418, %v2040, %v1420
    %v2043 = vunpack.c.l.s4 1983009808
    %v2044 = vunpack.c.0.s8 %v2043
    %v2045 = vperm.slane %v2041, %v2044
    %v2046 = vrot.slane %v2045, 4
    %v2047 = vsel %vm418, %v2046, %v2039
    %v2048 = vrot.slane %v2039, 4
    %v2049 = vsel %vm418, %v2045, %v2048
    %v2051 = vunpack.c.l.s4 1934713408
    %v2052 = vunpack.c.0.s8 %v2051
    %v2053 = vperm.slane %v2047, %v2052
    %v2055 = vunpack.c.l.s4 1934713408
    %v2056 = vunpack.c.0.s8 %v2055
    %v2057 = vperm.slane %v2049, %v2056
    %v2058 = vrot.slane %v2053, 4
    %v2059 = vsel %vm418, 0, %v2058
    %v2060 = vrot.slane %v2057, 4
    %v2061 = vsel %vm418, 0, %v2060
    %v2062 = vrot.slane %v1432, 4
    %v2063 = vsel %vm418, %v2062, %v1416
    %v2065 = vunpack.c.l.s4 1983009808
    %v2066 = vunpack.c.0.s8 %v2065
    %v2067 = vperm.slane %v2063, %v2066
    %v2068 = vrot.slane %v1440, 4
    %v2069 = vsel %vm418, %v2068, %v1424
    %v2071 = vunpack.c.l.s4 1983009808
    %v2072 = vunpack.c.0.s8 %v2071
    %v2073 = vperm.slane %v2069, %v2072
    %v2074 = vrot.slane %v2073, 4
    %v2075 = vsel %vm418, %v2074, %v2067
    %v2076 = vrot.slane %v2067, 4
    %v2077 = vsel %vm418, %v2073, %v2076
    %v2079 = vunpack.c.l.s4 1934713408
    %v2080 = vunpack.c.0.s8 %v2079
    %v2081 = vperm.slane %v2075, %v2080
    %v2083 = vunpack.c.l.s4 1934713408
    %v2084 = vunpack.c.0.s8 %v2083
    %v2085 = vperm.slane %v2077, %v2084
    %v2086 = vrot.slane %v2081, 4
    %v2087 = vsel %vm418, 0, %v2086
    %v2088 = vrot.slane %v2085, 4
    %v2089 = vsel %vm418, 0, %v2088
    %v2090 = vrot.slane %v1460, 4
    %v2091 = vsel %vm418, %v2090, %v1444
    %v2093 = vunpack.c.l.s4 1983009808
    %v2094 = vunpack.c.0.s8 %v2093
    %v2095 = vperm.slane %v2091, %v2094
    %v2096 = vrot.slane %v1468, 4
    %v2097 = vsel %vm418, %v2096, %v1452
    %v2099 = vunpack.c.l.s4 1983009808
    %v2100 = vunpack.c.0.s8 %v2099
    %v2101 = vperm.slane %v2097, %v2100
    %v2102 = vrot.slane %v2101, 4
    %v2103 = vsel %vm418, %v2102, %v2095
    %v2104 = vrot.slane %v2095, 4
    %v2105 = vsel %vm418, %v2101, %v2104
    %v2107 = vunpack.c.l.s4 1934713408
    %v2108 = vunpack.c.0.s8 %v2107
    %v2109 = vperm.slane %v2103, %v2108
    %v2111 = vunpack.c.l.s4 1934713408
    %v2112 = vunpack.c.0.s8 %v2111
    %v2113 = vperm.slane %v2105, %v2112
    %v2114 = vrot.slane %v2109, 4
    %v2115 = vsel %vm418, 0, %v2114
    %v2116 = vrot.slane %v2113, 4
    %v2117 = vsel %vm418, 0, %v2116
    %v2118 = vrot.slane %v1464, 4
    %v2119 = vsel %vm418, %v2118, %v1448
    %v2121 = vunpack.c.l.s4 1983009808
    %v2122 = vunpack.c.0.s8 %v2121
    %v2123 = vperm.slane %v2119, %v2122
    %v2124 = vrot.slane %v1472, 4
    %v2125 = vsel %vm418, %v2124, %v1456
    %v2127 = vunpack.c.l.s4 1983009808
    %v2128 = vunpack.c.0.s8 %v2127
    %v2129 = vperm.slane %v2125, %v2128
    %v2130 = vrot.slane %v2129, 4
    %v2131 = vsel %vm418, %v2130, %v2123
    %v2132 = vrot.slane %v2123, 4
    %v2133 = vsel %vm418, %v2129, %v2132
    %v2135 = vunpack.c.l.s4 1934713408
    %v2136 = vunpack.c.0.s8 %v2135
    %v2137 = vperm.slane %v2131, %v2136
    %v2139 = vunpack.c.l.s4 1934713408
    %v2140 = vunpack.c.0.s8 %v2139
    %v2141 = vperm.slane %v2133, %v2140
    %v2142 = vrot.slane %v2137, 4
    %v2143 = vsel %vm418, 0, %v2142
    %v2144 = vrot.slane %v2141, 4
    %v2145 = vsel %vm418, 0, %v2144
    %v2148 = vpack.i.b16 %v1521, %v1493
    %v2149 = vshrl.u32 %v1493, 16
    %v2150 = vshrl.u32 %v1521, 16
    %v2151 = vpack.i.b16 %v2150, %v2149
    %v2154 = vpack.i.b16 %v1527, %v1499
    %v2155 = vshrl.u32 %v1499, 16
    %v2156 = vshrl.u32 %v1527, 16
    %v2157 = vpack.i.b16 %v2156, %v2155
    %v2160 = vpack.i.b16 %v1525, %v1497
    %v2161 = vshrl.u32 %v1497, 16
    %v2162 = vshrl.u32 %v1525, 16
    %v2163 = vpack.i.b16 %v2162, %v2161
    %v2166 = vpack.i.b16 %v1529, %v1501
    %v2167 = vshrl.u32 %v1501, 16
    %v2168 = vshrl.u32 %v1529, 16
    %v2169 = vpack.i.b16 %v2168, %v2167
    %v2172 = vpack.i.b16 %v1745, %v1717
    %v2173 = vshrl.u32 %v1717, 16
    %v2174 = vshrl.u32 %v1745, 16
    %v2175 = vpack.i.b16 %v2174, %v2173
    %v2178 = vpack.i.b16 %v1751, %v1723
    %v2179 = vshrl.u32 %v1723, 16
    %v2180 = vshrl.u32 %v1751, 16
    %v2181 = vpack.i.b16 %v2180, %v2179
    %v2184 = vpack.i.b16 %v1749, %v1721
    %v2185 = vshrl.u32 %v1721, 16
    %v2186 = vshrl.u32 %v1749, 16
    %v2187 = vpack.i.b16 %v2186, %v2185
    %v2190 = vpack.i.b16 %v1753, %v1725
    %v2191 = vshrl.u32 %v1725, 16
    %v2192 = vshrl.u32 %v1753, 16
    %v2193 = vpack.i.b16 %v2192, %v2191
    %v2196 = vpack.i.b16 %v1969, %v1941
    %v2197 = vshrl.u32 %v1941, 16
    %v2198 = vshrl.u32 %v1969, 16
    %v2199 = vpack.i.b16 %v2198, %v2197
    %v2202 = vpack.i.b16 %v1975, %v1947
    %v2203 = vshrl.u32 %v1947, 16
    %v2204 = vshrl.u32 %v1975, 16
    %v2205 = vpack.i.b16 %v2204, %v2203
    %v2208 = vpack.i.b16 %v1973, %v1945
    %v2209 = vshrl.u32 %v1945, 16
    %v2210 = vshrl.u32 %v1973, 16
    %v2211 = vpack.i.b16 %v2210, %v2209
    %v2214 = vpack.i.b16 %v1977, %v1949
    %v2215 = vshrl.u32 %v1949, 16
    %v2216 = vshrl.u32 %v1977, 16
    %v2217 = vpack.i.b16 %v2216, %v2215
    %v2220 = vpack.i.b16 %v1577, %v1549
    %v2221 = vshrl.u32 %v1549, 16
    %v2222 = vshrl.u32 %v1577, 16
    %v2223 = vpack.i.b16 %v2222, %v2221
    %v2226 = vpack.i.b16 %v1583, %v1555
    %v2227 = vshrl.u32 %v1555, 16
    %v2228 = vshrl.u32 %v1583, 16
    %v2229 = vpack.i.b16 %v2228, %v2227
    %v2232 = vpack.i.b16 %v1581, %v1553
    %v2233 = vshrl.u32 %v1553, 16
    %v2234 = vshrl.u32 %v1581, 16
    %v2235 = vpack.i.b16 %v2234, %v2233
    %v2238 = vpack.i.b16 %v1585, %v1557
    %v2239 = vshrl.u32 %v1557, 16
    %v2240 = vshrl.u32 %v1585, 16
    %v2241 = vpack.i.b16 %v2240, %v2239
    %v2244 = vpack.i.b16 %v1801, %v1773
    %v2245 = vshrl.u32 %v1773, 16
    %v2246 = vshrl.u32 %v1801, 16
    %v2247 = vpack.i.b16 %v2246, %v2245
    %v2250 = vpack.i.b16 %v1807, %v1779
    %v2251 = vshrl.u32 %v1779, 16
    %v2252 = vshrl.u32 %v1807, 16
    %v2253 = vpack.i.b16 %v2252, %v2251
    %v2256 = vpack.i.b16 %v1805, %v1777
    %v2257 = vshrl.u32 %v1777, 16
    %v2258 = vshrl.u32 %v1805, 16
    %v2259 = vpack.i.b16 %v2258, %v2257
    %v2262 = vpack.i.b16 %v1809, %v1781
    %v2263 = vshrl.u32 %v1781, 16
    %v2264 = vshrl.u32 %v1809, 16
    %v2265 = vpack.i.b16 %v2264, %v2263
    %v2268 = vpack.i.b16 %v2025, %v1997
    %v2269 = vshrl.u32 %v1997, 16
    %v2270 = vshrl.u32 %v2025, 16
    %v2271 = vpack.i.b16 %v2270, %v2269
    %v2274 = vpack.i.b16 %v2031, %v2003
    %v2275 = vshrl.u32 %v2003, 16
    %v2276 = vshrl.u32 %v2031, 16
    %v2277 = vpack.i.b16 %v2276, %v2275
    %v2280 = vpack.i.b16 %v2029, %v2001
    %v2281 = vshrl.u32 %v2001, 16
    %v2282 = vshrl.u32 %v2029, 16
    %v2283 = vpack.i.b16 %v2282, %v2281
    %v2286 = vpack.i.b16 %v2033, %v2005
    %v2287 = vshrl.u32 %v2005, 16
    %v2288 = vshrl.u32 %v2033, 16
    %v2289 = vpack.i.b16 %v2288, %v2287
    %v2292 = vpack.i.b16 %v1633, %v1605
    %v2293 = vshrl.u32 %v1605, 16
    %v2294 = vshrl.u32 %v1633, 16
    %v2295 = vpack.i.b16 %v2294, %v2293
    %v2298 = vpack.i.b16 %v1639, %v1611
    %v2299 = vshrl.u32 %v1611, 16
    %v2300 = vshrl.u32 %v1639, 16
    %v2301 = vpack.i.b16 %v2300, %v2299
    %v2304 = vpack.i.b16 %v1637, %v1609
    %v2305 = vshrl.u32 %v1609, 16
    %v2306 = vshrl.u32 %v1637, 16
    %v2307 = vpack.i.b16 %v2306, %v2305
    %v2310 = vpack.i.b16 %v1641, %v1613
    %v2311 = vshrl.u32 %v1613, 16
    %v2312 = vshrl.u32 %v1641, 16
    %v2313 = vpack.i.b16 %v2312, %v2311
    %v2316 = vpack.i.b16 %v1857, %v1829
    %v2317 = vshrl.u32 %v1829, 16
    %v2318 = vshrl.u32 %v1857, 16
    %v2319 = vpack.i.b16 %v2318, %v2317
    %v2322 = vpack.i.b16 %v1863, %v1835
    %v2323 = vshrl.u32 %v1835, 16
    %v2324 = vshrl.u32 %v1863, 16
    %v2325 = vpack.i.b16 %v2324, %v2323
    %v2328 = vpack.i.b16 %v1861, %v1833
    %v2329 = vshrl.u32 %v1833, 16
    %v2330 = vshrl.u32 %v1861, 16
    %v2331 = vpack.i.b16 %v2330, %v2329
    %v2334 = vpack.i.b16 %v1865, %v1837
    %v2335 = vshrl.u32 %v1837, 16
    %v2336 = vshrl.u32 %v1865, 16
    %v2337 = vpack.i.b16 %v2336, %v2335
    %v2340 = vpack.i.b16 %v2081, %v2053
    %v2341 = vshrl.u32 %v2053, 16
    %v2342 = vshrl.u32 %v2081, 16
    %v2343 = vpack.i.b16 %v2342, %v2341
    %v2346 = vpack.i.b16 %v2087, %v2059
    %v2347 = vshrl.u32 %v2059, 16
    %v2348 = vshrl.u32 %v2087, 16
    %v2349 = vpack.i.b16 %v2348, %v2347
    %v2352 = vpack.i.b16 %v2085, %v2057
    %v2353 = vshrl.u32 %v2057, 16
    %v2354 = vshrl.u32 %v2085, 16
    %v2355 = vpack.i.b16 %v2354, %v2353
    %v2358 = vpack.i.b16 %v2089, %v2061
    %v2359 = vshrl.u32 %v2061, 16
    %v2360 = vshrl.u32 %v2089, 16
    %v2361 = vpack.i.b16 %v2360, %v2359
    %v2364 = vpack.i.b16 %v1689, %v1661
    %v2365 = vshrl.u32 %v1661, 16
    %v2366 = vshrl.u32 %v1689, 16
    %v2367 = vpack.i.b16 %v2366, %v2365
    %v2370 = vpack.i.b16 %v1695, %v1667
    %v2371 = vshrl.u32 %v1667, 16
    %v2372 = vshrl.u32 %v1695, 16
    %v2373 = vpack.i.b16 %v2372, %v2371
    %v2376 = vpack.i.b16 %v1693, %v1665
    %v2377 = vshrl.u32 %v1665, 16
    %v2378 = vshrl.u32 %v1693, 16
    %v2379 = vpack.i.b16 %v2378, %v2377
    %v2382 = vpack.i.b16 %v1697, %v1669
    %v2383 = vshrl.u32 %v1669, 16
    %v2384 = vshrl.u32 %v1697, 16
    %v2385 = vpack.i.b16 %v2384, %v2383
    %v2388 = vpack.i.b16 %v1913, %v1885
    %v2389 = vshrl.u32 %v1885, 16
    %v2390 = vshrl.u32 %v1913, 16
    %v2391 = vpack.i.b16 %v2390, %v2389
    %v2394 = vpack.i.b16 %v1919, %v1891
    %v2395 = vshrl.u32 %v1891, 16
    %v2396 = vshrl.u32 %v1919, 16
    %v2397 = vpack.i.b16 %v2396, %v2395
    %v2400 = vpack.i.b16 %v1917, %v1889
    %v2401 = vshrl.u32 %v1889, 16
    %v2402 = vshrl.u32 %v1917, 16
    %v2403 = vpack.i.b16 %v2402, %v2401
    %v2406 = vpack.i.b16 %v1921, %v1893
    %v2407 = vshrl.u32 %v1893, 16
    %v2408 = vshrl.u32 %v1921, 16
    %v2409 = vpack.i.b16 %v2408, %v2407
    %v2412 = vpack.i.b16 %v2137, %v2109
    %v2413 = vshrl.u32 %v2109, 16
    %v2414 = vshrl.u32 %v2137, 16
    %v2415 = vpack.i.b16 %v2414, %v2413
    %v2418 = vpack.i.b16 %v2143, %v2115
    %v2419 = vshrl.u32 %v2115, 16
    %v2420 = vshrl.u32 %v2143, 16
    %v2421 = vpack.i.b16 %v2420, %v2419
    %v2424 = vpack.i.b16 %v2141, %v2113
    %v2425 = vshrl.u32 %v2113, 16
    %v2426 = vshrl.u32 %v2141, 16
    %v2427 = vpack.i.b16 %v2426, %v2425
    %v2430 = vpack.i.b16 %v2145, %v2117
    %v2431 = vshrl.u32 %v2117, 16
    %v2432 = vshrl.u32 %v2145, 16
    %v2433 = vpack.i.b16 %v2432, %v2431
    %v2434 = vunpack.c.l.b16 %v2148
    %v2435 = vunpack.c.l.b16 %v2220
    %v2436 = vpack.c.b16 %v2435, %v2434
    %v2437 = vunpack.c.l.b16 %v2172
    %v2438 = vunpack.c.l.b16 %v2244
    %v2439 = vpack.c.b16 %v2438, %v2437
    %vm2440 = vcmask 64512
    %v2442 = vsel %vm2440, %v2436, 0
    %v2445 = vsel %vm2440, %v2439, 0
    %2447 = vmatpush.bf16.xpose.msra.mxu0 0
    %2448 = vmatpush.bf16.xpose.msra.mxu0 0
    %2449 = vmatpush.bf16.xpose.msra.mxu0 0
    %2450 = vmatpush.bf16.xpose.msra.mxu0 0
    %2451 = vmatpush.bf16.xpose.msra.mxu0 0
    %2452 = vmatpush.bf16.xpose.msra.mxu0 0
    %2453 = vmatpush.bf16.xpose.msra.mxu0 0
    %2454 = vmatpush.bf16.xpose.msra.mxu0 %v2445
    %2455 = vmatmul.bf16.gmra.mxu0 %v2442
    %v2456 = vpop.f32.mrf.mxu0
    %v2457 = vadd.f32 0.0, %v2456
    %v2458 = vpop.f32.mrf.mxu0
    %v2459 = vadd.f32 0.0, %v2458
    %2460 = vdwg.mxu0
    %v2461 = vunpack.c.l.b16 %v2292
    %v2462 = vunpack.c.l.b16 %v2364
    %v2463 = vpack.c.b16 %v2462, %v2461
    %v2464 = vunpack.c.l.b16 %v2316
    %v2465 = vunpack.c.l.b16 %v2388
    %v2466 = vpack.c.b16 %v2465, %v2464
    %v2468 = vsel %vm2440, %v2463, 0
    %v2471 = vsel %vm2440, %v2466, 0
    %2473 = vmatpush.bf16.xpose.msra.mxu0 0
    %2474 = vmatpush.bf16.xpose.msra.mxu0 0
    %2475 = vmatpush.bf16.xpose.msra.mxu0 0
    %2476 = vmatpush.bf16.xpose.msra.mxu0 0
    %2477 = vmatpush.bf16.xpose.msra.mxu0 0
    %2478 = vmatpush.bf16.xpose.msra.mxu0 0
    %2479 = vmatpush.bf16.xpose.msra.mxu0 0
    %2480 = vmatpush.bf16.xpose.msra.mxu0 %v2471
    %2481 = vmatmul.bf16.gmra.mxu0 %v2468
    %v2482 = vpop.f32.mrf.mxu0
    %v2483 = vadd.f32 0.0, %v2482
    %v2484 = vpop.f32.mrf.mxu0
    %v2485 = vadd.f32 0.0, %v2484
    %2486 = vdwg.mxu0
    %v2487 = vunpack.c.l.b16 %v2151
    %v2488 = vunpack.c.l.b16 %v2223
    %v2489 = vpack.c.b16 %v2488, %v2487
    %v2490 = vunpack.c.l.b16 %v2175
    %v2491 = vunpack.c.l.b16 %v2247
    %v2492 = vpack.c.b16 %v2491, %v2490
    %v2494 = vsel %vm2440, %v2489, 0
    %v2497 = vsel %vm2440, %v2492, 0
    %2499 = vmatpush.bf16.xpose.msra.mxu0 0
    %2500 = vmatpush.bf16.xpose.msra.mxu0 0
    %2501 = vmatpush.bf16.xpose.msra.mxu0 0
    %2502 = vmatpush.bf16.xpose.msra.mxu0 0
    %2503 = vmatpush.bf16.xpose.msra.mxu0 0
    %2504 = vmatpush.bf16.xpose.msra.mxu0 0
    %2505 = vmatpush.bf16.xpose.msra.mxu0 0
    %2506 = vmatpush.bf16.xpose.msra.mxu0 %v2497
    %2507 = vmatmul.bf16.gmra.mxu0 %v2494
    %v2508 = vpop.f32.mrf.mxu0
    %v2509 = vadd.f32 0.0, %v2508
    %v2510 = vpop.f32.mrf.mxu0
    %v2511 = vadd.f32 0.0, %v2510
    %2512 = vdwg.mxu0
    %v2513 = vunpack.c.l.b16 %v2295
    %v2514 = vunpack.c.l.b16 %v2367
    %v2515 = vpack.c.b16 %v2514, %v2513
    %v2516 = vunpack.c.l.b16 %v2319
    %v2517 = vunpack.c.l.b16 %v2391
    %v2518 = vpack.c.b16 %v2517, %v2516
    %v2520 = vsel %vm2440, %v2515, 0
    %v2523 = vsel %vm2440, %v2518, 0
    %2525 = vmatpush.bf16.xpose.msra.mxu0 0
    %2526 = vmatpush.bf16.xpose.msra.mxu0 0
    %2527 = vmatpush.bf16.xpose.msra.mxu0 0
    %2528 = vmatpush.bf16.xpose.msra.mxu0 0
    %2529 = vmatpush.bf16.xpose.msra.mxu0 0
    %2530 = vmatpush.bf16.xpose.msra.mxu0 0
    %2531 = vmatpush.bf16.xpose.msra.mxu0 0
    %2532 = vmatpush.bf16.xpose.msra.mxu0 %v2523
    %2533 = vmatmul.bf16.gmra.mxu0 %v2520
    %v2534 = vpop.f32.mrf.mxu0
    %v2535 = vadd.f32 0.0, %v2534
    %v2536 = vpop.f32.mrf.mxu0
    %v2537 = vadd.f32 0.0, %v2536
    %2538 = vdwg.mxu0
    %v2539 = vunpack.c.l.b16 %v2154
    %v2540 = vunpack.c.l.b16 %v2226
    %v2541 = vpack.c.b16 %v2540, %v2539
    %v2542 = vunpack.c.l.b16 %v2178
    %v2543 = vunpack.c.l.b16 %v2250
    %v2544 = vpack.c.b16 %v2543, %v2542
    %v2546 = vsel %vm2440, %v2541, 0
    %v2549 = vsel %vm2440, %v2544, 0
    %2551 = vmatpush.bf16.xpose.msra.mxu0 0
    %2552 = vmatpush.bf16.xpose.msra.mxu0 0
    %2553 = vmatpush.bf16.xpose.msra.mxu0 0
    %2554 = vmatpush.bf16.xpose.msra.mxu0 0
    %2555 = vmatpush.bf16.xpose.msra.mxu0 0
    %2556 = vmatpush.bf16.xpose.msra.mxu0 0
    %2557 = vmatpush.bf16.xpose.msra.mxu0 0
    %2558 = vmatpush.bf16.xpose.msra.mxu0 %v2549
    %2559 = vmatmul.bf16.gmra.mxu0 %v2546
    %v2560 = vpop.f32.mrf.mxu0
    %v2561 = vadd.f32 0.0, %v2560
    %v2562 = vpop.f32.mrf.mxu0
    %v2563 = vadd.f32 0.0, %v2562
    %2564 = vdwg.mxu0
    %v2565 = vunpack.c.l.b16 %v2298
    %v2566 = vunpack.c.l.b16 %v2370
    %v2567 = vpack.c.b16 %v2566, %v2565
    %v2568 = vunpack.c.l.b16 %v2322
    %v2569 = vunpack.c.l.b16 %v2394
    %v2570 = vpack.c.b16 %v2569, %v2568
    %v2572 = vsel %vm2440, %v2567, 0
    %v2575 = vsel %vm2440, %v2570, 0
    %2577 = vmatpush.bf16.xpose.msra.mxu0 0
    %2578 = vmatpush.bf16.xpose.msra.mxu0 0
    %2579 = vmatpush.bf16.xpose.msra.mxu0 0
    %2580 = vmatpush.bf16.xpose.msra.mxu0 0
    %2581 = vmatpush.bf16.xpose.msra.mxu0 0
    %2582 = vmatpush.bf16.xpose.msra.mxu0 0
    %2583 = vmatpush.bf16.xpose.msra.mxu0 0
    %2584 = vmatpush.bf16.xpose.msra.mxu0 %v2575
    %2585 = vmatmul.bf16.gmra.mxu0 %v2572
    %v2586 = vpop.f32.mrf.mxu0
    %v2587 = vadd.f32 0.0, %v2586
    %v2588 = vpop.f32.mrf.mxu0
    %v2589 = vadd.f32 0.0, %v2588
    %2590 = vdwg.mxu0
    %v2591 = vunpack.c.l.b16 %v2157
    %v2592 = vunpack.c.l.b16 %v2229
    %v2593 = vpack.c.b16 %v2592, %v2591
    %v2594 = vunpack.c.l.b16 %v2181
    %v2595 = vunpack.c.l.b16 %v2253
    %v2596 = vpack.c.b16 %v2595, %v2594
    %v2598 = vsel %vm2440, %v2593, 0
    %v2601 = vsel %vm2440, %v2596, 0
    %2603 = vmatpush.bf16.xpose.msra.mxu0 0
    %2604 = vmatpush.bf16.xpose.msra.mxu0 0
    %2605 = vmatpush.bf16.xpose.msra.mxu0 0
    %2606 = vmatpush.bf16.xpose.msra.mxu0 0
    %2607 = vmatpush.bf16.xpose.msra.mxu0 0
    %2608 = vmatpush.bf16.xpose.msra.mxu0 0
    %2609 = vmatpush.bf16.xpose.msra.mxu0 0
    %2610 = vmatpush.bf16.xpose.msra.mxu0 %v2601
    %2611 = vmatmul.bf16.gmra.mxu0 %v2598
    %v2612 = vpop.f32.mrf.mxu0
    %v2613 = vadd.f32 0.0, %v2612
    %v2614 = vpop.f32.mrf.mxu0
    %v2615 = vadd.f32 0.0, %v2614
    %2616 = vdwg.mxu0
    %v2617 = vunpack.c.l.b16 %v2301
    %v2618 = vunpack.c.l.b16 %v2373
    %v2619 = vpack.c.b16 %v2618, %v2617
    %v2620 = vunpack.c.l.b16 %v2325
    %v2621 = vunpack.c.l.b16 %v2397
    %v2622 = vpack.c.b16 %v2621, %v2620
    %v2624 = vsel %vm2440, %v2619, 0
    %v2627 = vsel %vm2440, %v2622, 0
    %2629 = vmatpush.bf16.xpose.msra.mxu0 0
    %2630 = vmatpush.bf16.xpose.msra.mxu0 0
    %2631 = vmatpush.bf16.xpose.msra.mxu0 0
    %2632 = vmatpush.bf16.xpose.msra.mxu0 0
    %2633 = vmatpush.bf16.xpose.msra.mxu0 0
    %2634 = vmatpush.bf16.xpose.msra.mxu0 0
    %2635 = vmatpush.bf16.xpose.msra.mxu0 0
    %2636 = vmatpush.bf16.xpose.msra.mxu0 %v2627
    %2637 = vmatmul.bf16.gmra.mxu0 %v2624
    %v2638 = vpop.f32.mrf.mxu0
    %v2639 = vadd.f32 0.0, %v2638
    %v2640 = vpop.f32.mrf.mxu0
    %v2641 = vadd.f32 0.0, %v2640
    %2642 = vdwg.mxu0
    %v2643 = vunpack.c.l.b16 %v2160
    %v2644 = vunpack.c.l.b16 %v2232
    %v2645 = vpack.c.b16 %v2644, %v2643
    %v2646 = vunpack.c.l.b16 %v2184
    %v2647 = vunpack.c.l.b16 %v2256
    %v2648 = vpack.c.b16 %v2647, %v2646
    %v2650 = vsel %vm2440, %v2645, 0
    %v2653 = vsel %vm2440, %v2648, 0
    %2655 = vmatpush.bf16.xpose.msra.mxu0 0
    %2656 = vmatpush.bf16.xpose.msra.mxu0 0
    %2657 = vmatpush.bf16.xpose.msra.mxu0 0
    %2658 = vmatpush.bf16.xpose.msra.mxu0 0
    %2659 = vmatpush.bf16.xpose.msra.mxu0 0
    %2660 = vmatpush.bf16.xpose.msra.mxu0 0
    %2661 = vmatpush.bf16.xpose.msra.mxu0 0
    %2662 = vmatpush.bf16.xpose.msra.mxu0 %v2653
    %2663 = vmatmul.bf16.gmra.mxu0 %v2650
    %v2664 = vpop.f32.mrf.mxu0
    %v2665 = vadd.f32 0.0, %v2664
    %v2666 = vpop.f32.mrf.mxu0
    %v2667 = vadd.f32 0.0, %v2666
    %2668 = vdwg.mxu0
    %v2669 = vunpack.c.l.b16 %v2304
    %v2670 = vunpack.c.l.b16 %v2376
    %v2671 = vpack.c.b16 %v2670, %v2669
    %v2672 = vunpack.c.l.b16 %v2328
    %v2673 = vunpack.c.l.b16 %v2400
    %v2674 = vpack.c.b16 %v2673, %v2672
    %v2676 = vsel %vm2440, %v2671, 0
    %v2679 = vsel %vm2440, %v2674, 0
    %2681 = vmatpush.bf16.xpose.msra.mxu0 0
    %2682 = vmatpush.bf16.xpose.msra.mxu0 0
    %2683 = vmatpush.bf16.xpose.msra.mxu0 0
    %2684 = vmatpush.bf16.xpose.msra.mxu0 0
    %2685 = vmatpush.bf16.xpose.msra.mxu0 0
    %2686 = vmatpush.bf16.xpose.msra.mxu0 0
    %2687 = vmatpush.bf16.xpose.msra.mxu0 0
    %2688 = vmatpush.bf16.xpose.msra.mxu0 %v2679
    %2689 = vmatmul.bf16.gmra.mxu0 %v2676
    %v2690 = vpop.f32.mrf.mxu0
    %v2691 = vadd.f32 0.0, %v2690
    %v2692 = vpop.f32.mrf.mxu0
    %v2693 = vadd.f32 0.0, %v2692
    %2694 = vdwg.mxu0
    %v2695 = vunpack.c.l.b16 %v2163
    %v2696 = vunpack.c.l.b16 %v2235
    %v2697 = vpack.c.b16 %v2696, %v2695
    %v2698 = vunpack.c.l.b16 %v2187
    %v2699 = vunpack.c.l.b16 %v2259
    %v2700 = vpack.c.b16 %v2699, %v2698
    %v2702 = vsel %vm2440, %v2697, 0
    %v2705 = vsel %vm2440, %v2700, 0
    %2707 = vmatpush.bf16.xpose.msra.mxu0 0
    %2708 = vmatpush.bf16.xpose.msra.mxu0 0
    %2709 = vmatpush.bf16.xpose.msra.mxu0 0
    %2710 = vmatpush.bf16.xpose.msra.mxu0 0
    %2711 = vmatpush.bf16.xpose.msra.mxu0 0
    %2712 = vmatpush.bf16.xpose.msra.mxu0 0
    %2713 = vmatpush.bf16.xpose.msra.mxu0 0
    %2714 = vmatpush.bf16.xpose.msra.mxu0 %v2705
    %2715 = vmatmul.bf16.gmra.mxu0 %v2702
    %v2716 = vpop.f32.mrf.mxu0
    %v2717 = vadd.f32 0.0, %v2716
    %v2718 = vpop.f32.mrf.mxu0
    %v2719 = vadd.f32 0.0, %v2718
    %2720 = vdwg.mxu0
    %v2721 = vunpack.c.l.b16 %v2307
    %v2722 = vunpack.c.l.b16 %v2379
    %v2723 = vpack.c.b16 %v2722, %v2721
    %v2724 = vunpack.c.l.b16 %v2331
    %v2725 = vunpack.c.l.b16 %v2403
    %v2726 = vpack.c.b16 %v2725, %v2724
    %v2728 = vsel %vm2440, %v2723, 0
    %v2731 = vsel %vm2440, %v2726, 0
    %2733 = vmatpush.bf16.xpose.msra.mxu0 0
    %2734 = vmatpush.bf16.xpose.msra.mxu0 0
    %2735 = vmatpush.bf16.xpose.msra.mxu0 0
    %2736 = vmatpush.bf16.xpose.msra.mxu0 0
    %2737 = vmatpush.bf16.xpose.msra.mxu0 0
    %2738 = vmatpush.bf16.xpose.msra.mxu0 0
    %2739 = vmatpush.bf16.xpose.msra.mxu0 0
    %2740 = vmatpush.bf16.xpose.msra.mxu0 %v2731
    %2741 = vmatmul.bf16.gmra.mxu0 %v2728
    %v2742 = vpop.f32.mrf.mxu0
    %v2743 = vadd.f32 0.0, %v2742
    %v2744 = vpop.f32.mrf.mxu0
    %v2745 = vadd.f32 0.0, %v2744
    %2746 = vdwg.mxu0
    %v2747 = vunpack.c.l.b16 %v2166
    %v2748 = vunpack.c.l.b16 %v2238
    %v2749 = vpack.c.b16 %v2748, %v2747
    %v2750 = vunpack.c.l.b16 %v2190
    %v2751 = vunpack.c.l.b16 %v2262
    %v2752 = vpack.c.b16 %v2751, %v2750
    %v2754 = vsel %vm2440, %v2749, 0
    %v2757 = vsel %vm2440, %v2752, 0
    %2759 = vmatpush.bf16.xpose.msra.mxu0 0
    %2760 = vmatpush.bf16.xpose.msra.mxu0 0
    %2761 = vmatpush.bf16.xpose.msra.mxu0 0
    %2762 = vmatpush.bf16.xpose.msra.mxu0 0
    %2763 = vmatpush.bf16.xpose.msra.mxu0 0
    %2764 = vmatpush.bf16.xpose.msra.mxu0 0
    %2765 = vmatpush.bf16.xpose.msra.mxu0 0
    %2766 = vmatpush.bf16.xpose.msra.mxu0 %v2757
    %2767 = vmatmul.bf16.gmra.mxu0 %v2754
    %v2768 = vpop.f32.mrf.mxu0
    %v2769 = vadd.f32 0.0, %v2768
    %v2770 = vpop.f32.mrf.mxu0
    %v2771 = vadd.f32 0.0, %v2770
    %2772 = vdwg.mxu0
    %v2773 = vunpack.c.l.b16 %v2310
    %v2774 = vunpack.c.l.b16 %v2382
    %v2775 = vpack.c.b16 %v2774, %v2773
    %v2776 = vunpack.c.l.b16 %v2334
    %v2777 = vunpack.c.l.b16 %v2406
    %v2778 = vpack.c.b16 %v2777, %v2776
    %v2780 = vsel %vm2440, %v2775, 0
    %v2783 = vsel %vm2440, %v2778, 0
    %2785 = vmatpush.bf16.xpose.msra.mxu0 0
    %2786 = vmatpush.bf16.xpose.msra.mxu0 0
    %2787 = vmatpush.bf16.xpose.msra.mxu0 0
    %2788 = vmatpush.bf16.xpose.msra.mxu0 0
    %2789 = vmatpush.bf16.xpose.msra.mxu0 0
    %2790 = vmatpush.bf16.xpose.msra.mxu0 0
    %2791 = vmatpush.bf16.xpose.msra.mxu0 0
    %2792 = vmatpush.bf16.xpose.msra.mxu0 %v2783
    %2793 = vmatmul.bf16.gmra.mxu0 %v2780
    %v2794 = vpop.f32.mrf.mxu0
    %v2795 = vadd.f32 0.0, %v2794
    %v2796 = vpop.f32.mrf.mxu0
    %v2797 = vadd.f32 0.0, %v2796
    %2798 = vdwg.mxu0
    %v2799 = vunpack.c.l.b16 %v2169
    %v2800 = vunpack.c.l.b16 %v2241
    %v2801 = vpack.c.b16 %v2800, %v2799
    %v2802 = vunpack.c.l.b16 %v2193
    %v2803 = vunpack.c.l.b16 %v2265
    %v2804 = vpack.c.b16 %v2803, %v2802
    %v2806 = vsel %vm2440, %v2801, 0
    %v2809 = vsel %vm2440, %v2804, 0
    %2811 = vmatpush.bf16.xpose.msra.mxu0 0
    %2812 = vmatpush.bf16.xpose.msra.mxu0 0
    %2813 = vmatpush.bf16.xpose.msra.mxu0 0
    %2814 = vmatpush.bf16.xpose.msra.mxu0 0
    %2815 = vmatpush.bf16.xpose.msra.mxu0 0
    %2816 = vmatpush.bf16.xpose.msra.mxu0 0
    %2817 = vmatpush.bf16.xpose.msra.mxu0 0
    %2818 = vmatpush.bf16.xpose.msra.mxu0 %v2809
    %2819 = vmatmul.bf16.gmra.mxu0 %v2806
    %v2820 = vpop.f32.mrf.mxu0
    %v2821 = vadd.f32 0.0, %v2820
    %v2822 = vpop.f32.mrf.mxu0
    %v2823 = vadd.f32 0.0, %v2822
    %2824 = vdwg.mxu0
    %v2825 = vunpack.c.l.b16 %v2313
    %v2826 = vunpack.c.l.b16 %v2385
    %v2827 = vpack.c.b16 %v2826, %v2825
    %v2828 = vunpack.c.l.b16 %v2337
    %v2829 = vunpack.c.l.b16 %v2409
    %v2830 = vpack.c.b16 %v2829, %v2828
    %v2832 = vsel %vm2440, %v2827, 0
    %v2835 = vsel %vm2440, %v2830, 0
    %2837 = vmatpush.bf16.xpose.msra.mxu0 0
    %2838 = vmatpush.bf16.xpose.msra.mxu0 0
    %2839 = vmatpush.bf16.xpose.msra.mxu0 0
    %2840 = vmatpush.bf16.xpose.msra.mxu0 0
    %2841 = vmatpush.bf16.xpose.msra.mxu0 0
    %2842 = vmatpush.bf16.xpose.msra.mxu0 0
    %2843 = vmatpush.bf16.xpose.msra.mxu0 0
    %2844 = vmatpush.bf16.xpose.msra.mxu0 %v2835
    %2845 = vmatmul.bf16.gmra.mxu0 %v2832
    %v2846 = vpop.f32.mrf.mxu0
    %v2847 = vadd.f32 0.0, %v2846
    %v2848 = vpop.f32.mrf.mxu0
    %v2849 = vadd.f32 0.0, %v2848
    %2850 = vdwg.mxu0
    %vm2851 = vcmask 130048
    %v2852 = vsel %vm2851, %v2457, -inf
    %2853 = vmax.xlane.f32.xlu0 %v2852
    %v2854 = vpop.xlane.xlu0 %2853
    %v2855 = vsel %vm2851, %v2459, -inf
    %2856 = vmax.xlane.f32.xlu0 %v2855
    %v2857 = vpop.xlane.xlu0 %2856
    %v2858 = vsel %vm2851, %v2483, -inf
    %2859 = vmax.xlane.f32.xlu0 %v2858
    %v2860 = vpop.xlane.xlu0 %2859
    %v2861 = vsel %vm2851, %v2485, -inf
    %2862 = vmax.xlane.f32.xlu0 %v2861
    %v2863 = vpop.xlane.xlu0 %2862
    %v2864 = vsel %vm2851, %v2509, -inf
    %2865 = vmax.xlane.f32.xlu0 %v2864
    %v2866 = vpop.xlane.xlu0 %2865
    %v2867 = vsel %vm2851, %v2511, -inf
    %2868 = vmax.xlane.f32.xlu0 %v2867
    %v2869 = vpop.xlane.xlu0 %2868
    %v2870 = vsel %vm2851, %v2535, -inf
    %2871 = vmax.xlane.f32.xlu0 %v2870
    %v2872 = vpop.xlane.xlu0 %2871
    %v2873 = vsel %vm2851, %v2537, -inf
    %2874 = vmax.xlane.f32.xlu0 %v2873
    %v2875 = vpop.xlane.xlu0 %2874
    %v2876 = vsel %vm2851, %v2561, -inf
    %2877 = vmax.xlane.f32.xlu0 %v2876
    %v2878 = vpop.xlane.xlu0 %2877
    %v2879 = vsel %vm2851, %v2563, -inf
    %2880 = vmax.xlane.f32.xlu0 %v2879
    %v2881 = vpop.xlane.xlu0 %2880
    %v2882 = vsel %vm2851, %v2587, -inf
    %2883 = vmax.xlane.f32.xlu0 %v2882
    %v2884 = vpop.xlane.xlu0 %2883
    %v2885 = vsel %vm2851, %v2589, -inf
    %2886 = vmax.xlane.f32.xlu0 %v2885
    %v2887 = vpop.xlane.xlu0 %2886
    %v2888 = vsel %vm2851, %v2613, -inf
    %2889 = vmax.xlane.f32.xlu0 %v2888
    %v2890 = vpop.xlane.xlu0 %2889
    %v2891 = vsel %vm2851, %v2615, -inf
    %2892 = vmax.xlane.f32.xlu0 %v2891
    %v2893 = vpop.xlane.xlu0 %2892
    %v2894 = vsel %vm2851, %v2639, -inf
    %2895 = vmax.xlane.f32.xlu0 %v2894
    %v2896 = vpop.xlane.xlu0 %2895
    %v2897 = vsel %vm2851, %v2641, -inf
    %2898 = vmax.xlane.f32.xlu0 %v2897
    %v2899 = vpop.xlane.xlu0 %2898
    %v2900 = vsel %vm2851, %v2665, -inf
    %2901 = vmax.xlane.f32.xlu0 %v2900
    %v2902 = vpop.xlane.xlu0 %2901
    %v2903 = vsel %vm2851, %v2667, -inf
    %2904 = vmax.xlane.f32.xlu0 %v2903
    %v2905 = vpop.xlane.xlu0 %2904
    %v2906 = vsel %vm2851, %v2691, -inf
    %2907 = vmax.xlane.f32.xlu0 %v2906
    %v2908 = vpop.xlane.xlu0 %2907
    %v2909 = vsel %vm2851, %v2693, -inf
    %2910 = vmax.xlane.f32.xlu0 %v2909
    %v2911 = vpop.xlane.xlu0 %2910
    %v2912 = vsel %vm2851, %v2717, -inf
    %2913 = vmax.xlane.f32.xlu0 %v2912
    %v2914 = vpop.xlane.xlu0 %2913
    %v2915 = vsel %vm2851, %v2719, -inf
    %2916 = vmax.xlane.f32.xlu0 %v2915
    %v2917 = vpop.xlane.xlu0 %2916
    %v2918 = vsel %vm2851, %v2743, -inf
    %2919 = vmax.xlane.f32.xlu0 %v2918
    %v2920 = vpop.xlane.xlu0 %2919
    %v2921 = vsel %vm2851, %v2745, -inf
    %2922 = vmax.xlane.f32.xlu0 %v2921
    %v2923 = vpop.xlane.xlu0 %2922
    %v2924 = vsel %vm2851, %v2769, -inf
    %2925 = vmax.xlane.f32.xlu0 %v2924
    %v2926 = vpop.xlane.xlu0 %2925
    %v2927 = vsel %vm2851, %v2771, -inf
    %2928 = vmax.xlane.f32.xlu0 %v2927
    %v2929 = vpop.xlane.xlu0 %2928
    %v2930 = vsel %vm2851, %v2795, -inf
    %2931 = vmax.xlane.f32.xlu0 %v2930
    %v2932 = vpop.xlane.xlu0 %2931
    %v2933 = vsel %vm2851, %v2797, -inf
    %2934 = vmax.xlane.f32.xlu0 %v2933
    %v2935 = vpop.xlane.xlu0 %2934
    %v2936 = vsel %vm2851, %v2821, -inf
    %2937 = vmax.xlane.f32.xlu0 %v2936
    %v2938 = vpop.xlane.xlu0 %2937
    %v2939 = vsel %vm2851, %v2823, -inf
    %2940 = vmax.xlane.f32.xlu0 %v2939
    %v2941 = vpop.xlane.xlu0 %2940
    %v2942 = vsel %vm2851, %v2847, -inf
    %2943 = vmax.xlane.f32.xlu0 %v2942
    %v2944 = vpop.xlane.xlu0 %2943
    %v2945 = vsel %vm2851, %v2849, -inf
    %2946 = vmax.xlane.f32.xlu0 %v2945
    %v2947 = vpop.xlane.xlu0 %2946
    %v2948 = vsub.f32 %v2457, %v2854
    %v2949 = vsub.f32 %v2459, %v2857
    %v2950 = vsub.f32 %v2483, %v2860
    %v2951 = vsub.f32 %v2485, %v2863
    %v2952 = vsub.f32 %v2509, %v2866
    %v2953 = vsub.f32 %v2511, %v2869
    %v2954 = vsub.f32 %v2535, %v2872
    %v2955 = vsub.f32 %v2537, %v2875
    %v2956 = vsub.f32 %v2561, %v2878
    %v2957 = vsub.f32 %v2563, %v2881
    %v2958 = vsub.f32 %v2587, %v2884
    %v2959 = vsub.f32 %v2589, %v2887
    %v2960 = vsub.f32 %v2613, %v2890
    %v2961 = vsub.f32 %v2615, %v2893
    %v2962 = vsub.f32 %v2639, %v2896
    %v2963 = vsub.f32 %v2641, %v2899
    %v2964 = vsub.f32 %v2665, %v2902
    %v2965 = vsub.f32 %v2667, %v2905
    %v2966 = vsub.f32 %v2691, %v2908
    %v2967 = vsub.f32 %v2693, %v2911
    %v2968 = vsub.f32 %v2717, %v2914
    %v2969 = vsub.f32 %v2719, %v2917
    %v2970 = vsub.f32 %v2743, %v2920
    %v2971 = vsub.f32 %v2745, %v2923
    %v2972 = vsub.f32 %v2769, %v2926
    %v2973 = vsub.f32 %v2771, %v2929
    %v2974 = vsub.f32 %v2795, %v2932
    %v2975 = vsub.f32 %v2797, %v2935
    %v2976 = vsub.f32 %v2821, %v2938
    %v2977 = vsub.f32 %v2823, %v2941
    %v2978 = vsub.f32 %v2847, %v2944
    %v2979 = vsub.f32 %v2849, %v2947
    %v2980 = vmul.f32 %v2948, 1.442695
    %v2981 = vpow.pop %v2980
    %v2982 = vmul.f32 %v2949, 1.442695
    %v2983 = vpow.pop %v2982
    %v2984 = vmul.f32 %v2950, 1.442695
    %v2985 = vpow.pop %v2984
    %v2986 = vmul.f32 %v2951, 1.442695
    %v2987 = vpow.pop %v2986
    %v2988 = vmul.f32 %v2952, 1.442695
    %v2989 = vpow.pop %v2988
    %v2990 = vmul.f32 %v2953, 1.442695
    %v2991 = vpow.pop %v2990
    %v2992 = vmul.f32 %v2954, 1.442695
    %v2993 = vpow.pop %v2992
    %v2994 = vmul.f32 %v2955, 1.442695
    %v2995 = vpow.pop %v2994
    %v2996 = vmul.f32 %v2956, 1.442695
    %v2997 = vpow.pop %v2996
    %v2998 = vmul.f32 %v2957, 1.442695
    %v2999 = vpow.pop %v2998
    %v3000 = vmul.f32 %v2958, 1.442695
    %v3001 = vpow.pop %v3000
    %v3002 = vmul.f32 %v2959, 1.442695
    %v3003 = vpow.pop %v3002
    %v3004 = vmul.f32 %v2960, 1.442695
    %v3005 = vpow.pop %v3004
    %v3006 = vmul.f32 %v2961, 1.442695
    %v3007 = vpow.pop %v3006
    %v3008 = vmul.f32 %v2962, 1.442695
    %v3009 = vpow.pop %v3008
    %v3010 = vmul.f32 %v2963, 1.442695
    %v3011 = vpow.pop %v3010
    %v3012 = vmul.f32 %v2964, 1.442695
    %v3013 = vpow.pop %v3012
    %v3014 = vmul.f32 %v2965, 1.442695
    %v3015 = vpow.pop %v3014
    %v3016 = vmul.f32 %v2966, 1.442695
    %v3017 = vpow.pop %v3016
    %v3018 = vmul.f32 %v2967, 1.442695
    %v3019 = vpow.pop %v3018
    %v3020 = vmul.f32 %v2968, 1.442695
    %v3021 = vpow.pop %v3020
    %v3022 = vmul.f32 %v2969, 1.442695
    %v3023 = vpow.pop %v3022
    %v3024 = vmul.f32 %v2970, 1.442695
    %v3025 = vpow.pop %v3024
    %v3026 = vmul.f32 %v2971, 1.442695
    %v3027 = vpow.pop %v3026
    %v3028 = vmul.f32 %v2972, 1.442695
    %v3029 = vpow.pop %v3028
    %v3030 = vmul.f32 %v2973, 1.442695
    %v3031 = vpow.pop %v3030
    %v3032 = vmul.f32 %v2974, 1.442695
    %v3033 = vpow.pop %v3032
    %v3034 = vmul.f32 %v2975, 1.442695
    %v3035 = vpow.pop %v3034
    %v3036 = vmul.f32 %v2976, 1.442695
    %v3037 = vpow.pop %v3036
    %v3038 = vmul.f32 %v2977, 1.442695
    %v3039 = vpow.pop %v3038
    %v3040 = vmul.f32 %v2978, 1.442695
    %v3041 = vpow.pop %v3040
    %v3042 = vmul.f32 %v2979, 1.442695
    %v3043 = vpow.pop %v3042
    %v3044 = vsel %vm2851, %v2981, 0.0
    %3045 = vadd.xlane.f32.xlu0 %v3044
    %v3046 = vpop.xlane.xlu0 %3045
    %v3047 = vsel %vm2851, %v2983, 0.0
    %3048 = vadd.xlane.f32.xlu0 %v3047
    %v3049 = vpop.xlane.xlu0 %3048
    %v3050 = vsel %vm2851, %v2985, 0.0
    %3051 = vadd.xlane.f32.xlu0 %v3050
    %v3052 = vpop.xlane.xlu0 %3051
    %v3053 = vsel %vm2851, %v2987, 0.0
    %3054 = vadd.xlane.f32.xlu0 %v3053
    %v3055 = vpop.xlane.xlu0 %3054
    %v3056 = vsel %vm2851, %v2989, 0.0
    %3057 = vadd.xlane.f32.xlu0 %v3056
    %v3058 = vpop.xlane.xlu0 %3057
    %v3059 = vsel %vm2851, %v2991, 0.0
    %3060 = vadd.xlane.f32.xlu0 %v3059
    %v3061 = vpop.xlane.xlu0 %3060
    %v3062 = vsel %vm2851, %v2993, 0.0
    %3063 = vadd.xlane.f32.xlu0 %v3062
    %v3064 = vpop.xlane.xlu0 %3063
    %v3065 = vsel %vm2851, %v2995, 0.0
    %3066 = vadd.xlane.f32.xlu0 %v3065
    %v3067 = vpop.xlane.xlu0 %3066
    %v3068 = vsel %vm2851, %v2997, 0.0
    %3069 = vadd.xlane.f32.xlu0 %v3068
    %v3070 = vpop.xlane.xlu0 %3069
    %v3071 = vsel %vm2851, %v2999, 0.0
    %3072 = vadd.xlane.f32.xlu0 %v3071
    %v3073 = vpop.xlane.xlu0 %3072
    %v3074 = vsel %vm2851, %v3001, 0.0
    %3075 = vadd.xlane.f32.xlu0 %v3074
    %v3076 = vpop.xlane.xlu0 %3075
    %v3077 = vsel %vm2851, %v3003, 0.0
    %3078 = vadd.xlane.f32.xlu0 %v3077
    %v3079 = vpop.xlane.xlu0 %3078
    %v3080 = vsel %vm2851, %v3005, 0.0
    %3081 = vadd.xlane.f32.xlu0 %v3080
    %v3082 = vpop.xlane.xlu0 %3081
    %v3083 = vsel %vm2851, %v3007, 0.0
    %3084 = vadd.xlane.f32.xlu0 %v3083
    %v3085 = vpop.xlane.xlu0 %3084
    %v3086 = vsel %vm2851, %v3009, 0.0
    %3087 = vadd.xlane.f32.xlu0 %v3086
    %v3088 = vpop.xlane.xlu0 %3087
    %v3089 = vsel %vm2851, %v3011, 0.0
    %3090 = vadd.xlane.f32.xlu0 %v3089
    %v3091 = vpop.xlane.xlu0 %3090
    %v3092 = vsel %vm2851, %v3013, 0.0
    %3093 = vadd.xlane.f32.xlu0 %v3092
    %v3094 = vpop.xlane.xlu0 %3093
    %v3095 = vsel %vm2851, %v3015, 0.0
    %3096 = vadd.xlane.f32.xlu0 %v3095
    %v3097 = vpop.xlane.xlu0 %3096
    %v3098 = vsel %vm2851, %v3017, 0.0
    %3099 = vadd.xlane.f32.xlu0 %v3098
    %v3100 = vpop.xlane.xlu0 %3099
    %v3101 = vsel %vm2851, %v3019, 0.0
    %3102 = vadd.xlane.f32.xlu0 %v3101
    %v3103 = vpop.xlane.xlu0 %3102
    %v3104 = vsel %vm2851, %v3021, 0.0
    %3105 = vadd.xlane.f32.xlu0 %v3104
    %v3106 = vpop.xlane.xlu0 %3105
    %v3107 = vsel %vm2851, %v3023, 0.0
    %3108 = vadd.xlane.f32.xlu0 %v3107
    %v3109 = vpop.xlane.xlu0 %3108
    %v3110 = vsel %vm2851, %v3025, 0.0
    %3111 = vadd.xlane.f32.xlu0 %v3110
    %v3112 = vpop.xlane.xlu0 %3111
    %v3113 = vsel %vm2851, %v3027, 0.0
    %3114 = vadd.xlane.f32.xlu0 %v3113
    %v3115 = vpop.xlane.xlu0 %3114
    %v3116 = vsel %vm2851, %v3029, 0.0
    %3117 = vadd.xlane.f32.xlu0 %v3116
    %v3118 = vpop.xlane.xlu0 %3117
    %v3119 = vsel %vm2851, %v3031, 0.0
    %3120 = vadd.xlane.f32.xlu0 %v3119
    %v3121 = vpop.xlane.xlu0 %3120
    %v3122 = vsel %vm2851, %v3033, 0.0
    %3123 = vadd.xlane.f32.xlu0 %v3122
    %v3124 = vpop.xlane.xlu0 %3123
    %v3125 = vsel %vm2851, %v3035, 0.0
    %3126 = vadd.xlane.f32.xlu0 %v3125
    %v3127 = vpop.xlane.xlu0 %3126
    %v3128 = vsel %vm2851, %v3037, 0.0
    %3129 = vadd.xlane.f32.xlu0 %v3128
    %v3130 = vpop.xlane.xlu0 %3129
    %v3131 = vsel %vm2851, %v3039, 0.0
    %3132 = vadd.xlane.f32.xlu0 %v3131
    %v3133 = vpop.xlane.xlu0 %3132
    %v3134 = vsel %vm2851, %v3041, 0.0
    %3135 = vadd.xlane.f32.xlu0 %v3134
    %v3136 = vpop.xlane.xlu0 %3135
    %v3137 = vsel %vm2851, %v3043, 0.0
    %3138 = vadd.xlane.f32.xlu0 %v3137
    %v3139 = vpop.xlane.xlu0 %3138
    %v3140 = vrcp.pop %v3046
    %v3141 = vrcp.pop %v3049
    %v3142 = vrcp.pop %v3052
    %v3143 = vrcp.pop %v3055
    %v3144 = vrcp.pop %v3058
    %v3145 = vrcp.pop %v3061
    %v3146 = vrcp.pop %v3064
    %v3147 = vrcp.pop %v3067
    %v3148 = vrcp.pop %v3070
    %v3149 = vrcp.pop %v3073
    %v3150 = vrcp.pop %v3076
    %v3151 = vrcp.pop %v3079
    %v3152 = vrcp.pop %v3082
    %v3153 = vrcp.pop %v3085
    %v3154 = vrcp.pop %v3088
    %v3155 = vrcp.pop %v3091
    %v3156 = vrcp.pop %v3094
    %v3157 = vrcp.pop %v3097
    %v3158 = vrcp.pop %v3100
    %v3159 = vrcp.pop %v3103
    %v3160 = vrcp.pop %v3106
    %v3161 = vrcp.pop %v3109
    %v3162 = vrcp.pop %v3112
    %v3163 = vrcp.pop %v3115
    %v3164 = vrcp.pop %v3118
    %v3165 = vrcp.pop %v3121
    %v3166 = vrcp.pop %v3124
    %v3167 = vrcp.pop %v3127
    %v3168 = vrcp.pop %v3130
    %v3169 = vrcp.pop %v3133
    %v3170 = vrcp.pop %v3136
    %v3171 = vrcp.pop %v3139
    %v3172 = vmul.f32 %v2981, %v3140
    %v3173 = vmul.f32 %v2983, %v3141
    %v3174 = vmul.f32 %v2985, %v3142
    %v3175 = vmul.f32 %v2987, %v3143
    %v3176 = vmul.f32 %v2989, %v3144
    %v3177 = vmul.f32 %v2991, %v3145
    %v3178 = vmul.f32 %v2993, %v3146
    %v3179 = vmul.f32 %v2995, %v3147
    %v3180 = vmul.f32 %v2997, %v3148
    %v3181 = vmul.f32 %v2999, %v3149
    %v3182 = vmul.f32 %v3001, %v3150
    %v3183 = vmul.f32 %v3003, %v3151
    %v3184 = vmul.f32 %v3005, %v3152
    %v3185 = vmul.f32 %v3007, %v3153
    %v3186 = vmul.f32 %v3009, %v3154
    %v3187 = vmul.f32 %v3011, %v3155
    %v3188 = vmul.f32 %v3013, %v3156
    %v3189 = vmul.f32 %v3015, %v3157
    %v3190 = vmul.f32 %v3017, %v3158
    %v3191 = vmul.f32 %v3019, %v3159
    %v3192 = vmul.f32 %v3021, %v3160
    %v3193 = vmul.f32 %v3023, %v3161
    %v3194 = vmul.f32 %v3025, %v3162
    %v3195 = vmul.f32 %v3027, %v3163
    %v3196 = vmul.f32 %v3029, %v3164
    %v3197 = vmul.f32 %v3031, %v3165
    %v3198 = vmul.f32 %v3033, %v3166
    %v3199 = vmul.f32 %v3035, %v3167
    %v3200 = vmul.f32 %v3037, %v3168
    %v3201 = vmul.f32 %v3039, %v3169
    %v3202 = vmul.f32 %v3041, %v3170
    %v3203 = vmul.f32 %v3043, %v3171
    %v3204 = vpack.c.bf16 %v3172, %v3172
    %v3205 = vpack.c.bf16 %v3173, %v3173
    %v3206 = vpack.c.bf16 %v3174, %v3174
    %v3207 = vpack.c.bf16 %v3175, %v3175
    %v3208 = vpack.c.bf16 %v3176, %v3176
    %v3209 = vpack.c.bf16 %v3177, %v3177
    %v3210 = vpack.c.bf16 %v3178, %v3178
    %v3211 = vpack.c.bf16 %v3179, %v3179
    %v3212 = vpack.c.bf16 %v3180, %v3180
    %v3213 = vpack.c.bf16 %v3181, %v3181
    %v3214 = vpack.c.bf16 %v3182, %v3182
    %v3215 = vpack.c.bf16 %v3183, %v3183
    %v3216 = vpack.c.bf16 %v3184, %v3184
    %v3217 = vpack.c.bf16 %v3185, %v3185
    %v3218 = vpack.c.bf16 %v3186, %v3186
    %v3219 = vpack.c.bf16 %v3187, %v3187
    %v3220 = vpack.c.bf16 %v3188, %v3188
    %v3221 = vpack.c.bf16 %v3189, %v3189
    %v3222 = vpack.c.bf16 %v3190, %v3190
    %v3223 = vpack.c.bf16 %v3191, %v3191
    %v3224 = vpack.c.bf16 %v3192, %v3192
    %v3225 = vpack.c.bf16 %v3193, %v3193
    %v3226 = vpack.c.bf16 %v3194, %v3194
    %v3227 = vpack.c.bf16 %v3195, %v3195
    %v3228 = vpack.c.bf16 %v3196, %v3196
    %v3229 = vpack.c.bf16 %v3197, %v3197
    %v3230 = vpack.c.bf16 %v3198, %v3198
    %v3231 = vpack.c.bf16 %v3199, %v3199
    %v3232 = vpack.c.bf16 %v3200, %v3200
    %v3233 = vpack.c.bf16 %v3201, %v3201
    %v3234 = vpack.c.bf16 %v3202, %v3202
    %v3235 = vpack.c.bf16 %v3203, %v3203
    %v3238 = vunpack.c.l.b16 %v3204
    %v3239 = vunpack.c.l.b16 %v3205
    %v3240 = vpack.c.b16 %v3239, %v3238
    %v3241 = vunpack.c.l.b16 %v2196
    %v3242 = vunpack.c.l.b16 %v2268
    %v3243 = vpack.c.b16 %v3242, %v3241
    %v3246 = vsel %vm2851, %v3240, 0
    %3248 = vmatpush.bf16.msra.mxu0 0
    %3249 = vmatpush.bf16.msra.mxu0 0
    %3250 = vmatpush.bf16.msra.mxu0 0
    %3251 = vmatpush.bf16.msra.mxu0 0
    %3252 = vmatpush.bf16.msra.mxu0 0
    %3253 = vmatpush.bf16.msra.mxu0 0
    %3254 = vmatpush.bf16.msra.mxu0 0
    %3255 = vmatpush.bf16.msra.mxu0 %v3243
    %3256 = vmatmul.bf16.gmra.mxu0 %v3246
    %v3257 = vpop.f32.mrf.mxu0
    %v3258 = vadd.f32 0.0, %v3257
    %v3259 = vpop.f32.mrf.mxu0
    %v3260 = vadd.f32 0.0, %v3259
    %3261 = vdwg.mxu0
    %v3264 = vunpack.c.l.b16 %v3206
    %v3265 = vunpack.c.l.b16 %v3207
    %v3266 = vpack.c.b16 %v3265, %v3264
    %v3267 = vunpack.c.l.b16 %v2340
    %v3268 = vunpack.c.l.b16 %v2412
    %v3269 = vpack.c.b16 %v3268, %v3267
    %v3272 = vsel %vm2851, %v3266, 0
    %3274 = vmatpush.bf16.msra.mxu0 0
    %3275 = vmatpush.bf16.msra.mxu0 0
    %3276 = vmatpush.bf16.msra.mxu0 0
    %3277 = vmatpush.bf16.msra.mxu0 0
    %3278 = vmatpush.bf16.msra.mxu0 0
    %3279 = vmatpush.bf16.msra.mxu0 0
    %3280 = vmatpush.bf16.msra.mxu0 0
    %3281 = vmatpush.bf16.msra.mxu0 %v3269
    %3282 = vmatmul.bf16.gmra.mxu0 %v3272
    %v3283 = vpop.f32.mrf.mxu0
    %v3284 = vadd.f32 0.0, %v3283
    %v3285 = vpop.f32.mrf.mxu0
    %v3286 = vadd.f32 0.0, %v3285
    %3287 = vdwg.mxu0
    %v3290 = vunpack.c.l.b16 %v3208
    %v3291 = vunpack.c.l.b16 %v3209
    %v3292 = vpack.c.b16 %v3291, %v3290
    %v3293 = vunpack.c.l.b16 %v2199
    %v3294 = vunpack.c.l.b16 %v2271
    %v3295 = vpack.c.b16 %v3294, %v3293
    %v3298 = vsel %vm2851, %v3292, 0
    %3300 = vmatpush.bf16.msra.mxu0 0
    %3301 = vmatpush.bf16.msra.mxu0 0
    %3302 = vmatpush.bf16.msra.mxu0 0
    %3303 = vmatpush.bf16.msra.mxu0 0
    %3304 = vmatpush.bf16.msra.mxu0 0
    %3305 = vmatpush.bf16.msra.mxu0 0
    %3306 = vmatpush.bf16.msra.mxu0 0
    %3307 = vmatpush.bf16.msra.mxu0 %v3295
    %3308 = vmatmul.bf16.gmra.mxu0 %v3298
    %v3309 = vpop.f32.mrf.mxu0
    %v3310 = vadd.f32 0.0, %v3309
    %v3311 = vpop.f32.mrf.mxu0
    %v3312 = vadd.f32 0.0, %v3311
    %3313 = vdwg.mxu0
    %v3316 = vunpack.c.l.b16 %v3210
    %v3317 = vunpack.c.l.b16 %v3211
    %v3318 = vpack.c.b16 %v3317, %v3316
    %v3319 = vunpack.c.l.b16 %v2343
    %v3320 = vunpack.c.l.b16 %v2415
    %v3321 = vpack.c.b16 %v3320, %v3319
    %v3324 = vsel %vm2851, %v3318, 0
    %3326 = vmatpush.bf16.msra.mxu0 0
    %3327 = vmatpush.bf16.msra.mxu0 0
    %3328 = vmatpush.bf16.msra.mxu0 0
    %3329 = vmatpush.bf16.msra.mxu0 0
    %3330 = vmatpush.bf16.msra.mxu0 0
    %3331 = vmatpush.bf16.msra.mxu0 0
    %3332 = vmatpush.bf16.msra.mxu0 0
    %3333 = vmatpush.bf16.msra.mxu0 %v3321
    %3334 = vmatmul.bf16.gmra.mxu0 %v3324
    %v3335 = vpop.f32.mrf.mxu0
    %v3336 = vadd.f32 0.0, %v3335
    %v3337 = vpop.f32.mrf.mxu0
    %v3338 = vadd.f32 0.0, %v3337
    %3339 = vdwg.mxu0
    %v3342 = vunpack.c.l.b16 %v3212
    %v3343 = vunpack.c.l.b16 %v3213
    %v3344 = vpack.c.b16 %v3343, %v3342
    %v3345 = vunpack.c.l.b16 %v2202
    %v3346 = vunpack.c.l.b16 %v2274
    %v3347 = vpack.c.b16 %v3346, %v3345
    %v3350 = vsel %vm2851, %v3344, 0
    %3352 = vmatpush.bf16.msra.mxu0 0
    %3353 = vmatpush.bf16.msra.mxu0 0
    %3354 = vmatpush.bf16.msra.mxu0 0
    %3355 = vmatpush.bf16.msra.mxu0 0
    %3356 = vmatpush.bf16.msra.mxu0 0
    %3357 = vmatpush.bf16.msra.mxu0 0
    %3358 = vmatpush.bf16.msra.mxu0 0
    %3359 = vmatpush.bf16.msra.mxu0 %v3347
    %3360 = vmatmul.bf16.gmra.mxu0 %v3350
    %v3361 = vpop.f32.mrf.mxu0
    %v3362 = vadd.f32 0.0, %v3361
    %v3363 = vpop.f32.mrf.mxu0
    %v3364 = vadd.f32 0.0, %v3363
    %3365 = vdwg.mxu0
    %v3368 = vunpack.c.l.b16 %v3214
    %v3369 = vunpack.c.l.b16 %v3215
    %v3370 = vpack.c.b16 %v3369, %v3368
    %v3371 = vunpack.c.l.b16 %v2346
    %v3372 = vunpack.c.l.b16 %v2418
    %v3373 = vpack.c.b16 %v3372, %v3371
    %v3376 = vsel %vm2851, %v3370, 0
    %3378 = vmatpush.bf16.msra.mxu0 0
    %3379 = vmatpush.bf16.msra.mxu0 0
    %3380 = vmatpush.bf16.msra.mxu0 0
    %3381 = vmatpush.bf16.msra.mxu0 0
    %3382 = vmatpush.bf16.msra.mxu0 0
    %3383 = vmatpush.bf16.msra.mxu0 0
    %3384 = vmatpush.bf16.msra.mxu0 0
    %3385 = vmatpush.bf16.msra.mxu0 %v3373
    %3386 = vmatmul.bf16.gmra.mxu0 %v3376
    %v3387 = vpop.f32.mrf.mxu0
    %v3388 = vadd.f32 0.0, %v3387
    %v3389 = vpop.f32.mrf.mxu0
    %v3390 = vadd.f32 0.0, %v3389
    %3391 = vdwg.mxu0
    %v3394 = vunpack.c.l.b16 %v3216
    %v3395 = vunpack.c.l.b16 %v3217
    %v3396 = vpack.c.b16 %v3395, %v3394
    %v3397 = vunpack.c.l.b16 %v2205
    %v3398 = vunpack.c.l.b16 %v2277
    %v3399 = vpack.c.b16 %v3398, %v3397
    %v3402 = vsel %vm2851, %v3396, 0
    %3404 = vmatpush.bf16.msra.mxu0 0
    %3405 = vmatpush.bf16.msra.mxu0 0
    %3406 = vmatpush.bf16.msra.mxu0 0
    %3407 = vmatpush.bf16.msra.mxu0 0
    %3408 = vmatpush.bf16.msra.mxu0 0
    %3409 = vmatpush.bf16.msra.mxu0 0
    %3410 = vmatpush.bf16.msra.mxu0 0
    %3411 = vmatpush.bf16.msra.mxu0 %v3399
    %3412 = vmatmul.bf16.gmra.mxu0 %v3402
    %v3413 = vpop.f32.mrf.mxu0
    %v3414 = vadd.f32 0.0, %v3413
    %v3415 = vpop.f32.mrf.mxu0
    %v3416 = vadd.f32 0.0, %v3415
    %3417 = vdwg.mxu0
    %v3420 = vunpack.c.l.b16 %v3218
    %v3421 = vunpack.c.l.b16 %v3219
    %v3422 = vpack.c.b16 %v3421, %v3420
    %v3423 = vunpack.c.l.b16 %v2349
    %v3424 = vunpack.c.l.b16 %v2421
    %v3425 = vpack.c.b16 %v3424, %v3423
    %v3428 = vsel %vm2851, %v3422, 0
    %3430 = vmatpush.bf16.msra.mxu0 0
    %3431 = vmatpush.bf16.msra.mxu0 0
    %3432 = vmatpush.bf16.msra.mxu0 0
    %3433 = vmatpush.bf16.msra.mxu0 0
    %3434 = vmatpush.bf16.msra.mxu0 0
    %3435 = vmatpush.bf16.msra.mxu0 0
    %3436 = vmatpush.bf16.msra.mxu0 0
    %3437 = vmatpush.bf16.msra.mxu0 %v3425
    %3438 = vmatmul.bf16.gmra.mxu0 %v3428
    %v3439 = vpop.f32.mrf.mxu0
    %v3440 = vadd.f32 0.0, %v3439
    %v3441 = vpop.f32.mrf.mxu0
    %v3442 = vadd.f32 0.0, %v3441
    %3443 = vdwg.mxu0
    %v3446 = vunpack.c.l.b16 %v3220
    %v3447 = vunpack.c.l.b16 %v3221
    %v3448 = vpack.c.b16 %v3447, %v3446
    %v3449 = vunpack.c.l.b16 %v2208
    %v3450 = vunpack.c.l.b16 %v2280
    %v3451 = vpack.c.b16 %v3450, %v3449
    %v3454 = vsel %vm2851, %v3448, 0
    %3456 = vmatpush.bf16.msra.mxu0 0
    %3457 = vmatpush.bf16.msra.mxu0 0
    %3458 = vmatpush.bf16.msra.mxu0 0
    %3459 = vmatpush.bf16.msra.mxu0 0
    %3460 = vmatpush.bf16.msra.mxu0 0
    %3461 = vmatpush.bf16.msra.mxu0 0
    %3462 = vmatpush.bf16.msra.mxu0 0
    %3463 = vmatpush.bf16.msra.mxu0 %v3451
    %3464 = vmatmul.bf16.gmra.mxu0 %v3454
    %v3465 = vpop.f32.mrf.mxu0
    %v3466 = vadd.f32 0.0, %v3465
    %v3467 = vpop.f32.mrf.mxu0
    %v3468 = vadd.f32 0.0, %v3467
    %3469 = vdwg.mxu0
    %v3472 = vunpack.c.l.b16 %v3222
    %v3473 = vunpack.c.l.b16 %v3223
    %v3474 = vpack.c.b16 %v3473, %v3472
    %v3475 = vunpack.c.l.b16 %v2352
    %v3476 = vunpack.c.l.b16 %v2424
    %v3477 = vpack.c.b16 %v3476, %v3475
    %v3480 = vsel %vm2851, %v3474, 0
    %3482 = vmatpush.bf16.msra.mxu0 0
    %3483 = vmatpush.bf16.msra.mxu0 0
    %3484 = vmatpush.bf16.msra.mxu0 0
    %3485 = vmatpush.bf16.msra.mxu0 0
    %3486 = vmatpush.bf16.msra.mxu0 0
    %3487 = vmatpush.bf16.msra.mxu0 0
    %3488 = vmatpush.bf16.msra.mxu0 0
    %3489 = vmatpush.bf16.msra.mxu0 %v3477
    %3490 = vmatmul.bf16.gmra.mxu0 %v3480
    %v3491 = vpop.f32.mrf.mxu0
    %v3492 = vadd.f32 0.0, %v3491
    %v3493 = vpop.f32.mrf.mxu0
    %v3494 = vadd.f32 0.0, %v3493
    %3495 = vdwg.mxu0
    %v3498 = vunpack.c.l.b16 %v3224
    %v3499 = vunpack.c.l.b16 %v3225
    %v3500 = vpack.c.b16 %v3499, %v3498
    %v3501 = vunpack.c.l.b16 %v2211
    %v3502 = vunpack.c.l.b16 %v2283
    %v3503 = vpack.c.b16 %v3502, %v3501
    %v3506 = vsel %vm2851, %v3500, 0
    %3508 = vmatpush.bf16.msra.mxu0 0
    %3509 = vmatpush.bf16.msra.mxu0 0
    %3510 = vmatpush.bf16.msra.mxu0 0
    %3511 = vmatpush.bf16.msra.mxu0 0
    %3512 = vmatpush.bf16.msra.mxu0 0
    %3513 = vmatpush.bf16.msra.mxu0 0
    %3514 = vmatpush.bf16.msra.mxu0 0
    %3515 = vmatpush.bf16.msra.mxu0 %v3503
    %3516 = vmatmul.bf16.gmra.mxu0 %v3506
    %v3517 = vpop.f32.mrf.mxu0
    %v3518 = vadd.f32 0.0, %v3517
    %v3519 = vpop.f32.mrf.mxu0
    %v3520 = vadd.f32 0.0, %v3519
    %3521 = vdwg.mxu0
    %v3524 = vunpack.c.l.b16 %v3226
    %v3525 = vunpack.c.l.b16 %v3227
    %v3526 = vpack.c.b16 %v3525, %v3524
    %v3527 = vunpack.c.l.b16 %v2355
    %v3528 = vunpack.c.l.b16 %v2427
    %v3529 = vpack.c.b16 %v3528, %v3527
    %v3532 = vsel %vm2851, %v3526, 0
    %3534 = vmatpush.bf16.msra.mxu0 0
    %3535 = vmatpush.bf16.msra.mxu0 0
    %3536 = vmatpush.bf16.msra.mxu0 0
    %3537 = vmatpush.bf16.msra.mxu0 0
    %3538 = vmatpush.bf16.msra.mxu0 0
    %3539 = vmatpush.bf16.msra.mxu0 0
    %3540 = vmatpush.bf16.msra.mxu0 0
    %3541 = vmatpush.bf16.msra.mxu0 %v3529
    %3542 = vmatmul.bf16.gmra.mxu0 %v3532
    %v3543 = vpop.f32.mrf.mxu0
    %v3544 = vadd.f32 0.0, %v3543
    %v3545 = vpop.f32.mrf.mxu0
    %v3546 = vadd.f32 0.0, %v3545
    %3547 = vdwg.mxu0
    %v3550 = vunpack.c.l.b16 %v3228
    %v3551 = vunpack.c.l.b16 %v3229
    %v3552 = vpack.c.b16 %v3551, %v3550
    %v3553 = vunpack.c.l.b16 %v2214
    %v3554 = vunpack.c.l.b16 %v2286
    %v3555 = vpack.c.b16 %v3554, %v3553
    %v3558 = vsel %vm2851, %v3552, 0
    %3560 = vmatpush.bf16.msra.mxu0 0
    %3561 = vmatpush.bf16.msra.mxu0 0
    %3562 = vmatpush.bf16.msra.mxu0 0
    %3563 = vmatpush.bf16.msra.mxu0 0
    %3564 = vmatpush.bf16.msra.mxu0 0
    %3565 = vmatpush.bf16.msra.mxu0 0
    %3566 = vmatpush.bf16.msra.mxu0 0
    %3567 = vmatpush.bf16.msra.mxu0 %v3555
    %3568 = vmatmul.bf16.gmra.mxu0 %v3558
    %v3569 = vpop.f32.mrf.mxu0
    %v3570 = vadd.f32 0.0, %v3569
    %v3571 = vpop.f32.mrf.mxu0
    %v3572 = vadd.f32 0.0, %v3571
    %3573 = vdwg.mxu0
    %v3576 = vunpack.c.l.b16 %v3230
    %v3577 = vunpack.c.l.b16 %v3231
    %v3578 = vpack.c.b16 %v3577, %v3576
    %v3579 = vunpack.c.l.b16 %v2358
    %v3580 = vunpack.c.l.b16 %v2430
    %v3581 = vpack.c.b16 %v3580, %v3579
    %v3584 = vsel %vm2851, %v3578, 0
    %3586 = vmatpush.bf16.msra.mxu0 0
    %3587 = vmatpush.bf16.msra.mxu0 0
    %3588 = vmatpush.bf16.msra.mxu0 0
    %3589 = vmatpush.bf16.msra.mxu0 0
    %3590 = vmatpush.bf16.msra.mxu0 0
    %3591 = vmatpush.bf16.msra.mxu0 0
    %3592 = vmatpush.bf16.msra.mxu0 0
    %3593 = vmatpush.bf16.msra.mxu0 %v3581
    %3594 = vmatmul.bf16.gmra.mxu0 %v3584
    %v3595 = vpop.f32.mrf.mxu0
    %v3596 = vadd.f32 0.0, %v3595
    %v3597 = vpop.f32.mrf.mxu0
    %v3598 = vadd.f32 0.0, %v3597
    %3599 = vdwg.mxu0
    %v3602 = vunpack.c.l.b16 %v3232
    %v3603 = vunpack.c.l.b16 %v3233
    %v3604 = vpack.c.b16 %v3603, %v3602
    %v3605 = vunpack.c.l.b16 %v2217
    %v3606 = vunpack.c.l.b16 %v2289
    %v3607 = vpack.c.b16 %v3606, %v3605
    %v3610 = vsel %vm2851, %v3604, 0
    %3612 = vmatpush.bf16.msra.mxu0 0
    %3613 = vmatpush.bf16.msra.mxu0 0
    %3614 = vmatpush.bf16.msra.mxu0 0
    %3615 = vmatpush.bf16.msra.mxu0 0
    %3616 = vmatpush.bf16.msra.mxu0 0
    %3617 = vmatpush.bf16.msra.mxu0 0
    %3618 = vmatpush.bf16.msra.mxu0 0
    %3619 = vmatpush.bf16.msra.mxu0 %v3607
    %3620 = vmatmul.bf16.gmra.mxu0 %v3610
    %v3621 = vpop.f32.mrf.mxu0
    %v3622 = vadd.f32 0.0, %v3621
    %v3623 = vpop.f32.mrf.mxu0
    %v3624 = vadd.f32 0.0, %v3623
    %3625 = vdwg.mxu0
    %v3628 = vunpack.c.l.b16 %v3234
    %v3629 = vunpack.c.l.b16 %v3235
    %v3630 = vpack.c.b16 %v3629, %v3628
    %v3631 = vunpack.c.l.b16 %v2361
    %v3632 = vunpack.c.l.b16 %v2433
    %v3633 = vpack.c.b16 %v3632, %v3631
    %v3636 = vsel %vm2851, %v3630, 0
    %3638 = vmatpush.bf16.msra.mxu0 0
    %3639 = vmatpush.bf16.msra.mxu0 0
    %3640 = vmatpush.bf16.msra.mxu0 0
    %3641 = vmatpush.bf16.msra.mxu0 0
    %3642 = vmatpush.bf16.msra.mxu0 0
    %3643 = vmatpush.bf16.msra.mxu0 0
    %3644 = vmatpush.bf16.msra.mxu0 0
    %3645 = vmatpush.bf16.msra.mxu0 %v3633
    %3646 = vmatmul.bf16.gmra.mxu0 %v3636
    %v3647 = vpop.f32.mrf.mxu0
    %v3648 = vadd.f32 0.0, %v3647
    %v3649 = vpop.f32.mrf.mxu0
    %v3650 = vadd.f32 0.0, %v3649
    %3651 = vdwg.mxu0
    %v3652 = vpack.c.bf16 %v3258, %v3258
    %v3653 = vpack.c.bf16 %v3260, %v3260
    %v3654 = vpack.c.bf16 %v3284, %v3284
    %v3655 = vpack.c.bf16 %v3286, %v3286
    %v3656 = vpack.c.bf16 %v3310, %v3310
    %v3657 = vpack.c.bf16 %v3312, %v3312
    %v3658 = vpack.c.bf16 %v3336, %v3336
    %v3659 = vpack.c.bf16 %v3338, %v3338
    %v3660 = vpack.c.bf16 %v3362, %v3362
    %v3661 = vpack.c.bf16 %v3364, %v3364
    %v3662 = vpack.c.bf16 %v3388, %v3388
    %v3663 = vpack.c.bf16 %v3390, %v3390
    %v3664 = vpack.c.bf16 %v3414, %v3414
    %v3665 = vpack.c.bf16 %v3416, %v3416
    %v3666 = vpack.c.bf16 %v3440, %v3440
    %v3667 = vpack.c.bf16 %v3442, %v3442
    %v3668 = vpack.c.bf16 %v3466, %v3466
    %v3669 = vpack.c.bf16 %v3468, %v3468
    %v3670 = vpack.c.bf16 %v3492, %v3492
    %v3671 = vpack.c.bf16 %v3494, %v3494
    %v3672 = vpack.c.bf16 %v3518, %v3518
    %v3673 = vpack.c.bf16 %v3520, %v3520
    %v3674 = vpack.c.bf16 %v3544, %v3544
    %v3675 = vpack.c.bf16 %v3546, %v3546
    %v3676 = vpack.c.bf16 %v3570, %v3570
    %v3677 = vpack.c.bf16 %v3572, %v3572
    %v3678 = vpack.c.bf16 %v3596, %v3596
    %v3679 = vpack.c.bf16 %v3598, %v3598
    %v3680 = vpack.c.bf16 %v3622, %v3622
    %v3681 = vpack.c.bf16 %v3624, %v3624
    %v3682 = vpack.c.bf16 %v3648, %v3648
    %v3683 = vpack.c.bf16 %v3650, %v3650
    %v3684 = vrot.slane %v3668, 4
    %v3685 = vsel %vm418, %v3684, %v3652
    %v3687 = vunpack.c.l.s4 1983009808
    %v3688 = vunpack.c.0.s8 %v3687
    %v3689 = vperm.slane %v3685, %v3688
    %v3690 = vrot.slane %v3676, 4
    %v3691 = vsel %vm418, %v3690, %v3660
    %v3693 = vunpack.c.l.s4 1983009808
    %v3694 = vunpack.c.0.s8 %v3693
    %v3695 = vperm.slane %v3691, %v3694
    %v3696 = vrot.slane %v3695, 4
    %v3697 = vsel %vm418, %v3696, %v3689
    %v3698 = vrot.slane %v3689, 4
    %v3699 = vsel %vm418, %v3695, %v3698
    %v3701 = vunpack.c.l.s4 1934713408
    %v3702 = vunpack.c.0.s8 %v3701
    %v3703 = vperm.slane %v3697, %v3702
    %v3705 = vunpack.c.l.s4 1934713408
    %v3706 = vunpack.c.0.s8 %v3705
    %v3707 = vperm.slane %v3699, %v3706
    %v3708 = vrot.slane %v3703, 4
    %v3709 = vsel %vm418, 0, %v3708
    %v3710 = vrot.slane %v3707, 4
    %v3711 = vsel %vm418, 0, %v3710
    %v3712 = vrot.slane %v3672, 4
    %v3713 = vsel %vm418, %v3712, %v3656
    %v3715 = vunpack.c.l.s4 1983009808
    %v3716 = vunpack.c.0.s8 %v3715
    %v3717 = vperm.slane %v3713, %v3716
    %v3718 = vrot.slane %v3680, 4
    %v3719 = vsel %vm418, %v3718, %v3664
    %v3721 = vunpack.c.l.s4 1983009808
    %v3722 = vunpack.c.0.s8 %v3721
    %v3723 = vperm.slane %v3719, %v3722
    %v3724 = vrot.slane %v3723, 4
    %v3725 = vsel %vm418, %v3724, %v3717
    %v3726 = vrot.slane %v3717, 4
    %v3727 = vsel %vm418, %v3723, %v3726
    %v3729 = vunpack.c.l.s4 1934713408
    %v3730 = vunpack.c.0.s8 %v3729
    %v3731 = vperm.slane %v3725, %v3730
    %v3733 = vunpack.c.l.s4 1934713408
    %v3734 = vunpack.c.0.s8 %v3733
    %v3735 = vperm.slane %v3727, %v3734
    %v3736 = vrot.slane %v3731, 4
    %v3737 = vsel %vm418, 0, %v3736
    %v3738 = vrot.slane %v3735, 4
    %v3739 = vsel %vm418, 0, %v3738
    %v3740 = vrot.slane %v3669, 4
    %v3741 = vsel %vm418, %v3740, %v3653
    %v3743 = vunpack.c.l.s4 1983009808
    %v3744 = vunpack.c.0.s8 %v3743
    %v3745 = vperm.slane %v3741, %v3744
    %v3746 = vrot.slane %v3677, 4
    %v3747 = vsel %vm418, %v3746, %v3661
    %v3749 = vunpack.c.l.s4 1983009808
    %v3750 = vunpack.c.0.s8 %v3749
    %v3751 = vperm.slane %v3747, %v3750
    %v3752 = vrot.slane %v3751, 4
    %v3753 = vsel %vm418, %v3752, %v3745
    %v3754 = vrot.slane %v3745, 4
    %v3755 = vsel %vm418, %v3751, %v3754
    %v3757 = vunpack.c.l.s4 1934713408
    %v3758 = vunpack.c.0.s8 %v3757
    %v3759 = vperm.slane %v3753, %v3758
    %v3761 = vunpack.c.l.s4 1934713408
    %v3762 = vunpack.c.0.s8 %v3761
    %v3763 = vperm.slane %v3755, %v3762
    %v3764 = vrot.slane %v3759, 4
    %v3765 = vsel %vm418, 0, %v3764
    %v3766 = vrot.slane %v3763, 4
    %v3767 = vsel %vm418, 0, %v3766
    %v3768 = vrot.slane %v3673, 4
    %v3769 = vsel %vm418, %v3768, %v3657
    %v3771 = vunpack.c.l.s4 1983009808
    %v3772 = vunpack.c.0.s8 %v3771
    %v3773 = vperm.slane %v3769, %v3772
    %v3774 = vrot.slane %v3681, 4
    %v3775 = vsel %vm418, %v3774, %v3665
    %v3777 = vunpack.c.l.s4 1983009808
    %v3778 = vunpack.c.0.s8 %v3777
    %v3779 = vperm.slane %v3775, %v3778
    %v3780 = vrot.slane %v3779, 4
    %v3781 = vsel %vm418, %v3780, %v3773
    %v3782 = vrot.slane %v3773, 4
    %v3783 = vsel %vm418, %v3779, %v3782
    %v3785 = vunpack.c.l.s4 1934713408
    %v3786 = vunpack.c.0.s8 %v3785
    %v3787 = vperm.slane %v3781, %v3786
    %v3789 = vunpack.c.l.s4 1934713408
    %v3790 = vunpack.c.0.s8 %v3789
    %v3791 = vperm.slane %v3783, %v3790
    %v3792 = vrot.slane %v3787, 4
    %v3793 = vsel %vm418, 0, %v3792
    %v3794 = vrot.slane %v3791, 4
    %v3795 = vsel %vm418, 0, %v3794
    %v3796 = vrot.slane %v3670, 4
    %v3797 = vsel %vm418, %v3796, %v3654
    %v3799 = vunpack.c.l.s4 1983009808
    %v3800 = vunpack.c.0.s8 %v3799
    %v3801 = vperm.slane %v3797, %v3800
    %v3802 = vrot.slane %v3678, 4
    %v3803 = vsel %vm418, %v3802, %v3662
    %v3805 = vunpack.c.l.s4 1983009808
    %v3806 = vunpack.c.0.s8 %v3805
    %v3807 = vperm.slane %v3803, %v3806
    %v3808 = vrot.slane %v3807, 4
    %v3809 = vsel %vm418, %v3808, %v3801
    %v3810 = vrot.slane %v3801, 4
    %v3811 = vsel %vm418, %v3807, %v3810
    %v3813 = vunpack.c.l.s4 1934713408
    %v3814 = vunpack.c.0.s8 %v3813
    %v3815 = vperm.slane %v3809, %v3814
    %v3817 = vunpack.c.l.s4 1934713408
    %v3818 = vunpack.c.0.s8 %v3817
    %v3819 = vperm.slane %v3811, %v3818
    %v3820 = vrot.slane %v3815, 4
    %v3821 = vsel %vm418, 0, %v3820
    %v3822 = vrot.slane %v3819, 4
    %v3823 = vsel %vm418, 0, %v3822
    %v3824 = vrot.slane %v3674, 4
    %v3825 = vsel %vm418, %v3824, %v3658
    %v3827 = vunpack.c.l.s4 1983009808
    %v3828 = vunpack.c.0.s8 %v3827
    %v3829 = vperm.slane %v3825, %v3828
    %v3830 = vrot.slane %v3682, 4
    %v3831 = vsel %vm418, %v3830, %v3666
    %v3833 = vunpack.c.l.s4 1983009808
    %v3834 = vunpack.c.0.s8 %v3833
    %v3835 = vperm.slane %v3831, %v3834
    %v3836 = vrot.slane %v3835, 4
    %v3837 = vsel %vm418, %v3836, %v3829
    %v3838 = vrot.slane %v3829, 4
    %v3839 = vsel %vm418, %v3835, %v3838
    %v3841 = vunpack.c.l.s4 1934713408
    %v3842 = vunpack.c.0.s8 %v3841
    %v3843 = vperm.slane %v3837, %v3842
    %v3845 = vunpack.c.l.s4 1934713408
    %v3846 = vunpack.c.0.s8 %v3845
    %v3847 = vperm.slane %v3839, %v3846
    %v3848 = vrot.slane %v3843, 4
    %v3849 = vsel %vm418, 0, %v3848
    %v3850 = vrot.slane %v3847, 4
    %v3851 = vsel %vm418, 0, %v3850
    %v3852 = vrot.slane %v3671, 4
    %v3853 = vsel %vm418, %v3852, %v3655
    %v3855 = vunpack.c.l.s4 1983009808
    %v3856 = vunpack.c.0.s8 %v3855
    %v3857 = vperm.slane %v3853, %v3856
    %v3858 = vrot.slane %v3679, 4
    %v3859 = vsel %vm418, %v3858, %v3663
    %v3861 = vunpack.c.l.s4 1983009808
    %v3862 = vunpack.c.0.s8 %v3861
    %v3863 = vperm.slane %v3859, %v3862
    %v3864 = vrot.slane %v3863, 4
    %v3865 = vsel %vm418, %v3864, %v3857
    %v3866 = vrot.slane %v3857, 4
    %v3867 = vsel %vm418, %v3863, %v3866
    %v3869 = vunpack.c.l.s4 1934713408
    %v3870 = vunpack.c.0.s8 %v3869
    %v3871 = vperm.slane %v3865, %v3870
    %v3873 = vunpack.c.l.s4 1934713408
    %v3874 = vunpack.c.0.s8 %v3873
    %v3875 = vperm.slane %v3867, %v3874
    %v3876 = vrot.slane %v3871, 4
    %v3877 = vsel %vm418, 0, %v3876
    %v3878 = vrot.slane %v3875, 4
    %v3879 = vsel %vm418, 0, %v3878
    %v3880 = vrot.slane %v3675, 4
    %v3881 = vsel %vm418, %v3880, %v3659
    %v3883 = vunpack.c.l.s4 1983009808
    %v3884 = vunpack.c.0.s8 %v3883
    %v3885 = vperm.slane %v3881, %v3884
    %v3886 = vrot.slane %v3683, 4
    %v3887 = vsel %vm418, %v3886, %v3667
    %v3889 = vunpack.c.l.s4 1983009808
    %v3890 = vunpack.c.0.s8 %v3889
    %v3891 = vperm.slane %v3887, %v3890
    %v3892 = vrot.slane %v3891, 4
    %v3893 = vsel %vm418, %v3892, %v3885
    %v3894 = vrot.slane %v3885, 4
    %v3895 = vsel %vm418, %v3891, %v3894
    %v3897 = vunpack.c.l.s4 1934713408
    %v3898 = vunpack.c.0.s8 %v3897
    %v3899 = vperm.slane %v3893, %v3898
    %v3901 = vunpack.c.l.s4 1934713408
    %v3902 = vunpack.c.0.s8 %v3901
    %v3903 = vperm.slane %v3895, %v3902
    %v3904 = vrot.slane %v3899, 4
    %v3905 = vsel %vm418, 0, %v3904
    %v3906 = vrot.slane %v3903, 4
    %v3907 = vsel %vm418, 0, %v3906
    %v3910 = vpack.i.b16 %v3731, %v3703
    %v3912 = vshrl.u32 %v3703, 16
    %v3913 = vshrl.u32 %v3731, 16
    %v3914 = vpack.i.b16 %v3913, %v3912
    %v3918 = vpack.i.b16 %v3737, %v3709
    %v3920 = vshrl.u32 %v3709, 16
    %v3921 = vshrl.u32 %v3737, 16
    %v3922 = vpack.i.b16 %v3921, %v3920
    %v3926 = vpack.i.b16 %v3735, %v3707
    %v3928 = vshrl.u32 %v3707, 16
    %v3929 = vshrl.u32 %v3735, 16
    %v3930 = vpack.i.b16 %v3929, %v3928
    %v3934 = vpack.i.b16 %v3739, %v3711
    %v3936 = vshrl.u32 %v3711, 16
    %v3937 = vshrl.u32 %v3739, 16
    %v3938 = vpack.i.b16 %v3937, %v3936
    %v3942 = vpack.i.b16 %v3787, %v3759
    %v3944 = vshrl.u32 %v3759, 16
    %v3945 = vshrl.u32 %v3787, 16
    %v3946 = vpack.i.b16 %v3945, %v3944
    %v3950 = vpack.i.b16 %v3793, %v3765
    %v3952 = vshrl.u32 %v3765, 16
    %v3953 = vshrl.u32 %v3793, 16
    %v3954 = vpack.i.b16 %v3953, %v3952
    %v3958 = vpack.i.b16 %v3791, %v3763
    %v3960 = vshrl.u32 %v3763, 16
    %v3961 = vshrl.u32 %v3791, 16
    %v3962 = vpack.i.b16 %v3961, %v3960
    %v3966 = vpack.i.b16 %v3795, %v3767
    %v3968 = vshrl.u32 %v3767, 16
    %v3969 = vshrl.u32 %v3795, 16
    %v3970 = vpack.i.b16 %v3969, %v3968
    %v3974 = vpack.i.b16 %v3843, %v3815
    %v3976 = vshrl.u32 %v3815, 16
    %v3977 = vshrl.u32 %v3843, 16
    %v3978 = vpack.i.b16 %v3977, %v3976
    %v3982 = vpack.i.b16 %v3849, %v3821
    %v3984 = vshrl.u32 %v3821, 16
    %v3985 = vshrl.u32 %v3849, 16
    %v3986 = vpack.i.b16 %v3985, %v3984
    %v3990 = vpack.i.b16 %v3847, %v3819
    %v3992 = vshrl.u32 %v3819, 16
    %v3993 = vshrl.u32 %v3847, 16
    %v3994 = vpack.i.b16 %v3993, %v3992
    %v3998 = vpack.i.b16 %v3851, %v3823
    %v4000 = vshrl.u32 %v3823, 16
    %v4001 = vshrl.u32 %v3851, 16
    %v4002 = vpack.i.b16 %v4001, %v4000
    %v4006 = vpack.i.b16 %v3899, %v3871
    %v4008 = vshrl.u32 %v3871, 16
    %v4009 = vshrl.u32 %v3899, 16
    %v4010 = vpack.i.b16 %v4009, %v4008
    %v4014 = vpack.i.b16 %v3905, %v3877
    %v4016 = vshrl.u32 %v3877, 16
    %v4017 = vshrl.u32 %v3905, 16
    %v4018 = vpack.i.b16 %v4017, %v4016
    %v4022 = vpack.i.b16 %v3903, %v3875
    %v4024 = vshrl.u32 %v3875, 16
    %v4025 = vshrl.u32 %v3903, 16
    %v4026 = vpack.i.b16 %v4025, %v4024
    %v4030 = vpack.i.b16 %v3907, %v3879
    %v4032 = vshrl.u32 %v3879, 16
    %v4033 = vshrl.u32 %v3907, 16
    %v4034 = vpack.i.b16 %v4033, %v4032
    %v4036 = vrot.slane %v3926, 4
    %v4037 = vsel %vm418, %v4036, %v3910
    %v4039 = vunpack.c.l.s4 1983009808
    %v4040 = vunpack.c.0.s8 %v4039
    %v4041 = vperm.slane %v4037, %v4040
    %v4042 = vrot.slane %v3934, 4
    %v4043 = vsel %vm418, %v4042, %v3918
    %v4045 = vunpack.c.l.s4 1983009808
    %v4046 = vunpack.c.0.s8 %v4045
    %v4047 = vperm.slane %v4043, %v4046
    %v4048 = vrot.slane %v4047, 4
    %v4049 = vsel %vm418, %v4048, %v4041
    %v4050 = vrot.slane %v4041, 4
    %v4051 = vsel %vm418, %v4047, %v4050
    %v4053 = vunpack.c.l.s4 1934713408
    %v4054 = vunpack.c.0.s8 %v4053
    %v4055 = vperm.slane %v4049, %v4054
    %v4057 = vunpack.c.l.s4 1934713408
    %v4058 = vunpack.c.0.s8 %v4057
    %v4059 = vperm.slane %v4051, %v4058
    %v4060 = vrot.slane %v4055, 4
    %v4061 = vsel %vm418, 0, %v4060
    %v4062 = vrot.slane %v4059, 4
    %v4063 = vsel %vm418, 0, %v4062
    %v4064 = vrot.slane %v3930, 4
    %v4065 = vsel %vm418, %v4064, %v3914
    %v4067 = vunpack.c.l.s4 1983009808
    %v4068 = vunpack.c.0.s8 %v4067
    %v4069 = vperm.slane %v4065, %v4068
    %v4070 = vrot.slane %v3938, 4
    %v4071 = vsel %vm418, %v4070, %v3922
    %v4073 = vunpack.c.l.s4 1983009808
    %v4074 = vunpack.c.0.s8 %v4073
    %v4075 = vperm.slane %v4071, %v4074
    %v4076 = vrot.slane %v4075, 4
    %v4077 = vsel %vm418, %v4076, %v4069
    %v4078 = vrot.slane %v4069, 4
    %v4079 = vsel %vm418, %v4075, %v4078
    %v4081 = vunpack.c.l.s4 1934713408
    %v4082 = vunpack.c.0.s8 %v4081
    %v4083 = vperm.slane %v4077, %v4082
    %v4085 = vunpack.c.l.s4 1934713408
    %v4086 = vunpack.c.0.s8 %v4085
    %v4087 = vperm.slane %v4079, %v4086
    %v4088 = vrot.slane %v4083, 4
    %v4089 = vsel %vm418, 0, %v4088
    %v4090 = vrot.slane %v4087, 4
    %v4091 = vsel %vm418, 0, %v4090
    %v4092 = vrot.slane %v3958, 4
    %v4093 = vsel %vm418, %v4092, %v3942
    %v4095 = vunpack.c.l.s4 1983009808
    %v4096 = vunpack.c.0.s8 %v4095
    %v4097 = vperm.slane %v4093, %v4096
    %v4098 = vrot.slane %v3966, 4
    %v4099 = vsel %vm418, %v4098, %v3950
    %v4101 = vunpack.c.l.s4 1983009808
    %v4102 = vunpack.c.0.s8 %v4101
    %v4103 = vperm.slane %v4099, %v4102
    %v4104 = vrot.slane %v4103, 4
    %v4105 = vsel %vm418, %v4104, %v4097
    %v4106 = vrot.slane %v4097, 4
    %v4107 = vsel %vm418, %v4103, %v4106
    %v4109 = vunpack.c.l.s4 1934713408
    %v4110 = vunpack.c.0.s8 %v4109
    %v4111 = vperm.slane %v4105, %v4110
    %v4113 = vunpack.c.l.s4 1934713408
    %v4114 = vunpack.c.0.s8 %v4113
    %v4115 = vperm.slane %v4107, %v4114
    %v4116 = vrot.slane %v4111, 4
    %v4117 = vsel %vm418, 0, %v4116
    %v4118 = vrot.slane %v4115, 4
    %v4119 = vsel %vm418, 0, %v4118
    %v4120 = vrot.slane %v3962, 4
    %v4121 = vsel %vm418, %v4120, %v3946
    %v4123 = vunpack.c.l.s4 1983009808
    %v4124 = vunpack.c.0.s8 %v4123
    %v4125 = vperm.slane %v4121, %v4124
    %v4126 = vrot.slane %v3970, 4
    %v4127 = vsel %vm418, %v4126, %v3954
    %v4129 = vunpack.c.l.s4 1983009808
    %v4130 = vunpack.c.0.s8 %v4129
    %v4131 = vperm.slane %v4127, %v4130
    %v4132 = vrot.slane %v4131, 4
    %v4133 = vsel %vm418, %v4132, %v4125
    %v4134 = vrot.slane %v4125, 4
    %v4135 = vsel %vm418, %v4131, %v4134
    %v4137 = vunpack.c.l.s4 1934713408
    %v4138 = vunpack.c.0.s8 %v4137
    %v4139 = vperm.slane %v4133, %v4138
    %v4141 = vunpack.c.l.s4 1934713408
    %v4142 = vunpack.c.0.s8 %v4141
    %v4143 = vperm.slane %v4135, %v4142
    %v4144 = vrot.slane %v4139, 4
    %v4145 = vsel %vm418, 0, %v4144
    %v4146 = vrot.slane %v4143, 4
    %v4147 = vsel %vm418, 0, %v4146
    %v4148 = vrot.slane %v3990, 4
    %v4149 = vsel %vm418, %v4148, %v3974
    %v4151 = vunpack.c.l.s4 1983009808
    %v4152 = vunpack.c.0.s8 %v4151
    %v4153 = vperm.slane %v4149, %v4152
    %v4154 = vrot.slane %v3998, 4
    %v4155 = vsel %vm418, %v4154, %v3982
    %v4157 = vunpack.c.l.s4 1983009808
    %v4158 = vunpack.c.0.s8 %v4157
    %v4159 = vperm.slane %v4155, %v4158
    %v4160 = vrot.slane %v4159, 4
    %v4161 = vsel %vm418, %v4160, %v4153
    %v4162 = vrot.slane %v4153, 4
    %v4163 = vsel %vm418, %v4159, %v4162
    %v4165 = vunpack.c.l.s4 1934713408
    %v4166 = vunpack.c.0.s8 %v4165
    %v4167 = vperm.slane %v4161, %v4166
    %v4169 = vunpack.c.l.s4 1934713408
    %v4170 = vunpack.c.0.s8 %v4169
    %v4171 = vperm.slane %v4163, %v4170
    %v4172 = vrot.slane %v4167, 4
    %v4173 = vsel %vm418, 0, %v4172
    %v4174 = vrot.slane %v4171, 4
    %v4175 = vsel %vm418, 0, %v4174
    %v4176 = vrot.slane %v3994, 4
    %v4177 = vsel %vm418, %v4176, %v3978
    %v4179 = vunpack.c.l.s4 1983009808
    %v4180 = vunpack.c.0.s8 %v4179
    %v4181 = vperm.slane %v4177, %v4180
    %v4182 = vrot.slane %v4002, 4
    %v4183 = vsel %vm418, %v4182, %v3986
    %v4185 = vunpack.c.l.s4 1983009808
    %v4186 = vunpack.c.0.s8 %v4185
    %v4187 = vperm.slane %v4183, %v4186
    %v4188 = vrot.slane %v4187, 4
    %v4189 = vsel %vm418, %v4188, %v4181
    %v4190 = vrot.slane %v4181, 4
    %v4191 = vsel %vm418, %v4187, %v4190
    %v4193 = vunpack.c.l.s4 1934713408
    %v4194 = vunpack.c.0.s8 %v4193
    %v4195 = vperm.slane %v4189, %v4194
    %v4197 = vunpack.c.l.s4 1934713408
    %v4198 = vunpack.c.0.s8 %v4197
    %v4199 = vperm.slane %v4191, %v4198
    %v4200 = vrot.slane %v4195, 4
    %v4201 = vsel %vm418, 0, %v4200
    %v4202 = vrot.slane %v4199, 4
    %v4203 = vsel %vm418, 0, %v4202
    %v4204 = vrot.slane %v4022, 4
    %v4205 = vsel %vm418, %v4204, %v4006
    %v4207 = vunpack.c.l.s4 1983009808
    %v4208 = vunpack.c.0.s8 %v4207
    %v4209 = vperm.slane %v4205, %v4208
    %v4210 = vrot.slane %v4030, 4
    %v4211 = vsel %vm418, %v4210, %v4014
    %v4213 = vunpack.c.l.s4 1983009808
    %v4214 = vunpack.c.0.s8 %v4213
    %v4215 = vperm.slane %v4211, %v4214
    %v4216 = vrot.slane %v4215, 4
    %v4217 = vsel %vm418, %v4216, %v4209
    %v4218 = vrot.slane %v4209, 4
    %v4219 = vsel %vm418, %v4215, %v4218
    %v4221 = vunpack.c.l.s4 1934713408
    %v4222 = vunpack.c.0.s8 %v4221
    %v4223 = vperm.slane %v4217, %v4222
    %v4225 = vunpack.c.l.s4 1934713408
    %v4226 = vunpack.c.0.s8 %v4225
    %v4227 = vperm.slane %v4219, %v4226
    %v4228 = vrot.slane %v4223, 4
    %v4229 = vsel %vm418, 0, %v4228
    %v4230 = vrot.slane %v4227, 4
    %v4231 = vsel %vm418, 0, %v4230
    %v4232 = vrot.slane %v4026, 4
    %v4233 = vsel %vm418, %v4232, %v4010
    %v4235 = vunpack.c.l.s4 1983009808
    %v4236 = vunpack.c.0.s8 %v4235
    %v4237 = vperm.slane %v4233, %v4236
    %v4238 = vrot.slane %v4034, 4
    %v4239 = vsel %vm418, %v4238, %v4018
    %v4241 = vunpack.c.l.s4 1983009808
    %v4242 = vunpack.c.0.s8 %v4241
    %v4243 = vperm.slane %v4239, %v4242
    %v4244 = vrot.slane %v4243, 4
    %v4245 = vsel %vm418, %v4244, %v4237
    %v4246 = vrot.slane %v4237, 4
    %v4247 = vsel %vm418, %v4243, %v4246
    %v4249 = vunpack.c.l.s4 1934713408
    %v4250 = vunpack.c.0.s8 %v4249
    %v4251 = vperm.slane %v4245, %v4250
    %v4253 = vunpack.c.l.s4 1934713408
    %v4254 = vunpack.c.0.s8 %v4253
    %v4255 = vperm.slane %v4247, %v4254
    %v4256 = vrot.slane %v4251, 4
    %v4257 = vsel %vm418, 0, %v4256
    %v4258 = vrot.slane %v4255, 4
    %v4259 = vsel %vm418, 0, %v4258
    %v4262 = vpack.i.b16 %v4083, %v4055
    %v4263 = vshrl.u32 %v4055, 16
    %v4264 = vshrl.u32 %v4083, 16
    %v4265 = vpack.i.b16 %v4264, %v4263
    %v4268 = vpack.i.b16 %v4089, %v4061
    %v4269 = vshrl.u32 %v4061, 16
    %v4270 = vshrl.u32 %v4089, 16
    %v4271 = vpack.i.b16 %v4270, %v4269
    %v4274 = vpack.i.b16 %v4087, %v4059
    %v4275 = vshrl.u32 %v4059, 16
    %v4276 = vshrl.u32 %v4087, 16
    %v4277 = vpack.i.b16 %v4276, %v4275
    %v4280 = vpack.i.b16 %v4091, %v4063
    %v4281 = vshrl.u32 %v4063, 16
    %v4282 = vshrl.u32 %v4091, 16
    %v4283 = vpack.i.b16 %v4282, %v4281
    %v4286 = vpack.i.b16 %v4139, %v4111
    %v4287 = vshrl.u32 %v4111, 16
    %v4288 = vshrl.u32 %v4139, 16
    %v4289 = vpack.i.b16 %v4288, %v4287
    %v4292 = vpack.i.b16 %v4145, %v4117
    %v4293 = vshrl.u32 %v4117, 16
    %v4294 = vshrl.u32 %v4145, 16
    %v4295 = vpack.i.b16 %v4294, %v4293
    %v4298 = vpack.i.b16 %v4143, %v4115
    %v4299 = vshrl.u32 %v4115, 16
    %v4300 = vshrl.u32 %v4143, 16
    %v4301 = vpack.i.b16 %v4300, %v4299
    %v4304 = vpack.i.b16 %v4147, %v4119
    %v4305 = vshrl.u32 %v4119, 16
    %v4306 = vshrl.u32 %v4147, 16
    %v4307 = vpack.i.b16 %v4306, %v4305
    %v4310 = vpack.i.b16 %v4195, %v4167
    %v4311 = vshrl.u32 %v4167, 16
    %v4312 = vshrl.u32 %v4195, 16
    %v4313 = vpack.i.b16 %v4312, %v4311
    %v4316 = vpack.i.b16 %v4201, %v4173
    %v4317 = vshrl.u32 %v4173, 16
    %v4318 = vshrl.u32 %v4201, 16
    %v4319 = vpack.i.b16 %v4318, %v4317
    %v4322 = vpack.i.b16 %v4199, %v4171
    %v4323 = vshrl.u32 %v4171, 16
    %v4324 = vshrl.u32 %v4199, 16
    %v4325 = vpack.i.b16 %v4324, %v4323
    %v4328 = vpack.i.b16 %v4203, %v4175
    %v4329 = vshrl.u32 %v4175, 16
    %v4330 = vshrl.u32 %v4203, 16
    %v4331 = vpack.i.b16 %v4330, %v4329
    %v4334 = vpack.i.b16 %v4251, %v4223
    %v4335 = vshrl.u32 %v4223, 16
    %v4336 = vshrl.u32 %v4251, 16
    %v4337 = vpack.i.b16 %v4336, %v4335
    %v4340 = vpack.i.b16 %v4257, %v4229
    %v4341 = vshrl.u32 %v4229, 16
    %v4342 = vshrl.u32 %v4257, 16
    %v4343 = vpack.i.b16 %v4342, %v4341
    %v4346 = vpack.i.b16 %v4255, %v4227
    %v4347 = vshrl.u32 %v4227, 16
    %v4348 = vshrl.u32 %v4255, 16
    %v4349 = vpack.i.b16 %v4348, %v4347
    %v4352 = vpack.i.b16 %v4259, %v4231
    %v4353 = vshrl.u32 %v4231, 16
    %v4354 = vshrl.u32 %v4259, 16
    %v4355 = vpack.i.b16 %v4354, %v4353
    %v4356 = vunpack.c.l.b16 %v4262
    %v4357 = vunpack.c.l.b16 %v4286
    %v4358 = vunpack.c.l.b16 %v4310
    %v4359 = vunpack.c.l.b16 %v4334
    %v4360 = vpack.c.b16 %v4357, %v4356
    %v4361 = vpack.c.b16 %v4359, %v4358
    %v4362 = vunpack.c.l.b16 %v4265
    %v4363 = vunpack.c.l.b16 %v4289
    %v4364 = vunpack.c.l.b16 %v4313
    %v4365 = vunpack.c.l.b16 %v4337
    %v4366 = vpack.c.b16 %v4363, %v4362
    %v4367 = vpack.c.b16 %v4365, %v4364
    %4368 = vrot.lane.b32.xlu0 %v4366, 8
    %v4369 = vpop.permute.xlu0 %4368
    %4370 = vrot.lane.b32.xlu0 %v4367, 8
    %v4371 = vpop.permute.xlu0 %4370
    %v4372 = vunpack.c.l.b16 %v4268
    %v4373 = vunpack.c.l.b16 %v4292
    %v4374 = vunpack.c.l.b16 %v4316
    %v4375 = vunpack.c.l.b16 %v4340
    %v4376 = vpack.c.b16 %v4373, %v4372
    %v4377 = vpack.c.b16 %v4375, %v4374
    %4378 = vrot.lane.b32.xlu0 %v4376, 16
    %v4379 = vpop.permute.xlu0 %4378
    %4380 = vrot.lane.b32.xlu0 %v4377, 16
    %v4381 = vpop.permute.xlu0 %4380
    %v4382 = vunpack.c.l.b16 %v4271
    %v4383 = vunpack.c.l.b16 %v4295
    %v4384 = vunpack.c.l.b16 %v4319
    %v4385 = vunpack.c.l.b16 %v4343
    %v4386 = vpack.c.b16 %v4383, %v4382
    %v4387 = vpack.c.b16 %v4385, %v4384
    %4388 = vrot.lane.b32.xlu0 %v4386, 24
    %v4389 = vpop.permute.xlu0 %4388
    %4390 = vrot.lane.b32.xlu0 %v4387, 24
    %v4391 = vpop.permute.xlu0 %4390
    %v4392 = vunpack.c.l.b16 %v4274
    %v4393 = vunpack.c.l.b16 %v4298
    %v4394 = vunpack.c.l.b16 %v4322
    %v4395 = vunpack.c.l.b16 %v4346
    %v4396 = vpack.c.b16 %v4393, %v4392
    %v4397 = vpack.c.b16 %v4395, %v4394
    %4398 = vrot.lane.b32.xlu0 %v4396, 32
    %v4399 = vpop.permute.xlu0 %4398
    %4400 = vrot.lane.b32.xlu0 %v4397, 32
    %v4401 = vpop.permute.xlu0 %4400
    %v4402 = vunpack.c.l.b16 %v4277
    %v4403 = vunpack.c.l.b16 %v4301
    %v4404 = vunpack.c.l.b16 %v4325
    %v4405 = vunpack.c.l.b16 %v4349
    %v4406 = vpack.c.b16 %v4403, %v4402
    %v4407 = vpack.c.b16 %v4405, %v4404
    %4408 = vrot.lane.b32.xlu0 %v4406, 40
    %v4409 = vpop.permute.xlu0 %4408
    %4410 = vrot.lane.b32.xlu0 %v4407, 40
    %v4411 = vpop.permute.xlu0 %4410
    %v4412 = vunpack.c.l.b16 %v4280
    %v4413 = vunpack.c.l.b16 %v4304
    %v4414 = vunpack.c.l.b16 %v4328
    %v4415 = vunpack.c.l.b16 %v4352
    %v4416 = vpack.c.b16 %v4413, %v4412
    %v4417 = vpack.c.b16 %v4415, %v4414
    %4418 = vrot.lane.b32.xlu0 %v4416, 48
    %v4419 = vpop.permute.xlu0 %4418
    %4420 = vrot.lane.b32.xlu0 %v4417, 48
    %v4421 = vpop.permute.xlu0 %4420
    %v4422 = vunpack.c.l.b16 %v4283
    %v4423 = vunpack.c.l.b16 %v4307
    %v4424 = vunpack.c.l.b16 %v4331
    %v4425 = vunpack.c.l.b16 %v4355
    %v4426 = vpack.c.b16 %v4423, %v4422
    %v4427 = vpack.c.b16 %v4425, %v4424
    %4428 = vrot.lane.b32.xlu0 %v4426, 56
    %v4429 = vpop.permute.xlu0 %4428
    %4430 = vrot.lane.b32.xlu0 %v4427, 56
    %v4431 = vpop.permute.xlu0 %4430
    %v4434 = vsel %vm2440, %v4360, %v4369
    %v4437 = vsel %vm2440, %v4361, %v4371
    %v4439 = vsel %vm2851, %v4434, %v4379
    %v4441 = vsel %vm2851, %v4437, %v4381
    %vm4442 = vcmask 195584
    %v4444 = vsel %vm4442, %v4439, %v4389
    %v4446 = vsel %vm4442, %v4441, %v4391
    %vm4447 = vcmask 261120
    %v4449 = vsel %vm4447, %v4444, %v4399
    %v4451 = vsel %vm4447, %v4446, %v4401
    %vm4452 = vcmask 326656
    %v4454 = vsel %vm4452, %v4449, %v4409
    %v4456 = vsel %vm4452, %v4451, %v4411
    %vm4457 = vcmask 392192
    %v4459 = vsel %vm4457, %v4454, %v4419
    %v4461 = vsel %vm4457, %v4456, %v4421
    %vm4462 = vcmask 457728
    %v4464 = vsel %vm4462, %v4459, %v4429
    %v4466 = vsel %vm4462, %v4461, %v4431
    %v4467 = vld [vmem:[#allocation7] sm:$0xf]
    %v4468 = vld [vmem:[#allocation7 + $0x4] sm:$0xf]
    %v4469 = vld [vmem:[#allocation7 + $0x8] sm:$0xf]
    %v4470 = vld [vmem:[#allocation7 + $0xc] sm:$0xf]
    %v4471 = vld [vmem:[#allocation7 + $0x10] sm:$0xf]
    %v4472 = vld [vmem:[#allocation7 + $0x14] sm:$0xf]
    %v4473 = vld [vmem:[#allocation7 + $0x18] sm:$0xf]
    %v4474 = vld [vmem:[#allocation7 + $0x1c] sm:$0xf]
    %v4475 = vld [vmem:[%s3] sm:$0x1]
    %v4477 = vperm.slane %v4475, 0
    %v4487 = vunpack.c.l.b16 %v4467
    %v4488 = vunpack.c.l.b16 %v4468
    %v4489 = vunpack.c.l.b16 %v4469
    %v4490 = vunpack.c.l.b16 %v4470
    %v4491 = vunpack.c.l.b16 %v4471
    %v4492 = vunpack.c.l.b16 %v4472
    %v4493 = vunpack.c.l.b16 %v4473
    %v4494 = vunpack.c.l.b16 %v4474
    %v4495 = vpack.c.b16 %v4488, %v4487
    %v4496 = vpack.c.b16 %v4490, %v4489
    %v4497 = vpack.c.b16 %v4492, %v4491
    %v4498 = vpack.c.b16 %v4494, %v4493
    %v4503 = vsel %vm120, %v4464, 0
    %v4505 = vsel %vm120, %v4466, 0
    %4507 = vmatpush.bf16.msra.mxu0 0
    %4508 = vmatpush.bf16.msra.mxu0 0
    %4509 = vmatpush.bf16.msra.mxu0 0
    %4510 = vmatpush.bf16.msra.mxu0 0
    %4511 = vmatpush.bf16.msra.mxu0 %v4498
    %4512 = vmatpush.bf16.msra.mxu0 %v4497
    %4513 = vmatpush.bf16.msra.mxu0 %v4496
    %4514 = vmatpush.bf16.msra.mxu0 %v4495
    %4515 = vmatmul.bf16.gmra.mxu0 %v4503
    %v4516 = vpop.f32.mrf.mxu0
    %v4517 = vadd.f32 %v4477, %v4516
    %v4518 = vpop.f32.mrf.mxu0
    %v4519 = vadd.f32 %v4477, %v4518
    %4520 = vmatmul.bf16.gmra.mxu0 %v4505
    %v4521 = vpop.f32.mrf.mxu0
    %v4522 = vadd.f32 %v4477, %v4521
    %v4523 = vpop.f32.mrf.mxu0
    %v4524 = vadd.f32 %v4477, %v4523
    %4525 = vdwg.mxu0
    %4526 = vst.msk [vmem:[#allocation8] sm:$0xff] %vm120, %v4517
    %4527 = vst.msk [vmem:[#allocation8 + $0x8] sm:$0xff] %vm120, %v4519
    %4528 = vst.msk [vmem:[#allocation8 + $0x10] sm:$0xff] %vm120, %v4522
    %4529 = vst.msk [vmem:[#allocation8 + $0x18] sm:$0xff] %vm120, %v4524
    // Predicated region
    $region30: #{tpu_custom_call.1} parent=1 // pred_check
      _
    $region31: #{tpu_custom_call.1} parent=1 // pred_check_branch
      %4531 = sbr.rel (0) target = $region33
    $region32: #{tpu_custom_call.1} parent=1 // pred_region
      %4533 = vsyncadd [#allocation4], 0
      %s4534 = sshll.u32 [#allocation8], 4
      %s4535 = int_to_ptr.vmem [resolvable:$true] %s4534
      %s4536 = sshll.u32 %s4, 4
      %s4537 = int_to_ptr.hbm [resolvable:$true] %s4536
      %4542 = dma.vmem_to_hbm [thread:$0]  %s4535, 512, %s4537, [#allocation4], 128, 128, 8
    $region33: #{tpu_custom_call.1} parent=1 // pred_fallthru
      _
    // Predicated region
    $region34: #{tpu_custom_call.1} parent=1 // pred_check
      _
    $region35: #{tpu_custom_call.1} parent=1 // pred_check_branch
      %4544 = sbr.rel (0) target = $region37
    $region36: #{tpu_custom_call.1} parent=1 // pred_region
      %4546 = dma.done [#allocation4], 512
    $region37: #{tpu_custom_call.1} parent=1 // pred_fallthru
      _
    %4547 = vsyncpa [#allocation3], 1
    %4548 = vsyncpa [#allocation6], 1
    %4549 = vsyncpa [#allocation4], 1

</llo_original>
